<compile_context>
chip_gen: v7x
topology: tpu7x:2x2x1
jax: 0.10.0
libtpu: 0.0.40
codegen_flags: <defaults>
</compile_context>

<pallas_src>
import functools

import jax
import jax.numpy as jnp
from jax.experimental import pallas as pl
from jax.experimental.pallas import tpu as pltpu

BN_EPS = 1e-5
_LANE = 128   # lane width: last dims padded to 128 for lane-dense, unmasked IO
_SUB = 8      # sublane count: second-minor block dims kept multiples of 8


def _round_up(x, m):
    return (x + m - 1) // m * m


@functools.lru_cache(maxsize=None)
def _vmem_limit_bytes():
    """~3/4 of physical VMEM (v5e/v6e -> ~96 MiB, v7x -> ~48 MiB), safe fallback."""
    try:
        cap = int(pltpu.get_tpu_info().vmem_capacity_bytes)
        return max(32 * 1024 * 1024, min(cap * 3 // 4, 100 * 1024 * 1024))
    except Exception:
        return 32 * 1024 * 1024


# ---------------------------------------------------------------------------
# Pass 1: in-kernel im2col conv (k*k accumulated MXU matmuls over one padded
# NHWC image slab) + per-channel sum / sum-of-squares for training-mode BN.
# grid = (cores, images_per_core): axis 0 "parallel", axis 1 "arbitrary".
# ---------------------------------------------------------------------------
def _conv_stats_kernel(x_ref, w_ref, conv_ref, sum_ref, ssq_ref, *, k, h, w):
    @pl.when(pl.program_id(1) == 0)
    def _init():
        sum_ref[...] = jnp.zeros_like(sum_ref)
        ssq_ref[...] = jnp.zeros_like(ssq_ref)

    x = x_ref[0]                         # (h+k-1, w+k-1, c_in_pad) bf16 in VMEM
    c_in_pad = x.shape[-1]

    # k*k shifted views of the same VMEM slab -> k*k accumulated MXU matmuls.
    # (Per-tap contraction depth is c_in_pad; fine for c_in >= 128, a bit
    #  shallow only for a net's very first layer, which is tiny anyway.)
    acc = None
    for kh in range(k):
        for kw in range(k):
            xs = x[kh:kh + h, kw:kw + w, :].reshape(h * w, c_in_pad)
            part = jnp.dot(xs, w_ref[kh * k + kw],
                           preferred_element_type=jnp.float32)
            acc = part if acc is None else acc + part

    conv_ref[...] = acc.astype(conv_ref.dtype)   # bf16 inter-pass intermediate

    # BN statistics from the f32 accumulator; VPU/XLU work hides under the MXU
    # for non-trivial channel counts.  Only row 0 of the 8-row per-core block
    # is used (rows 1..7 stay zero from the init), keeping block dims (8, 128).
    sum_ref[0:1, :] += jnp.sum(acc, axis=0, keepdims=True)
    ssq_ref[0:1, :] += jnp.sum(acc * acc, axis=0, keepdims=True)


# ---------------------------------------------------------------------------
# Pass 2: y = max(conv * scale + shift, 0)   (folded BN affine + ReLU)
# ---------------------------------------------------------------------------
def _bn_relu_kernel(conv_ref, scale_ref, shift_ref, o_ref):
    y = conv_ref[...].astype(jnp.float32) * scale_ref[...] + shift_ref[...]
    o_ref[...] = jnp.maximum(y, 0.0)


@functools.partial(jax.jit, static_argnames=("kernel_size", "padding"))
def layer_forward(x_nchw, weight, bias, gamma, beta, *, kernel_size=3, padding=1):
    """Equivalent of Layer.forward (stride-1 'same' conv). NCHW f32 in/out."""
    del bias  # exactly cancelled by training-mode BN mean subtraction
    n, c_in, h, w = x_nchw.shape
    c_out = weight.shape[0]
    k = kernel_size
    if k != 2 * padding + 1:
        raise ValueError("only stride-1 'same' convolutions are supported")
    if (h * w) % _SUB != 0:
        # TODO(synk): pad H*W up to a multiple of 8 to lift this restriction.
        raise ValueError("H*W must be a multiple of 8")

    c_in_pad = _round_up(c_in, _LANE)    # lane-dense input, MXU-aligned K
    c_pad = _round_up(c_out, _LANE)      # lane-dense conv/output stores
    m = n * h * w
    hw = h * w
    hp, wp = h + 2 * padding, w + 2 * padding
    num_cores = 2 if n % 2 == 0 else 1   # v7x: 2 TCs; harmless on v5e/v6e
    npc = n // num_cores
    vmem_limit = _vmem_limit_bytes()

    # Rough per-step VMEM footprint: double-buffered in/out blocks + f32 acc.
    per_step = (2 * (hp * wp * c_in_pad * 2 + k * k * c_in_pad * c_pad * 2
                     + hw * c_pad * 2) + hw * c_pad * 4)
    if per_step > vmem_limit:
        raise ValueError("image slab too large for VMEM; needs H/C_out tiling")

    # --- XLA glue (cheap): NCHW->NHWC in bf16, spatial + channel zero-pad ----
    x_nhwc = jnp.transpose(x_nchw, (0, 2, 3, 1)).astype(jnp.bfloat16)
    x_pad = jnp.pad(x_nhwc, ((0, 0), (padding, padding), (padding, padding),
                             (0, c_in_pad - c_in)))

    # weight (c_out, c_in, k, k) -> (k*k, c_in_pad, c_pad) bf16 (one tap / row)
    w_taps = jnp.transpose(weight, (2, 3, 1, 0)).reshape(k * k, c_in, c_out)
    w_taps = jnp.pad(w_taps,
                     ((0, 0), (0, c_in_pad - c_in), (0, c_pad - c_out)))
    w_taps = w_taps.astype(jnp.bfloat16)

    gamma_row = jnp.pad(gamma.astype(jnp.float32),
                        (0, c_pad - c_out)).reshape(1, c_pad)
    beta_row = jnp.pad(beta.astype(jnp.float32),
                       (0, c_pad - c_out)).reshape(1, c_pad)

    # --- Pass 1: conv matmuls + BN statistics --------------------------------
    kern = functools.partial(_conv_stats_kernel, k=k, h=h, w=w)
    conv_flat, sum_out, ssq_out = pl.pallas_call(
        kern,
        out_shape=(
            jax.ShapeDtypeStruct((m, c_pad), jnp.bfloat16),
            jax.ShapeDtypeStruct((num_cores * _SUB, c_pad), jnp.float32),
            jax.ShapeDtypeStruct((num_cores * _SUB, c_pad), jnp.float32),
        ),
        grid_spec=pltpu.PrefetchScalarGridSpec(
            num_scalar_prefetch=0,
            grid=(num_cores, npc),
            in_specs=[
                pl.BlockSpec((1, hp, wp, c_in_pad),
                             lambda c, i: (c * npc + i, 0, 0, 0)),
                pl.BlockSpec((k * k, c_in_pad, c_pad),
                             lambda c, i: (0, 0, 0)),
            ],
            out_specs=(
                pl.BlockSpec((hw, c_pad), lambda c, i: (c * npc + i, 0)),
                pl.BlockSpec((_SUB, c_pad), lambda c, i: (c, 0)),
                pl.BlockSpec((_SUB, c_pad), lambda c, i: (c, 0)),
            ),
        ),
        compiler_params=pltpu.CompilerParams(
            dimension_semantics=("parallel", "arbitrary"),
            vmem_limit_bytes=vmem_limit,
        ),
        cost_estimate=pl.CostEstimate(
            flops=2 * m * k * k * c_in_pad * c_pad,
            transcendentals=0,
            bytes_accessed=(n * hp * wp * c_in_pad * 2
                            + k * k * c_in_pad * c_pad * 2
                            + m * c_pad * 2
                            + 2 * num_cores * _SUB * c_pad * 4),
        ),
    )(x_pad, w_taps)

    # --- fold BN into one per-channel scale/shift (tiny XLA glue) ------------
    # Only row 0 of each core's 8-row block is nonzero, so a row-sum is exact.
    ch_sum = jnp.sum(sum_out, axis=0, keepdims=True)     # (1, c_pad)
    ch_ssq = jnp.sum(ssq_out, axis=0, keepdims=True)
    inv_m = 1.0 / float(m)                               # true M (no pad rows)
    mean = ch_sum * inv_m
    # NOTE: E[x^2]-E[x]^2 in f32 is cancellation-prone when |mean| >> std; fine
    # for conv activations (near-zero mean).  TODO(synk): shifted / Welford
    # accumulation for very large M with big DC offsets.
    var = jnp.maximum(ch_ssq * inv_m - mean * mean, 0.0)  # biased variance
    scale = gamma_row * jax.lax.rsqrt(var + BN_EPS)
    shift = beta_row - mean * scale

    # --- Pass 2: elementwise normalize + ReLU (lane-dense, megacore) ---------
    out_flat = pl.pallas_call(
        _bn_relu_kernel,
        out_shape=jax.ShapeDtypeStruct((m, c_pad), jnp.float32),
        grid_spec=pltpu.PrefetchScalarGridSpec(
            num_scalar_prefetch=0,
            grid=(n,),
            in_specs=[
                pl.BlockSpec((hw, c_pad), lambda i: (i, 0)),
                pl.BlockSpec((1, c_pad), lambda i: (0, 0)),
                pl.BlockSpec((1, c_pad), lambda i: (0, 0)),
            ],
            out_specs=pl.BlockSpec((hw, c_pad), lambda i: (i, 0)),
        ),
        compiler_params=pltpu.CompilerParams(
            dimension_semantics=("parallel",),
            vmem_limit_bytes=vmem_limit,
        ),
        cost_estimate=pl.CostEstimate(
            flops=2 * m * c_pad,
            transcendentals=0,
            bytes_accessed=m * c_pad * (2 + 4) + 2 * c_pad * 4,
        ),
    )(conv_flat, scale, shift)

    # --- back to NCHW (public PyTorch-style interface) ------------------------
    out_nhwc = out_flat.reshape(n, h, w, c_pad)
    if c_pad != c_out:
        out_nhwc = out_nhwc[..., :c_out]
    return jnp.transpose(out_nhwc, (0, 3, 1, 2))


def init_params(key, in_ch, out_ch, kernel_size=3):
    """Deterministic parameter init mirroring the PyTorch module."""
    k_w, k_b = jax.random.split(key)
    fan_in = in_ch * kernel_size * kernel_size
    fan_out = out_ch * kernel_size * kernel_size
    bound_w = (6.0 / (fan_in + fan_out)) ** 0.5          # xavier_uniform_
    weight = jax.random.uniform(
        k_w, (out_ch, in_ch, kernel_size, kernel_size),
        minval=-bound_w, maxval=bound_w, dtype=jnp.float32)
    bound_b = 1.0 / (fan_in ** 0.5)                      # default conv bias init
    bias = jax.random.uniform(k_b, (out_ch,), minval=-bound_b, maxval=bound_b,
                              dtype=jnp.float32)
    gamma = jnp.ones((out_ch,), jnp.float32)             # BN affine defaults
    beta = jnp.zeros((out_ch,), jnp.float32)
    return weight, bias, gamma, beta


def _reference(x, weight, bias, gamma, beta, padding):
    """Pure-JAX f32 reference: conv(+bias) -> training-mode BN -> ReLU."""
    conv = jax.lax.conv_general_dilated(
        x, weight, window_strides=(1, 1),
        padding=[(padding, padding), (padding, padding)],
        dimension_numbers=("NCHW", "OIHW", "NCHW"))
    conv = conv + bias[None, :, None, None]
    mean = jnp.mean(conv, axis=(0, 2, 3), keepdims=True)
    var = jnp.mean((conv - mean) ** 2, axis=(0, 2, 3), keepdims=True)
    normed = (conv - mean) * jax.lax.rsqrt(var + BN_EPS)
    normed = normed * gamma[None, :, None, None] + beta[None, :, None, None]
    return jnp.maximum(normed, 0.0)


if __name__ == "__main__":
    key = jax.random.PRNGKey(0)
    k_x, k_p = jax.random.split(key)

    # N=4 so the 2-core parallel axis AND the per-core multi-step stat
    # accumulation path are both exercised (2 cores x 2 images each).
    N, C_IN, H, W = 4, 4, 16, 16
    C_OUT = 8

    x = jax.random.normal(k_x, (N, C_IN, H, W), dtype=jnp.float32)
    weight, bias, gamma, beta = init_params(k_p, C_IN, C_OUT, kernel_size=3)

    out = layer_forward(x, weight, bias, gamma, beta, kernel_size=3, padding=1)
    out = jax.block_until_ready(out)

    assert out.shape == (N, C_OUT, H, W), out.shape
    assert out.dtype == jnp.float32
    assert bool(jnp.all(out >= 0.0))  # ReLU

    ref = _reference(x, weight, bias, gamma, beta, padding=1)
    max_err = float(jnp.max(jnp.abs(out - ref)))
    assert max_err < 1e-1, f"max abs err vs f32 reference: {max_err}"

    print("KERNEL_OK")
</pallas_src>

<mosaic_0001>
module attributes {stable_mosaic.version = 11 : i64} {
  func.func @_conv_stats_kernel(%arg0: i32, %arg1: i32, %arg2: memref<1x18x18x128xbf16, #tpu.memory_space<vmem>>, %arg3: memref<9x128x128xbf16, #tpu.memory_space<vmem>>, %arg4: memref<256x128xbf16, #tpu.memory_space<vmem>>, %arg5: memref<8x128xf32, #tpu.memory_space<vmem>>, %arg6: memref<8x128xf32, #tpu.memory_space<vmem>>) attributes {dimension_semantics = [#tpu.dimension_semantics<parallel>, #tpu.dimension_semantics<arbitrary>], iteration_bounds = array<i64: 2, 2>, scalar_prefetch = 0 : i64, scratch_operands = 0 : i64, tpu.core_type = #tpu.core_type<tc>, window_params = [{transform_indices = @transform_0, window_bounds = array<i64: 1, 18, 18, 128>}, {pipeline_mode = #tpu.pipeline_mode<synchronous>, transform_indices = @transform_1, window_bounds = array<i64: 9, 128, 128>}, {transform_indices = @transform_2, window_bounds = array<i64: 256, 128>}, {transform_indices = @transform_3, window_bounds = array<i64: 8, 128>}, {transform_indices = @transform_4, window_bounds = array<i64: 8, 128>}]} {
    %c0_i32 = arith.constant 0 : i32
    %0 = arith.cmpi eq, %arg1, %c0_i32 : i32
    %1 = arith.extui %0 : i1 to i32
    %c0_i32_0 = arith.constant 0 : i32
    %2 = arith.cmpi ne, %1, %c0_i32_0 : i32
    scf.if %2 {
      %cst_43 = arith.constant 0.000000e+00 : f32
      %71 = vector.broadcast %cst_43 : f32 to vector<8x128xf32>
      %c0_44 = arith.constant 0 : index
      %c0_45 = arith.constant 0 : index
      %72 = vector.load %arg5[%c0_44, %c0_45] : memref<8x128xf32, #tpu.memory_space<vmem>>, vector<8x128xf32>
      tpu.vector_store %arg5[%c0_44, %c0_45], %71 {strides = array<i32>} : memref<8x128xf32, #tpu.memory_space<vmem>>, vector<8x128xf32>,
      %cst_46 = arith.constant 0.000000e+00 : f32
      %73 = vector.broadcast %cst_46 : f32 to vector<8x128xf32>
      %c0_47 = arith.constant 0 : index
      %c0_48 = arith.constant 0 : index
      %74 = vector.load %arg6[%c0_47, %c0_48] : memref<8x128xf32, #tpu.memory_space<vmem>>, vector<8x128xf32>
      tpu.vector_store %arg6[%c0_47, %c0_48], %73 {strides = array<i32>} : memref<8x128xf32, #tpu.memory_space<vmem>>, vector<8x128xf32>,
    } else {
    }
    %c0 = arith.constant 0 : index
    %c0_1 = arith.constant 0 : index
    %c0_2 = arith.constant 0 : index
    %c0_3 = arith.constant 0 : index
    %3 = vector.load %arg2[%c0, %c0_1, %c0_2, %c0_3] : memref<1x18x18x128xbf16, #tpu.memory_space<vmem>>, vector<1x18x18x128xbf16>
    %4 = vector.shape_cast %3 : vector<1x18x18x128xbf16> to vector<18x18x128xbf16>
    %5 = vector.extract_strided_slice %4 {offsets = [0, 0, 0], sizes = [16, 16, 128], strides = [1, 1, 1]} : vector<18x18x128xbf16> to vector<16x16x128xbf16>
    %6 = vector.shape_cast %5 : vector<16x16x128xbf16> to vector<256x128xbf16>
    %c0_4 = arith.constant 0 : index
    %c0_5 = arith.constant 0 : index
    %c0_6 = arith.constant 0 : index
    %7 = vector.load %arg3[%c0_4, %c0_5, %c0_6] : memref<9x128x128xbf16, #tpu.memory_space<vmem>>, vector<1x128x128xbf16>
    %8 = vector.shape_cast %7 : vector<1x128x128xbf16> to vector<128x128xbf16>
    %cst = arith.constant dense<0.000000e+00> : vector<256x128xf32>
    %9 = tpu.matmul %6, %8, %cst {dimension_numbers = #tpu.dot_dimension_numbers<[1], [0], [0], [1], [0, 0, 1, 1], [], []>} : vector<256x128xbf16>, vector<128x128xbf16>, vector<256x128xf32> -> vector<256x128xf32>
    %10 = vector.extract_strided_slice %4 {offsets = [0, 1, 0], sizes = [16, 16, 128], strides = [1, 1, 1]} : vector<18x18x128xbf16> to vector<16x16x128xbf16>
    %11 = vector.shape_cast %10 : vector<16x16x128xbf16> to vector<256x128xbf16>
    %c1 = arith.constant 1 : index
    %c0_7 = arith.constant 0 : index
    %c0_8 = arith.constant 0 : index
    %12 = vector.load %arg3[%c1, %c0_7, %c0_8] : memref<9x128x128xbf16, #tpu.memory_space<vmem>>, vector<1x128x128xbf16>
    %13 = vector.shape_cast %12 : vector<1x128x128xbf16> to vector<128x128xbf16>
    %cst_9 = arith.constant dense<0.000000e+00> : vector<256x128xf32>
    %14 = tpu.matmul %11, %13, %cst_9 {dimension_numbers = #tpu.dot_dimension_numbers<[1], [0], [0], [1], [0, 0, 1, 1], [], []>} : vector<256x128xbf16>, vector<128x128xbf16>, vector<256x128xf32> -> vector<256x128xf32>
    %15 = arith.addf %9, %14 : vector<256x128xf32>
    %16 = vector.extract_strided_slice %4 {offsets = [0, 2, 0], sizes = [16, 16, 128], strides = [1, 1, 1]} : vector<18x18x128xbf16> to vector<16x16x128xbf16>
    %17 = vector.shape_cast %16 : vector<16x16x128xbf16> to vector<256x128xbf16>
    %c2 = arith.constant 2 : index
    %c0_10 = arith.constant 0 : index
    %c0_11 = arith.constant 0 : index
    %18 = vector.load %arg3[%c2, %c0_10, %c0_11] : memref<9x128x128xbf16, #tpu.memory_space<vmem>>, vector<1x128x128xbf16>
    %19 = vector.shape_cast %18 : vector<1x128x128xbf16> to vector<128x128xbf16>
    %cst_12 = arith.constant dense<0.000000e+00> : vector<256x128xf32>
    %20 = tpu.matmul %17, %19, %cst_12 {dimension_numbers = #tpu.dot_dimension_numbers<[1], [0], [0], [1], [0, 0, 1, 1], [], []>} : vector<256x128xbf16>, vector<128x128xbf16>, vector<256x128xf32> -> vector<256x128xf32>
    %21 = arith.addf %15, %20 : vector<256x128xf32>
    %22 = vector.extract_strided_slice %4 {offsets = [1, 0, 0], sizes = [16, 16, 128], strides = [1, 1, 1]} : vector<18x18x128xbf16> to vector<16x16x128xbf16>
    %23 = vector.shape_cast %22 : vector<16x16x128xbf16> to vector<256x128xbf16>
    %c3 = arith.constant 3 : index
    %c0_13 = arith.constant 0 : index
    %c0_14 = arith.constant 0 : index
    %24 = vector.load %arg3[%c3, %c0_13, %c0_14] : memref<9x128x128xbf16, #tpu.memory_space<vmem>>, vector<1x128x128xbf16>
    %25 = vector.shape_cast %24 : vector<1x128x128xbf16> to vector<128x128xbf16>
    %cst_15 = arith.constant dense<0.000000e+00> : vector<256x128xf32>
    %26 = tpu.matmul %23, %25, %cst_15 {dimension_numbers = #tpu.dot_dimension_numbers<[1], [0], [0], [1], [0, 0, 1, 1], [], []>} : vector<256x128xbf16>, vector<128x128xbf16>, vector<256x128xf32> -> vector<256x128xf32>
    %27 = arith.addf %21, %26 : vector<256x128xf32>
    %28 = vector.extract_strided_slice %4 {offsets = [1, 1, 0], sizes = [16, 16, 128], strides = [1, 1, 1]} : vector<18x18x128xbf16> to vector<16x16x128xbf16>
    %29 = vector.shape_cast %28 : vector<16x16x128xbf16> to vector<256x128xbf16>
    %c4 = arith.constant 4 : index
    %c0_16 = arith.constant 0 : index
    %c0_17 = arith.constant 0 : index
    %30 = vector.load %arg3[%c4, %c0_16, %c0_17] : memref<9x128x128xbf16, #tpu.memory_space<vmem>>, vector<1x128x128xbf16>
    %31 = vector.shape_cast %30 : vector<1x128x128xbf16> to vector<128x128xbf16>
    %cst_18 = arith.constant dense<0.000000e+00> : vector<256x128xf32>
    %32 = tpu.matmul %29, %31, %cst_18 {dimension_numbers = #tpu.dot_dimension_numbers<[1], [0], [0], [1], [0, 0, 1, 1], [], []>} : vector<256x128xbf16>, vector<128x128xbf16>, vector<256x128xf32> -> vector<256x128xf32>
    %33 = arith.addf %27, %32 : vector<256x128xf32>
    %34 = vector.extract_strided_slice %4 {offsets = [1, 2, 0], sizes = [16, 16, 128], strides = [1, 1, 1]} : vector<18x18x128xbf16> to vector<16x16x128xbf16>
    %35 = vector.shape_cast %34 : vector<16x16x128xbf16> to vector<256x128xbf16>
    %c5 = arith.constant 5 : index
    %c0_19 = arith.constant 0 : index
    %c0_20 = arith.constant 0 : index
    %36 = vector.load %arg3[%c5, %c0_19, %c0_20] : memref<9x128x128xbf16, #tpu.memory_space<vmem>>, vector<1x128x128xbf16>
    %37 = vector.shape_cast %36 : vector<1x128x128xbf16> to vector<128x128xbf16>
    %cst_21 = arith.constant dense<0.000000e+00> : vector<256x128xf32>
    %38 = tpu.matmul %35, %37, %cst_21 {dimension_numbers = #tpu.dot_dimension_numbers<[1], [0], [0], [1], [0, 0, 1, 1], [], []>} : vector<256x128xbf16>, vector<128x128xbf16>, vector<256x128xf32> -> vector<256x128xf32>
    %39 = arith.addf %33, %38 : vector<256x128xf32>
    %40 = vector.extract_strided_slice %4 {offsets = [2, 0, 0], sizes = [16, 16, 128], strides = [1, 1, 1]} : vector<18x18x128xbf16> to vector<16x16x128xbf16>
    %41 = vector.shape_cast %40 : vector<16x16x128xbf16> to vector<256x128xbf16>
    %c6 = arith.constant 6 : index
    %c0_22 = arith.constant 0 : index
    %c0_23 = arith.constant 0 : index
    %42 = vector.load %arg3[%c6, %c0_22, %c0_23] : memref<9x128x128xbf16, #tpu.memory_space<vmem>>, vector<1x128x128xbf16>
    %43 = vector.shape_cast %42 : vector<1x128x128xbf16> to vector<128x128xbf16>
    %cst_24 = arith.constant dense<0.000000e+00> : vector<256x128xf32>
    %44 = tpu.matmul %41, %43, %cst_24 {dimension_numbers = #tpu.dot_dimension_numbers<[1], [0], [0], [1], [0, 0, 1, 1], [], []>} : vector<256x128xbf16>, vector<128x128xbf16>, vector<256x128xf32> -> vector<256x128xf32>
    %45 = arith.addf %39, %44 : vector<256x128xf32>
    %46 = vector.extract_strided_slice %4 {offsets = [2, 1, 0], sizes = [16, 16, 128], strides = [1, 1, 1]} : vector<18x18x128xbf16> to vector<16x16x128xbf16>
    %47 = vector.shape_cast %46 : vector<16x16x128xbf16> to vector<256x128xbf16>
    %c7 = arith.constant 7 : index
    %c0_25 = arith.constant 0 : index
    %c0_26 = arith.constant 0 : index
    %48 = vector.load %arg3[%c7, %c0_25, %c0_26] : memref<9x128x128xbf16, #tpu.memory_space<vmem>>, vector<1x128x128xbf16>
    %49 = vector.shape_cast %48 : vector<1x128x128xbf16> to vector<128x128xbf16>
    %cst_27 = arith.constant dense<0.000000e+00> : vector<256x128xf32>
    %50 = tpu.matmul %47, %49, %cst_27 {dimension_numbers = #tpu.dot_dimension_numbers<[1], [0], [0], [1], [0, 0, 1, 1], [], []>} : vector<256x128xbf16>, vector<128x128xbf16>, vector<256x128xf32> -> vector<256x128xf32>
    %51 = arith.addf %45, %50 : vector<256x128xf32>
    %52 = vector.extract_strided_slice %4 {offsets = [2, 2, 0], sizes = [16, 16, 128], strides = [1, 1, 1]} : vector<18x18x128xbf16> to vector<16x16x128xbf16>
    %53 = vector.shape_cast %52 : vector<16x16x128xbf16> to vector<256x128xbf16>
    %c8 = arith.constant 8 : index
    %c0_28 = arith.constant 0 : index
    %c0_29 = arith.constant 0 : index
    %54 = vector.load %arg3[%c8, %c0_28, %c0_29] : memref<9x128x128xbf16, #tpu.memory_space<vmem>>, vector<1x128x128xbf16>
    %55 = vector.shape_cast %54 : vector<1x128x128xbf16> to vector<128x128xbf16>
    %cst_30 = arith.constant dense<0.000000e+00> : vector<256x128xf32>
    %56 = tpu.matmul %53, %55, %cst_30 {dimension_numbers = #tpu.dot_dimension_numbers<[1], [0], [0], [1], [0, 0, 1, 1], [], []>} : vector<256x128xbf16>, vector<128x128xbf16>, vector<256x128xf32> -> vector<256x128xf32>
    %57 = arith.addf %51, %56 : vector<256x128xf32>
    %58 = arith.truncf %57 : vector<256x128xf32> to vector<256x128xbf16>
    %c0_31 = arith.constant 0 : index
    %c0_32 = arith.constant 0 : index
    %59 = vector.load %arg4[%c0_31, %c0_32] : memref<256x128xbf16, #tpu.memory_space<vmem>>, vector<256x128xbf16>
    tpu.vector_store %arg4[%c0_31, %c0_32], %58 {strides = array<i32>} : memref<256x128xbf16, #tpu.memory_space<vmem>>, vector<256x128xbf16>,
    %c0_33 = arith.constant 0 : index
    %c0_34 = arith.constant 0 : index
    %60 = vector.load %arg5[%c0_33, %c0_34] : memref<8x128xf32, #tpu.memory_space<vmem>>, vector<1x128xf32>
    %cst_35 = arith.constant dense<0.000000e+00> : vector<128xf32>
    %61 = vector.multi_reduction <add>, %57, %cst_35 [0] : vector<256x128xf32> to vector<128xf32>
    %62 = vector.shape_cast %61 : vector<128xf32> to vector<1x128xf32>
    %63 = arith.addf %60, %62 : vector<1x128xf32>
    %c0_36 = arith.constant 0 : index
    %c0_37 = arith.constant 0 : index
    %64 = vector.load %arg5[%c0_36, %c0_37] : memref<8x128xf32, #tpu.memory_space<vmem>>, vector<1x128xf32>
    tpu.vector_store %arg5[%c0_36, %c0_37], %63 {strides = array<i32>} : memref<8x128xf32, #tpu.memory_space<vmem>>, vector<1x128xf32>,
    %c0_38 = arith.constant 0 : index
    %c0_39 = arith.constant 0 : index
    %65 = vector.load %arg6[%c0_38, %c0_39] : memref<8x128xf32, #tpu.memory_space<vmem>>, vector<1x128xf32>
    %66 = arith.mulf %57, %57 : vector<256x128xf32>
    %cst_40 = arith.constant dense<0.000000e+00> : vector<128xf32>
    %67 = vector.multi_reduction <add>, %66, %cst_40 [0] : vector<256x128xf32> to vector<128xf32>
    %68 = vector.shape_cast %67 : vector<128xf32> to vector<1x128xf32>
    %69 = arith.addf %65, %68 : vector<1x128xf32>
    %c0_41 = arith.constant 0 : index
    %c0_42 = arith.constant 0 : index
    %70 = vector.load %arg6[%c0_41, %c0_42] : memref<8x128xf32, #tpu.memory_space<vmem>>, vector<1x128xf32>
    tpu.vector_store %arg6[%c0_41, %c0_42], %69 {strides = array<i32>} : memref<8x128xf32, #tpu.memory_space<vmem>>, vector<1x128xf32>,
    return
  }
  func.func @transform_0(%arg0: i32, %arg1: i32) -> (i32, i32, i32, i32) {
    %c2_i32 = arith.constant 2 : i32
    %0 = arith.muli %arg0, %c2_i32 : i32
    %1 = arith.addi %0, %arg1 : i32
    %c0_i32 = arith.constant 0 : i32
    %c0_i32_0 = arith.constant 0 : i32
    %c0_i32_1 = arith.constant 0 : i32
    %c0_i32_2 = arith.constant 0 : i32
    return %1, %c0_i32, %c0_i32_0, %c0_i32_1 : i32, i32, i32, i32
  }
  func.func @transform_1(%arg0: i32, %arg1: i32) -> (i32, i32, i32) {
    %c0_i32 = arith.constant 0 : i32
    %c0_i32_0 = arith.constant 0 : i32
    %c0_i32_1 = arith.constant 0 : i32
    %c0_i32_2 = arith.constant 0 : i32
    return %c0_i32, %c0_i32_0, %c0_i32_1 : i32, i32, i32
  }
  func.func @transform_2(%arg0: i32, %arg1: i32) -> (i32, i32) {
    %c2_i32 = arith.constant 2 : i32
    %0 = arith.muli %arg0, %c2_i32 : i32
    %1 = arith.addi %0, %arg1 : i32
    %c0_i32 = arith.constant 0 : i32
    %c0_i32_0 = arith.constant 0 : i32
    return %1, %c0_i32 : i32, i32
  }
  func.func @transform_3(%arg0: i32, %arg1: i32) -> (i32, i32) {
    %c0_i32 = arith.constant 0 : i32
    %c0_i32_0 = arith.constant 0 : i32
    return %arg0, %c0_i32 : i32, i32
  }
  func.func @transform_4(%arg0: i32, %arg1: i32) -> (i32, i32) {
    %c0_i32 = arith.constant 0 : i32
    %c0_i32_0 = arith.constant 0 : i32
    return %arg0, %c0_i32 : i32, i32
  }
}

module attributes {stable_mosaic.version = 11 : i64} {
  func.func @_bn_relu_kernel(%arg0: i32, %arg1: memref<256x128xbf16, #tpu.memory_space<vmem>>, %arg2: memref<1x128xf32, #tpu.memory_space<vmem>>, %arg3: memref<1x128xf32, #tpu.memory_space<vmem>>, %arg4: memref<256x128xf32, #tpu.memory_space<vmem>>) attributes {dimension_semantics = [#tpu.dimension_semantics<parallel>], iteration_bounds = array<i64: 4>, scalar_prefetch = 0 : i64, scratch_operands = 0 : i64, tpu.core_type = #tpu.core_type<tc>, window_params = [{transform_indices = @transform_0, window_bounds = array<i64: 256, 128>}, {pipeline_mode = #tpu.pipeline_mode<synchronous>, transform_indices = @transform_1, window_bounds = array<i64: 1, 128>}, {pipeline_mode = #tpu.pipeline_mode<synchronous>, transform_indices = @transform_2, window_bounds = array<i64: 1, 128>}, {transform_indices = @transform_3, window_bounds = array<i64: 256, 128>}]} {
    %c0 = arith.constant 0 : index
    %c0_0 = arith.constant 0 : index
    %0 = vector.load %arg1[%c0, %c0_0] : memref<256x128xbf16, #tpu.memory_space<vmem>>, vector<256x128xbf16>
    %1 = arith.extf %0 : vector<256x128xbf16> to vector<256x128xf32>
    %c0_1 = arith.constant 0 : index
    %c0_2 = arith.constant 0 : index
    %2 = vector.load %arg2[%c0_1, %c0_2] : memref<1x128xf32, #tpu.memory_space<vmem>>, vector<1x128xf32>
    %3 = vector.broadcast %2 : vector<1x128xf32> to vector<256x128xf32>
    %4 = arith.mulf %1, %3 : vector<256x128xf32>
    %c0_3 = arith.constant 0 : index
    %c0_4 = arith.constant 0 : index
    %5 = vector.load %arg3[%c0_3, %c0_4] : memref<1x128xf32, #tpu.memory_space<vmem>>, vector<1x128xf32>
    %6 = vector.broadcast %5 : vector<1x128xf32> to vector<256x128xf32>
    %7 = arith.addf %4, %6 : vector<256x128xf32>
    %cst = arith.constant 0.000000e+00 : f32
    %8 = vector.broadcast %cst : f32 to vector<256x128xf32>
    %9 = arith.maximumf %7, %8 : vector<256x128xf32>
    %c0_5 = arith.constant 0 : index
    %c0_6 = arith.constant 0 : index
    %10 = vector.load %arg4[%c0_5, %c0_6] : memref<256x128xf32, #tpu.memory_space<vmem>>, vector<256x128xf32>
    tpu.vector_store %arg4[%c0_5, %c0_6], %9 {strides = array<i32>} : memref<256x128xf32, #tpu.memory_space<vmem>>, vector<256x128xf32>,
    return
  }
  func.func @transform_0(%arg0: i32) -> (i32, i32) {
    %c0_i32 = arith.constant 0 : i32
    %c0_i32_0 = arith.constant 0 : i32
    return %arg0, %c0_i32 : i32, i32
  }
  func.func @transform_1(%arg0: i32) -> (i32, i32) {
    %c0_i32 = arith.constant 0 : i32
    %c0_i32_0 = arith.constant 0 : i32
    %c0_i32_1 = arith.constant 0 : i32
    return %c0_i32, %c0_i32_0 : i32, i32
  }
  func.func @transform_2(%arg0: i32) -> (i32, i32) {
    %c0_i32 = arith.constant 0 : i32
    %c0_i32_0 = arith.constant 0 : i32
    %c0_i32_1 = arith.constant 0 : i32
    return %c0_i32, %c0_i32_0 : i32, i32
  }
  func.func @transform_3(%arg0: i32) -> (i32, i32) {
    %c0_i32 = arith.constant 0 : i32
    %c0_i32_0 = arith.constant 0 : i32
    return %arg0, %c0_i32 : i32, i32
  }
}

</mosaic_0001>

<llo_original>
// kernel: layer_forward.3
$region0: #{layer_forward.3}
  #allocation0 [shape = 'u32[]', space=smem, size = 0x4, offset = 0x4, fixed_abs, tag = 'smem constant byte address 0x4 - core index']
  #allocation1 [shape = 'u32[144,128]{1,0:T(1,128)}', space=vmem, size = 0x12000, scoped, tag = 'internal scratch']
  %s0 = inlined_call_operand.vmem [shape: bf16[1024,128], index: 0, kind: input, shape index: {}]
  %s1 = inlined_call_operand.vmem [shape: f32[1,128], index: 1, kind: input, shape index: {}]
  %s2 = inlined_call_operand.vmem [shape: f32[1,128], index: 2, kind: input, shape index: {}]
  %s3 = inlined_call_operand.vmem [shape: f32[1024,128], index: 3, kind: output, shape index: {}]
  %s4 = sld [smem:[#allocation0]]
  $region45: #{layer_forward.3} parent=0
    _
  %s6 = ssub.s32 1, %s4
  %s7 = scalar_select 0, %s6, %s4
  loop: start=0, step=1, limit=6
  $region2: #{layer_forward.3} parent=0 // loop_pre_header
    _
  $region3: #{layer_forward.3} parent=0 // loop_header
    %s9 = sphi 0, %s13
    %p10 = scmp.ge.s32.totalorder %s9, 6
    %s19 = sphi 0, %s21
    %s22 = sphi 0, %s19
    %s23 = sphi 0, %s22
    %s39 = sphi 0, %s23
    %s43 = sphi 0, %s43
    %s45 = sphi 0, %s43
    %s46 = sphi 0, %s45
    %s60 = sphi 0, %s46
    %s64 = sphi 0, %s64
    %s66 = sphi 0, %s64
    %s67 = sphi 0, %s66
    %s81 = sphi 0, %s67
    %s87 = sphi 0, %s89
    %s90 = sphi 0, %s87
    %s91 = sphi 0, %s90
    %s107 = sphi 0, %s91
  $region4: #{layer_forward.3} parent=0 // loop_header_branch
    %12 = sbr.rel (%p10) target = $region8
  $region5: #{layer_forward.3} parent=0 // loop_body
    %s14 = ssub.s32 %s9, 1
    %s15 = ssub.s32 %s9, 2
    %s16 = sadd.s32 %s9, 1
    %s17 = ssub.s32 %s9, %s16
    %p18 = scmp.eq.s32.totalorder %s17, 0
    %s20 = sadd.s32 %s19, 1
    %s21 = scalar_select %p18, %s19, %s20
    %p24 = pneg %p18
    %p25 = scmp.eq.s32.totalorder %s9, 3
    %p26 = por %p24, %p25
    %p27 = scmp.ne.s32.totalorder %s19, %s22
    %p28 = scmp.eq.s32.totalorder %s9, 0
    %p29 = por %p27, %p28
    %p30 = scmp.ne.s32.totalorder %s19, %s22
    %p31 = scmp.eq.s32.totalorder %s14, 3
    %p32 = por %p30, %p31
    %p33 = scmp.ne.s32.totalorder %s22, %s23
    %p34 = scmp.eq.s32.totalorder %s14, 0
    %p35 = por %p33, %p34
    %p36 = scmp.ne.s32.totalorder %s22, %s23
    %p37 = scmp.eq.s32.totalorder %s15, 3
    %p38 = por %p36, %p37
    %p40 = scmp.ne.s32.totalorder %s23, %s39
    %p41 = scmp.eq.s32.totalorder %s15, 0
    %p42 = por %p40, %p41
    %s44 = sadd.s32 %s43, 1
    %p47 = scmp.eq.s32.totalorder %s9, 3
    %p48 = scmp.ne.s32.totalorder %s43, %s45
    %p49 = scmp.eq.s32.totalorder %s9, 0
    %p50 = por %p48, %p49
    %p51 = scmp.ne.s32.totalorder %s43, %s45
    %p52 = scmp.eq.s32.totalorder %s14, 3
    %p53 = por %p51, %p52
    %p54 = scmp.ne.s32.totalorder %s45, %s46
    %p55 = scmp.eq.s32.totalorder %s14, 0
    %p56 = por %p54, %p55
    %p57 = scmp.ne.s32.totalorder %s45, %s46
    %p58 = scmp.eq.s32.totalorder %s15, 3
    %p59 = por %p57, %p58
    %p61 = scmp.ne.s32.totalorder %s46, %s60
    %p62 = scmp.eq.s32.totalorder %s15, 0
    %p63 = por %p61, %p62
    %s65 = sadd.s32 %s64, 1
    %p68 = scmp.eq.s32.totalorder %s9, 3
    %p69 = scmp.ne.s32.totalorder %s64, %s66
    %p70 = scmp.eq.s32.totalorder %s9, 0
    %p71 = por %p69, %p70
    %p72 = scmp.ne.s32.totalorder %s64, %s66
    %p73 = scmp.eq.s32.totalorder %s14, 3
    %p74 = por %p72, %p73
    %p75 = scmp.ne.s32.totalorder %s66, %s67
    %p76 = scmp.eq.s32.totalorder %s14, 0
    %p77 = por %p75, %p76
    %p78 = scmp.ne.s32.totalorder %s66, %s67
    %p79 = scmp.eq.s32.totalorder %s15, 3
    %p80 = por %p78, %p79
    %p82 = scmp.ne.s32.totalorder %s67, %s81
    %p83 = scmp.eq.s32.totalorder %s15, 0
    %p84 = por %p82, %p83
    %s85 = ssub.s32 %s9, %s16
    %p86 = scmp.eq.s32.totalorder %s85, 0
    %s88 = sadd.s32 %s87, 1
    %s89 = scalar_select %p86, %s87, %s88
    %p92 = pneg %p86
    %p93 = scmp.eq.s32.totalorder %s9, 3
    %p94 = por %p92, %p93
    %p95 = scmp.ne.s32.totalorder %s87, %s90
    %p96 = scmp.eq.s32.totalorder %s9, 0
    %p97 = por %p95, %p96
    %p98 = scmp.ne.s32.totalorder %s87, %s90
    %p99 = scmp.eq.s32.totalorder %s14, 3
    %p100 = por %p98, %p99
    %p101 = scmp.ne.s32.totalorder %s90, %s91
    %p102 = scmp.eq.s32.totalorder %s14, 0
    %p103 = por %p101, %p102
    %p104 = scmp.ne.s32.totalorder %s90, %s91
    %p105 = scmp.eq.s32.totalorder %s15, 3
    %p106 = por %p104, %p105
    %p108 = scmp.ne.s32.totalorder %s91, %s107
    %p109 = scmp.eq.s32.totalorder %s15, 0
    %p110 = por %p108, %p109
    %p111 = scmp.le.s32.totalorder 1, %s9
    %p112 = scmp.lt.s32.totalorder %s9, 5
    %p113 = pnand %p111, %p112
    %p114 = pneg %p113
    // Predicated region
    $region9: #{layer_forward.3} parent=5 // pred_check
      _
    $region10: #{layer_forward.3} parent=5 // pred_check_branch
      %116 = sbr.rel (%p113) target = $region12
    $region11: #{layer_forward.3} parent=5 // pred_region
      %s117 = ssub.s32 %s9, 1
      // Predicated region
      $region13: #{layer_forward.3} parent=11 // pred_check
        %p118 = pneg %p56
      $region14: #{layer_forward.3} parent=11 // pred_check_branch
        %120 = sbr.rel (%p118) target = $region16
      $region15: #{layer_forward.3} parent=11 // pred_region
        _
      $region16: #{layer_forward.3} parent=11 // pred_fallthru
        _
      // Predicated region
      $region17: #{layer_forward.3} parent=11 // pred_check
        %p121 = pneg %p77
      $region18: #{layer_forward.3} parent=11 // pred_check_branch
        %123 = sbr.rel (%p121) target = $region20
      $region19: #{layer_forward.3} parent=11 // pred_region
        _
      $region20: #{layer_forward.3} parent=11 // pred_fallthru
        _
    $region12: #{layer_forward.3} parent=5 // pred_fallthru
      _
    %p124 = scmp.lt.s32.totalorder %s9, 4
    // Predicated region
    $region21: #{layer_forward.3} parent=5 // pred_check
      %p125 = pneg %p124
    $region22: #{layer_forward.3} parent=5 // pred_check_branch
      %127 = sbr.rel (%p125) target = $region24
    $region23: #{layer_forward.3} parent=5 // pred_region
      // Predicated region
      $region25: #{layer_forward.3} parent=23 // pred_check
        %p128 = pneg %p29
      $region26: #{layer_forward.3} parent=23 // pred_check_branch
        %130 = sbr.rel (%p128) target = $region28
      $region27: #{layer_forward.3} parent=23 // pred_region
        %s131 = smul.u32 32, %s9
        %p132 = scmp.lt.s32.totalorder %s131, 127
        %s133 = scalar_select %p132, %s131, 127
        %s134 = smul.addr %s133, 4
        %s135 = scalar_lea.vmem %s0, %s134
        %s136 = smul.u32 32, %s9
      $region28: #{layer_forward.3} parent=23 // pred_fallthru
        _
    $region24: #{layer_forward.3} parent=5 // pred_fallthru
      _
    %p137 = scmp.le.s32.totalorder 1, %s9
    %p138 = scmp.lt.s32.totalorder %s9, 5
    %p139 = pnand %p137, %p138
    %p140 = pneg %p139
    // Predicated region
    $region29: #{layer_forward.3} parent=5 // pred_check
      _
    $region30: #{layer_forward.3} parent=5 // pred_check_branch
      %142 = sbr.rel (%p139) target = $region32
    $region31: #{layer_forward.3} parent=5 // pred_region
      %s143 = ssub.s32 %s9, 1
      %s144 = smul.u32 32, %s14
      %p145 = scmp.lt.s32.totalorder %s144, 127
      %s146 = scalar_select %p145, %s144, 127
      %s147 = smul.addr %s146, 4
      %s148 = scalar_lea.vmem %s0, %s147
      %p149 = pneg %p35
      %p150 = pneg %p32
      %p151 = pneg %p56
      %p152 = pneg %p53
      %p153 = pneg %p77
      %p154 = pneg %p74
      %p155 = pneg %p103
      %p156 = pneg %p100
      %s157 = smul.u32 32, %s14
      %p158 = scmp.lt.s32.totalorder %s157, 127
      %s159 = scalar_select %p158, %s157, 127
      %s160 = smul.addr %s159, 8
      %s161 = scalar_lea.vmem %s3, %s160
      %s162 = smul.u32 32, %s14
      %p163 = scmp.lt.s32.totalorder %s162, 127
      %s164 = scalar_select %p163, %s162, 127
      %s165 = smul.addr %s164, 4
      %s166 = scalar_lea.vmem %s0, %s165
      %s167 = smul.u32 32, %s14
      %s168 = smul.u32 32, %s14
      %p169 = scmp.lt.s32.totalorder %s168, 127
      %s170 = scalar_select %p169, %s168, 127
      %s171 = smul.addr %s170, 8
      %s172 = scalar_lea.vmem %s3, %s171
      %s173 = smul.u32 32, %s14
      %v174 = vld [vmem:[%s166] sm:$0xf]
      %v175 = vld [vmem:[%s166 + $0x4] sm:$0xf]
      %v176 = vld [vmem:[%s166 + $0x8] sm:$0xf]
      %v177 = vld [vmem:[%s166 + $0xc] sm:$0xf]
      %v178 = vld [vmem:[%s166 + $0x10] sm:$0xf]
      %v179 = vld [vmem:[%s166 + $0x14] sm:$0xf]
      %v180 = vld [vmem:[%s166 + $0x18] sm:$0xf]
      %v181 = vld [vmem:[%s166 + $0x1c] sm:$0xf]
      %v182 = vld [vmem:[%s166 + $0x20] sm:$0xf]
      %v183 = vld [vmem:[%s166 + $0x24] sm:$0xf]
      %v184 = vld [vmem:[%s166 + $0x28] sm:$0xf]
      %v185 = vld [vmem:[%s166 + $0x2c] sm:$0xf]
      %v186 = vld [vmem:[%s166 + $0x30] sm:$0xf]
      %v187 = vld [vmem:[%s166 + $0x34] sm:$0xf]
      %v188 = vld [vmem:[%s166 + $0x38] sm:$0xf]
      %v189 = vld [vmem:[%s166 + $0x3c] sm:$0xf]
      %v190 = vld [vmem:[%s166 + $0x40] sm:$0xf]
      %v191 = vld [vmem:[%s166 + $0x44] sm:$0xf]
      %v192 = vld [vmem:[%s166 + $0x48] sm:$0xf]
      %v193 = vld [vmem:[%s166 + $0x4c] sm:$0xf]
      %v194 = vld [vmem:[%s166 + $0x50] sm:$0xf]
      %v195 = vld [vmem:[%s166 + $0x54] sm:$0xf]
      %v196 = vld [vmem:[%s166 + $0x58] sm:$0xf]
      %v197 = vld [vmem:[%s166 + $0x5c] sm:$0xf]
      %v198 = vld [vmem:[%s166 + $0x60] sm:$0xf]
      %v199 = vld [vmem:[%s166 + $0x64] sm:$0xf]
      %v200 = vld [vmem:[%s166 + $0x68] sm:$0xf]
      %v201 = vld [vmem:[%s166 + $0x6c] sm:$0xf]
      %v202 = vld [vmem:[%s166 + $0x70] sm:$0xf]
      %v203 = vld [vmem:[%s166 + $0x74] sm:$0xf]
      %v204 = vld [vmem:[%s166 + $0x78] sm:$0xf]
      %v205 = vld [vmem:[%s166 + $0x7c] sm:$0xf]
      %v206 = vunpack.c.l.bf16 %v174
      %v207 = vunpack.c.l.bf16 %v175
      %v208 = vunpack.c.l.bf16 %v176
      %v209 = vunpack.c.l.bf16 %v177
      %v210 = vunpack.c.l.bf16 %v178
      %v211 = vunpack.c.l.bf16 %v179
      %v212 = vunpack.c.l.bf16 %v180
      %v213 = vunpack.c.l.bf16 %v181
      %v214 = vunpack.c.l.bf16 %v182
      %v215 = vunpack.c.l.bf16 %v183
      %v216 = vunpack.c.l.bf16 %v184
      %v217 = vunpack.c.l.bf16 %v185
      %v218 = vunpack.c.l.bf16 %v186
      %v219 = vunpack.c.l.bf16 %v187
      %v220 = vunpack.c.l.bf16 %v188
      %v221 = vunpack.c.l.bf16 %v189
      %v222 = vunpack.c.l.bf16 %v190
      %v223 = vunpack.c.l.bf16 %v191
      %v224 = vunpack.c.l.bf16 %v192
      %v225 = vunpack.c.l.bf16 %v193
      %v226 = vunpack.c.l.bf16 %v194
      %v227 = vunpack.c.l.bf16 %v195
      %v228 = vunpack.c.l.bf16 %v196
      %v229 = vunpack.c.l.bf16 %v197
      %v230 = vunpack.c.l.bf16 %v198
      %v231 = vunpack.c.l.bf16 %v199
      %v232 = vunpack.c.l.bf16 %v200
      %v233 = vunpack.c.l.bf16 %v201
      %v234 = vunpack.c.l.bf16 %v202
      %v235 = vunpack.c.l.bf16 %v203
      %v236 = vunpack.c.l.bf16 %v204
      %v237 = vunpack.c.l.bf16 %v205
      %v238 = vld [vmem:[%s1] sm:$0x1]
      %v240 = vlaneseq
      %v241 = vshrl.u32 %v240, 7
      %v242 = vsub.s32 0, %v241
      %v243 = vrot.slane %v238, %v242
      %v245 = vmul.f32 %v206, %v243
      %v246 = vmul.f32 %v207, %v243
      %v247 = vmul.f32 %v208, %v243
      %v248 = vmul.f32 %v209, %v243
      %v249 = vmul.f32 %v210, %v243
      %v250 = vmul.f32 %v211, %v243
      %v251 = vmul.f32 %v212, %v243
      %v252 = vmul.f32 %v213, %v243
      %v253 = vmul.f32 %v214, %v243
      %v254 = vmul.f32 %v215, %v243
      %v255 = vmul.f32 %v216, %v243
      %v256 = vmul.f32 %v217, %v243
      %v257 = vmul.f32 %v218, %v243
      %v258 = vmul.f32 %v219, %v243
      %v259 = vmul.f32 %v220, %v243
      %v260 = vmul.f32 %v221, %v243
      %v261 = vmul.f32 %v222, %v243
      %v262 = vmul.f32 %v223, %v243
      %v263 = vmul.f32 %v224, %v243
      %v264 = vmul.f32 %v225, %v243
      %v265 = vmul.f32 %v226, %v243
      %v266 = vmul.f32 %v227, %v243
      %v267 = vmul.f32 %v228, %v243
      %v268 = vmul.f32 %v229, %v243
      %v269 = vmul.f32 %v230, %v243
      %v270 = vmul.f32 %v231, %v243
      %v271 = vmul.f32 %v232, %v243
      %v272 = vmul.f32 %v233, %v243
      %v273 = vmul.f32 %v234, %v243
      %v274 = vmul.f32 %v235, %v243
      %v275 = vmul.f32 %v236, %v243
      %v276 = vmul.f32 %v237, %v243
      %v277 = vld [vmem:[%s2] sm:$0x1]
      %v279 = vlaneseq
      %v280 = vshrl.u32 %v279, 7
      %v281 = vsub.s32 0, %v280
      %v282 = vrot.slane %v277, %v281
      %v284 = vadd.f32 %v245, %v282
      %v285 = vadd.f32 %v246, %v282
      %v286 = vadd.f32 %v247, %v282
      %v287 = vadd.f32 %v248, %v282
      %v288 = vadd.f32 %v249, %v282
      %v289 = vadd.f32 %v250, %v282
      %v290 = vadd.f32 %v251, %v282
      %v291 = vadd.f32 %v252, %v282
      %v292 = vadd.f32 %v253, %v282
      %v293 = vadd.f32 %v254, %v282
      %v294 = vadd.f32 %v255, %v282
      %v295 = vadd.f32 %v256, %v282
      %v296 = vadd.f32 %v257, %v282
      %v297 = vadd.f32 %v258, %v282
      %v298 = vadd.f32 %v259, %v282
      %v299 = vadd.f32 %v260, %v282
      %v300 = vadd.f32 %v261, %v282
      %v301 = vadd.f32 %v262, %v282
      %v302 = vadd.f32 %v263, %v282
      %v303 = vadd.f32 %v264, %v282
      %v304 = vadd.f32 %v265, %v282
      %v305 = vadd.f32 %v266, %v282
      %v306 = vadd.f32 %v267, %v282
      %v307 = vadd.f32 %v268, %v282
      %v308 = vadd.f32 %v269, %v282
      %v309 = vadd.f32 %v270, %v282
      %v310 = vadd.f32 %v271, %v282
      %v311 = vadd.f32 %v272, %v282
      %v312 = vadd.f32 %v273, %v282
      %v313 = vadd.f32 %v274, %v282
      %v314 = vadd.f32 %v275, %v282
      %v315 = vadd.f32 %v276, %v282
      %v316 = vmax.f32 %v284, 0.0
      %v317 = vmax.f32 %v285, 0.0
      %v318 = vmax.f32 %v286, 0.0
      %v319 = vmax.f32 %v287, 0.0
      %v320 = vmax.f32 %v288, 0.0
      %v321 = vmax.f32 %v289, 0.0
      %v322 = vmax.f32 %v290, 0.0
      %v323 = vmax.f32 %v291, 0.0
      %v324 = vmax.f32 %v292, 0.0
      %v325 = vmax.f32 %v293, 0.0
      %v326 = vmax.f32 %v294, 0.0
      %v327 = vmax.f32 %v295, 0.0
      %v328 = vmax.f32 %v296, 0.0
      %v329 = vmax.f32 %v297, 0.0
      %v330 = vmax.f32 %v298, 0.0
      %v331 = vmax.f32 %v299, 0.0
      %v332 = vmax.f32 %v300, 0.0
      %v333 = vmax.f32 %v301, 0.0
      %v334 = vmax.f32 %v302, 0.0
      %v335 = vmax.f32 %v303, 0.0
      %v336 = vmax.f32 %v304, 0.0
      %v337 = vmax.f32 %v305, 0.0
      %v338 = vmax.f32 %v306, 0.0
      %v339 = vmax.f32 %v307, 0.0
      %v340 = vmax.f32 %v308, 0.0
      %v341 = vmax.f32 %v309, 0.0
      %v342 = vmax.f32 %v310, 0.0
      %v343 = vmax.f32 %v311, 0.0
      %v344 = vmax.f32 %v312, 0.0
      %v345 = vmax.f32 %v313, 0.0
      %v346 = vmax.f32 %v314, 0.0
      %v347 = vmax.f32 %v315, 0.0
      %348 = vst [vmem:[%s172] sm:$0xff] %v316
      %349 = vst [vmem:[%s172 + $0x8] sm:$0xff] %v317
      %350 = vst [vmem:[%s172 + $0x10] sm:$0xff] %v318
      %351 = vst [vmem:[%s172 + $0x18] sm:$0xff] %v319
      %352 = vst [vmem:[%s172 + $0x20] sm:$0xff] %v320
      %353 = vst [vmem:[%s172 + $0x28] sm:$0xff] %v321
      %354 = vst [vmem:[%s172 + $0x30] sm:$0xff] %v322
      %355 = vst [vmem:[%s172 + $0x38] sm:$0xff] %v323
      %356 = vst [vmem:[%s172 + $0x40] sm:$0xff] %v324
      %357 = vst [vmem:[%s172 + $0x48] sm:$0xff] %v325
      %358 = vst [vmem:[%s172 + $0x50] sm:$0xff] %v326
      %359 = vst [vmem:[%s172 + $0x58] sm:$0xff] %v327
      %360 = vst [vmem:[%s172 + $0x60] sm:$0xff] %v328
      %361 = vst [vmem:[%s172 + $0x68] sm:$0xff] %v329
      %362 = vst [vmem:[%s172 + $0x70] sm:$0xff] %v330
      %363 = vst [vmem:[%s172 + $0x78] sm:$0xff] %v331
      %364 = vst [vmem:[%s172 + $0x80] sm:$0xff] %v332
      %365 = vst [vmem:[%s172 + $0x88] sm:$0xff] %v333
      %366 = vst [vmem:[%s172 + $0x90] sm:$0xff] %v334
      %367 = vst [vmem:[%s172 + $0x98] sm:$0xff] %v335
      %368 = vst [vmem:[%s172 + $0xa0] sm:$0xff] %v336
      %369 = vst [vmem:[%s172 + $0xa8] sm:$0xff] %v337
      %370 = vst [vmem:[%s172 + $0xb0] sm:$0xff] %v338
      %371 = vst [vmem:[%s172 + $0xb8] sm:$0xff] %v339
      %372 = vst [vmem:[%s172 + $0xc0] sm:$0xff] %v340
      %373 = vst [vmem:[%s172 + $0xc8] sm:$0xff] %v341
      %374 = vst [vmem:[%s172 + $0xd0] sm:$0xff] %v342
      %375 = vst [vmem:[%s172 + $0xd8] sm:$0xff] %v343
      %376 = vst [vmem:[%s172 + $0xe0] sm:$0xff] %v344
      %377 = vst [vmem:[%s172 + $0xe8] sm:$0xff] %v345
      %378 = vst [vmem:[%s172 + $0xf0] sm:$0xff] %v346
      %379 = vst [vmem:[%s172 + $0xf8] sm:$0xff] %v347
      %s380 = smul.u32 32, %s14
      %p381 = scmp.lt.s32.totalorder %s380, 127
      %s382 = scalar_select %p381, %s380, 127
      %s383 = smul.addr %s382, 8
      %s384 = scalar_lea.vmem %s3, %s383
      // Predicated region
      $region33: #{layer_forward.3} parent=31 // pred_check
        %p385 = pneg %p100
      $region34: #{layer_forward.3} parent=31 // pred_check_branch
        %387 = sbr.rel (%p385) target = $region36
      $region35: #{layer_forward.3} parent=31 // pred_region
        %s388 = smul.u32 32, %s14
      $region36: #{layer_forward.3} parent=31 // pred_fallthru
        _
    $region32: #{layer_forward.3} parent=5 // pred_fallthru
      _
    %p389 = scmp.le.s32.totalorder 2, %s9
    // Predicated region
    $region37: #{layer_forward.3} parent=5 // pred_check
      %p390 = pneg %p389
    $region38: #{layer_forward.3} parent=5 // pred_check_branch
      %392 = sbr.rel (%p390) target = $region40
    $region39: #{layer_forward.3} parent=5 // pred_region
      %s393 = ssub.s32 %s9, 2
      // Predicated region
      $region41: #{layer_forward.3} parent=39 // pred_check
        %p394 = pneg %p106
      $region42: #{layer_forward.3} parent=39 // pred_check_branch
        %396 = sbr.rel (%p394) target = $region44
      $region43: #{layer_forward.3} parent=39 // pred_region
        %s397 = smul.u32 32, %s15
        %p398 = scmp.lt.s32.totalorder %s397, 127
        %s399 = scalar_select %p398, %s397, 127
        %s400 = smul.addr %s399, 8
        %s401 = scalar_lea.vmem %s3, %s400
      $region44: #{layer_forward.3} parent=39 // pred_fallthru
        _
    $region40: #{layer_forward.3} parent=5 // pred_fallthru
      _
  $region6: #{layer_forward.3} parent=0 // loop_footer
    %s13 = sadd.s32 1, %s9
  $region7: #{layer_forward.3} parent=0 // loop_footer_branch
    %8 = sbr.rel target = $region3
  $region8: #{layer_forward.3} parent=0 // loop_exit
    _

// kernel: layer_forward.2
$region0: #{layer_forward.2}
  #allocation0 [shape = 'u32[]', space=smem, size = 0x4, offset = 0x4, fixed_abs, tag = 'smem constant byte address 0x4 - core index']
  #allocation1 [shape = 'u32[144,128]{1,0:T(1,128)}', space=vmem, size = 0x12000, scoped, tag = 'internal scratch']
  %s0 = inlined_call_operand.vmem [shape: bf16[4,18,18,128], index: 0, kind: input, shape index: {}]
  %s1 = inlined_call_operand.vmem [shape: bf16[9,128,128], index: 1, kind: input, shape index: {}]
  %s2 = inlined_call_operand.vmem [shape: bf16[1024,128], index: 2, kind: output, shape index: {0}]
  %s3 = inlined_call_operand.vmem [shape: f32[16,128], index: 3, kind: output, shape index: {1}]
  %s4 = inlined_call_operand.vmem [shape: f32[16,128], index: 4, kind: output, shape index: {2}]
  %5 = xla_tuple %s2, %s3, %s4
  %s6 = sld [smem:[#allocation0]]
  $region61: #{layer_forward.2} parent=0
    _
  %s8 = ssub.s32 1, %s6
  %s9 = scalar_select 0, %s8, %s6
  loop: start=0, step=1, limit=6
  $region2: #{layer_forward.2} parent=0 // loop_pre_header
    _
  $region3: #{layer_forward.2} parent=0 // loop_header
    %s11 = sphi 0, %s15
    %p12 = scmp.ge.s32.totalorder %s11, 6
    %s18 = sphi 0, %s30
    %s19 = sphi 0, %s26
    %s20 = sphi 0, %s18
    %s21 = sphi 0, %s19
    %s22 = sphi 0, %s20
    %s23 = sphi 0, %s21
    %s37 = sphi 0, %s39
    %s40 = sphi 0, %s37
    %s41 = sphi 0, %s40
    %s57 = sphi 0, %s41
    %s61 = sphi 0, %s61
    %s63 = sphi 0, %s61
    %s64 = sphi 0, %s63
    %s78 = sphi 0, %s64
    %s88 = sphi 0, %s90
    %s91 = sphi 0, %s88
    %s92 = sphi 0, %s91
    %s108 = sphi 0, %s92
    %s114 = sphi 0, %s116
    %s117 = sphi 0, %s114
    %s118 = sphi 0, %s117
    %s134 = sphi 0, %s118
    %s140 = sphi 0, %s142
    %s143 = sphi 0, %s140
    %s144 = sphi 0, %s143
    %s160 = sphi 0, %s144
  $region4: #{layer_forward.2} parent=0 // loop_header_branch
    %14 = sbr.rel (%p12) target = $region8
  $region5: #{layer_forward.2} parent=0 // loop_body
    %s16 = ssub.s32 %s11, 1
    %s17 = ssub.s32 %s11, 2
    %s24 = sadd.s32 1, %s19
    %p25 = scmp.ge.s32.totalorder %s24, 2
    %s26 = scalar_select %p25, 0, %s24
    %s27 = sadd.s32 1, %s18
    %s28 = scalar_select %p25, %s27, %s18
    %p29 = scmp.ge.s32.totalorder %s28, 2
    %s30 = scalar_select %p29, 0, %s28
    %s31 = smul.u32 %s18, 2
    %s32 = sadd.s32 %s31, %s19
    %s33 = smul.u32 %s30, 2
    %s34 = sadd.s32 %s33, %s26
    %s35 = ssub.s32 %s32, %s34
    %p36 = scmp.eq.s32.totalorder %s35, 0
    %s38 = sadd.s32 %s37, 1
    %s39 = scalar_select %p36, %s37, %s38
    %p42 = pneg %p36
    %p43 = scmp.eq.s32.totalorder %s11, 3
    %p44 = por %p42, %p43
    %p45 = scmp.ne.s32.totalorder %s37, %s40
    %p46 = scmp.eq.s32.totalorder %s11, 0
    %p47 = por %p45, %p46
    %p48 = scmp.ne.s32.totalorder %s37, %s40
    %p49 = scmp.eq.s32.totalorder %s16, 3
    %p50 = por %p48, %p49
    %p51 = scmp.ne.s32.totalorder %s40, %s41
    %p52 = scmp.eq.s32.totalorder %s16, 0
    %p53 = por %p51, %p52
    %p54 = scmp.ne.s32.totalorder %s40, %s41
    %p55 = scmp.eq.s32.totalorder %s17, 3
    %p56 = por %p54, %p55
    %p58 = scmp.ne.s32.totalorder %s41, %s57
    %p59 = scmp.eq.s32.totalorder %s17, 0
    %p60 = por %p58, %p59
    %s62 = sadd.s32 %s61, 1
    %p65 = scmp.eq.s32.totalorder %s11, 3
    %p66 = scmp.ne.s32.totalorder %s61, %s63
    %p67 = scmp.eq.s32.totalorder %s11, 0
    %p68 = por %p66, %p67
    %p69 = scmp.ne.s32.totalorder %s61, %s63
    %p70 = scmp.eq.s32.totalorder %s16, 3
    %p71 = por %p69, %p70
    %p72 = scmp.ne.s32.totalorder %s63, %s64
    %p73 = scmp.eq.s32.totalorder %s16, 0
    %p74 = por %p72, %p73
    %p75 = scmp.ne.s32.totalorder %s63, %s64
    %p76 = scmp.eq.s32.totalorder %s17, 3
    %p77 = por %p75, %p76
    %p79 = scmp.ne.s32.totalorder %s64, %s78
    %p80 = scmp.eq.s32.totalorder %s17, 0
    %p81 = por %p79, %p80
    %s82 = smul.u32 %s18, 2
    %s83 = sadd.s32 %s82, %s19
    %s84 = smul.u32 %s30, 2
    %s85 = sadd.s32 %s84, %s26
    %s86 = ssub.s32 %s83, %s85
    %p87 = scmp.eq.s32.totalorder %s86, 0
    %s89 = sadd.s32 %s88, 1
    %s90 = scalar_select %p87, %s88, %s89
    %p93 = pneg %p87
    %p94 = scmp.eq.s32.totalorder %s11, 3
    %p95 = por %p93, %p94
    %p96 = scmp.ne.s32.totalorder %s88, %s91
    %p97 = scmp.eq.s32.totalorder %s11, 0
    %p98 = por %p96, %p97
    %p99 = scmp.ne.s32.totalorder %s88, %s91
    %p100 = scmp.eq.s32.totalorder %s16, 3
    %p101 = por %p99, %p100
    %p102 = scmp.ne.s32.totalorder %s91, %s92
    %p103 = scmp.eq.s32.totalorder %s16, 0
    %p104 = por %p102, %p103
    %p105 = scmp.ne.s32.totalorder %s91, %s92
    %p106 = scmp.eq.s32.totalorder %s17, 3
    %p107 = por %p105, %p106
    %p109 = scmp.ne.s32.totalorder %s92, %s108
    %p110 = scmp.eq.s32.totalorder %s17, 0
    %p111 = por %p109, %p110
    %s112 = ssub.s32 %s18, %s30
    %p113 = scmp.eq.s32.totalorder %s112, 0
    %s115 = sadd.s32 %s114, 1
    %s116 = scalar_select %p113, %s114, %s115
    %p119 = pneg %p113
    %p120 = scmp.eq.s32.totalorder %s11, 3
    %p121 = por %p119, %p120
    %p122 = scmp.ne.s32.totalorder %s114, %s117
    %p123 = scmp.eq.s32.totalorder %s11, 0
    %p124 = por %p122, %p123
    %p125 = scmp.ne.s32.totalorder %s114, %s117
    %p126 = scmp.eq.s32.totalorder %s16, 3
    %p127 = por %p125, %p126
    %p128 = scmp.ne.s32.totalorder %s117, %s118
    %p129 = scmp.eq.s32.totalorder %s16, 0
    %p130 = por %p128, %p129
    %p131 = scmp.ne.s32.totalorder %s117, %s118
    %p132 = scmp.eq.s32.totalorder %s17, 3
    %p133 = por %p131, %p132
    %p135 = scmp.ne.s32.totalorder %s118, %s134
    %p136 = scmp.eq.s32.totalorder %s17, 0
    %p137 = por %p135, %p136
    %s138 = ssub.s32 %s18, %s30
    %p139 = scmp.eq.s32.totalorder %s138, 0
    %s141 = sadd.s32 %s140, 1
    %s142 = scalar_select %p139, %s140, %s141
    %p145 = pneg %p139
    %p146 = scmp.eq.s32.totalorder %s11, 3
    %p147 = por %p145, %p146
    %p148 = scmp.ne.s32.totalorder %s140, %s143
    %p149 = scmp.eq.s32.totalorder %s11, 0
    %p150 = por %p148, %p149
    %p151 = scmp.ne.s32.totalorder %s140, %s143
    %p152 = scmp.eq.s32.totalorder %s16, 3
    %p153 = por %p151, %p152
    %p154 = scmp.ne.s32.totalorder %s143, %s144
    %p155 = scmp.eq.s32.totalorder %s16, 0
    %p156 = por %p154, %p155
    %p157 = scmp.ne.s32.totalorder %s143, %s144
    %p158 = scmp.eq.s32.totalorder %s17, 3
    %p159 = por %p157, %p158
    %p161 = scmp.ne.s32.totalorder %s144, %s160
    %p162 = scmp.eq.s32.totalorder %s17, 0
    %p163 = por %p161, %p162
    %p164 = scmp.le.s32.totalorder 1, %s11
    %p165 = scmp.lt.s32.totalorder %s11, 5
    %p166 = pnand %p164, %p165
    %p167 = pneg %p166
    // Predicated region
    $region9: #{layer_forward.2} parent=5 // pred_check
      _
    $region10: #{layer_forward.2} parent=5 // pred_check_branch
      %169 = sbr.rel (%p166) target = $region12
    $region11: #{layer_forward.2} parent=5 // pred_region
      %s170 = ssub.s32 %s11, 1
      // Predicated region
      $region13: #{layer_forward.2} parent=11 // pred_check
        %p171 = pneg %p74
      $region14: #{layer_forward.2} parent=11 // pred_check_branch
        %173 = sbr.rel (%p171) target = $region16
      $region15: #{layer_forward.2} parent=11 // pred_region
        _
      $region16: #{layer_forward.2} parent=11 // pred_fallthru
        _
    $region12: #{layer_forward.2} parent=5 // pred_fallthru
      _
    %p174 = scmp.lt.s32.totalorder %s11, 4
    // Predicated region
    $region17: #{layer_forward.2} parent=5 // pred_check
      %p175 = pneg %p174
    $region18: #{layer_forward.2} parent=5 // pred_check_branch
      %177 = sbr.rel (%p175) target = $region20
    $region19: #{layer_forward.2} parent=5 // pred_region
      // Predicated region
      $region21: #{layer_forward.2} parent=19 // pred_check
        %p178 = pneg %p47
      $region22: #{layer_forward.2} parent=19 // pred_check_branch
        %180 = sbr.rel (%p178) target = $region24
      $region23: #{layer_forward.2} parent=19 // pred_region
        %s181 = smul.u32 %s18, 2
        %s182 = sadd.s32 %s181, %s19
        %p183 = scmp.lt.s32.totalorder %s182, 3
        %s184 = scalar_select %p183, %s182, 3
        %s185 = smul.addr %s184, 54
        %s186 = smul.addr %s185, 4
        %s187 = scalar_lea.vmem %s0, %s186
        %s188 = smul.u32 %s18, 2
        %s189 = sadd.s32 %s188, %s19
      $region24: #{layer_forward.2} parent=19 // pred_fallthru
        _
    $region20: #{layer_forward.2} parent=5 // pred_fallthru
      _
    %p190 = scmp.le.s32.totalorder 1, %s11
    %p191 = scmp.lt.s32.totalorder %s11, 5
    %p192 = pnand %p190, %p191
    %p193 = pneg %p192
    // Predicated region
    $region25: #{layer_forward.2} parent=5 // pred_check
      _
    $region26: #{layer_forward.2} parent=5 // pred_check_branch
      %195 = sbr.rel (%p192) target = $region28
    $region27: #{layer_forward.2} parent=5 // pred_region
      %s196 = ssub.s32 %s11, 1
      %s197 = smul.u32 %s20, 2
      %s198 = sadd.s32 %s197, %s21
      %p199 = scmp.lt.s32.totalorder %s198, 3
      %s200 = scalar_select %p199, %s198, 3
      %s201 = smul.addr %s200, 54
      %s202 = smul.addr %s201, 4
      %s203 = scalar_lea.vmem %s0, %s202
      %p204 = pneg %p53
      %p205 = pneg %p50
      %p206 = pneg %p74
      %p207 = pneg %p71
      %p208 = pneg %p104
      %p209 = pneg %p101
      %s210 = smul.u32 %s20, 2
      %s211 = sadd.s32 %s210, %s21
      %s212 = smul.u32 32, %s211
      %p213 = scmp.lt.s32.totalorder %s212, 127
      %s214 = scalar_select %p213, %s212, 127
      %s215 = smul.addr %s214, 4
      %s216 = scalar_lea.vmem %s2, %s215
      %p217 = pneg %p130
      %p218 = pneg %p127
      %p219 = scmp.lt.s32.totalorder %s20, 1
      %s220 = scalar_select %p219, %s20, 1
      %s221 = smul.addr %s220, 8
      %s222 = scalar_lea.vmem %s3, %s221
      %p223 = pneg %p156
      %p224 = pneg %p153
      %p225 = scmp.lt.s32.totalorder %s20, 1
      %s226 = scalar_select %p225, %s20, 1
      %s227 = smul.addr %s226, 8
      %s228 = scalar_lea.vmem %s4, %s227
      %s229 = smul.u32 %s20, 2
      %s230 = sadd.s32 %s229, %s21
      %p231 = scmp.lt.s32.totalorder %s230, 3
      %s232 = scalar_select %p231, %s230, 3
      %s233 = smul.addr %s232, 54
      %s234 = smul.addr %s233, 4
      %s235 = scalar_lea.vmem %s0, %s234
      %s236 = smul.u32 %s20, 2
      %s237 = sadd.s32 %s236, %s21
      %s238 = smul.u32 %s20, 2
      %s239 = sadd.s32 %s238, %s21
      %s240 = smul.u32 32, %s239
      %p241 = scmp.lt.s32.totalorder %s240, 127
      %s242 = scalar_select %p241, %s240, 127
      %s243 = smul.addr %s242, 4
      %s244 = scalar_lea.vmem %s2, %s243
      %s245 = smul.u32 %s20, 2
      %s246 = sadd.s32 %s245, %s21
      %s247 = smul.u32 32, %s246
      %p248 = scmp.lt.s32.totalorder %s20, 1
      %s249 = scalar_select %p248, %s20, 1
      %s250 = smul.addr %s249, 8
      %s251 = scalar_lea.vmem %s3, %s250
      %p252 = scmp.lt.s32.totalorder %s20, 1
      %s253 = scalar_select %p252, %s20, 1
      %s254 = smul.addr %s253, 8
      %s255 = scalar_lea.vmem %s4, %s254
      %p257 = scmp.eq.s32.totalorder %s21, 0
      // Predicated region
      $region29: #{layer_forward.2} parent=27 // pred_check
        %p258 = pneg %p257
      $region30: #{layer_forward.2} parent=27 // pred_check_branch
        %260 = sbr.rel (%p258) target = $region32
      $region31: #{layer_forward.2} parent=27 // pred_region
        %261 = vst [vmem:[%s251] sm:$0xff] 0.0
        %262 = vst [vmem:[%s255] sm:$0xff] 0.0
      $region32: #{layer_forward.2} parent=27 // pred_fallthru
        _
      %v263 = vld [vmem:[%s235] sm:$0xf]
      %v264 = vld [vmem:[%s235 + $0x4] sm:$0xf]
      %v265 = vld [vmem:[%s235 + $0x8] sm:$0x1]
      %v266 = vld [vmem:[%s235 + $0xc] sm:$0xf]
      %v267 = vld [vmem:[%s235 + $0x10] sm:$0xf]
      %v268 = vld [vmem:[%s235 + $0x14] sm:$0x1]
      %v269 = vld [vmem:[%s235 + $0x18] sm:$0xf]
      %v270 = vld [vmem:[%s235 + $0x1c] sm:$0xf]
      %v271 = vld [vmem:[%s235 + $0x20] sm:$0x1]
      %v272 = vld [vmem:[%s235 + $0x24] sm:$0xf]
      %v273 = vld [vmem:[%s235 + $0x28] sm:$0xf]
      %v274 = vld [vmem:[%s235 + $0x2c] sm:$0x1]
      %v275 = vld [vmem:[%s235 + $0x30] sm:$0xf]
      %v276 = vld [vmem:[%s235 + $0x34] sm:$0xf]
      %v277 = vld [vmem:[%s235 + $0x38] sm:$0x1]
      %v278 = vld [vmem:[%s235 + $0x3c] sm:$0xf]
      %v279 = vld [vmem:[%s235 + $0x40] sm:$0xf]
      %v280 = vld [vmem:[%s235 + $0x44] sm:$0x1]
      %v281 = vld [vmem:[%s235 + $0x48] sm:$0xf]
      %v282 = vld [vmem:[%s235 + $0x4c] sm:$0xf]
      %v283 = vld [vmem:[%s235 + $0x50] sm:$0x1]
      %v284 = vld [vmem:[%s235 + $0x54] sm:$0xf]
      %v285 = vld [vmem:[%s235 + $0x58] sm:$0xf]
      %v286 = vld [vmem:[%s235 + $0x5c] sm:$0x1]
      %v287 = vld [vmem:[%s235 + $0x60] sm:$0xf]
      %v288 = vld [vmem:[%s235 + $0x64] sm:$0xf]
      %v289 = vld [vmem:[%s235 + $0x68] sm:$0x1]
      %v290 = vld [vmem:[%s235 + $0x6c] sm:$0xf]
      %v291 = vld [vmem:[%s235 + $0x70] sm:$0xf]
      %v292 = vld [vmem:[%s235 + $0x74] sm:$0x1]
      %v293 = vld [vmem:[%s235 + $0x78] sm:$0xf]
      %v294 = vld [vmem:[%s235 + $0x7c] sm:$0xf]
      %v295 = vld [vmem:[%s235 + $0x80] sm:$0x1]
      %v296 = vld [vmem:[%s235 + $0x84] sm:$0xf]
      %v297 = vld [vmem:[%s235 + $0x88] sm:$0xf]
      %v298 = vld [vmem:[%s235 + $0x8c] sm:$0x1]
      %v299 = vld [vmem:[%s235 + $0x90] sm:$0xf]
      %v300 = vld [vmem:[%s235 + $0x94] sm:$0xf]
      %v301 = vld [vmem:[%s235 + $0x98] sm:$0x1]
      %v302 = vld [vmem:[%s235 + $0x9c] sm:$0xf]
      %v303 = vld [vmem:[%s235 + $0xa0] sm:$0xf]
      %v304 = vld [vmem:[%s235 + $0xa4] sm:$0x1]
      %v305 = vld [vmem:[%s235 + $0xa8] sm:$0xf]
      %v306 = vld [vmem:[%s235 + $0xac] sm:$0xf]
      %v307 = vld [vmem:[%s235 + $0xb0] sm:$0x1]
      %v308 = vld [vmem:[%s235 + $0xb4] sm:$0xf]
      %v309 = vld [vmem:[%s235 + $0xb8] sm:$0xf]
      %v310 = vld [vmem:[%s235 + $0xbc] sm:$0x1]
      %v311 = vld [vmem:[%s235 + $0xc0] sm:$0xf]
      %v312 = vld [vmem:[%s235 + $0xc4] sm:$0xf]
      %v313 = vld [vmem:[%s235 + $0xc8] sm:$0x1]
      %v314 = vld [vmem:[%s235 + $0xcc] sm:$0xf]
      %v315 = vld [vmem:[%s235 + $0xd0] sm:$0xf]
      %v316 = vld [vmem:[%s235 + $0xd4] sm:$0x1]
      %v317 = vld [vmem:[%s1] sm:$0xf]
      %v318 = vld [vmem:[%s1 + $0x4] sm:$0xf]
      %v319 = vld [vmem:[%s1 + $0x8] sm:$0xf]
      %v320 = vld [vmem:[%s1 + $0xc] sm:$0xf]
      %v321 = vld [vmem:[%s1 + $0x10] sm:$0xf]
      %v322 = vld [vmem:[%s1 + $0x14] sm:$0xf]
      %v323 = vld [vmem:[%s1 + $0x18] sm:$0xf]
      %v324 = vld [vmem:[%s1 + $0x1c] sm:$0xf]
      %v325 = vld [vmem:[%s1 + $0x20] sm:$0xf]
      %v326 = vld [vmem:[%s1 + $0x24] sm:$0xf]
      %v327 = vld [vmem:[%s1 + $0x28] sm:$0xf]
      %v328 = vld [vmem:[%s1 + $0x2c] sm:$0xf]
      %v329 = vld [vmem:[%s1 + $0x30] sm:$0xf]
      %v330 = vld [vmem:[%s1 + $0x34] sm:$0xf]
      %v331 = vld [vmem:[%s1 + $0x38] sm:$0xf]
      %v332 = vld [vmem:[%s1 + $0x3c] sm:$0xf]
      %vm333 = vsmask.f32 3328
      %vm334 = vsmask.f32 7440
      %vm335 = vmor %vm333, %vm334
      %v337 = vshrl.u32 %v263, 16
      %v339 = vrot.slane %v337, 4
      %v340 = vshll.u32 %v263, 16
      %v342 = vrot.slane %v340, 5
      %v343 = vor.u32 %v339, %v342
      %v344 = vrot.slane %v343, 4
      %v346 = vshll.u32 %v264, 16
      %v348 = vrot.slane %v346, 5
      %v349 = vsel %vm335, %v344, %v348
      %v350 = vshrl.u32 %v264, 16
      %v352 = vrot.slane %v350, 4
      %v353 = vor.u32 %v352, %v348
      %v354 = vrot.slane %v353, 4
      %v356 = vshll.u32 %v265, 16
      %v358 = vrot.slane %v356, 5
      %v359 = vsel %vm335, %v354, %v358
      %v361 = vshrl.u32 %v266, 16
      %v363 = vrot.slane %v361, 4
      %v364 = vshll.u32 %v266, 16
      %v366 = vrot.slane %v364, 5
      %v367 = vor.u32 %v363, %v366
      %v368 = vrot.slane %v367, 4
      %v370 = vshll.u32 %v267, 16
      %v372 = vrot.slane %v370, 5
      %v373 = vsel %vm335, %v368, %v372
      %v374 = vshrl.u32 %v267, 16
      %v376 = vrot.slane %v374, 4
      %v377 = vor.u32 %v376, %v372
      %v378 = vrot.slane %v377, 4
      %v380 = vshll.u32 %v268, 16
      %v382 = vrot.slane %v380, 5
      %v383 = vsel %vm335, %v378, %v382
      %v385 = vshrl.u32 %v269, 16
      %v387 = vrot.slane %v385, 4
      %v388 = vshll.u32 %v269, 16
      %v390 = vrot.slane %v388, 5
      %v391 = vor.u32 %v387, %v390
      %v392 = vrot.slane %v391, 4
      %v394 = vshll.u32 %v270, 16
      %v396 = vrot.slane %v394, 5
      %v397 = vsel %vm335, %v392, %v396
      %v398 = vshrl.u32 %v270, 16
      %v400 = vrot.slane %v398, 4
      %v401 = vor.u32 %v400, %v396
      %v402 = vrot.slane %v401, 4
      %v404 = vshll.u32 %v271, 16
      %v406 = vrot.slane %v404, 5
      %v407 = vsel %vm335, %v402, %v406
      %v409 = vshrl.u32 %v272, 16
      %v411 = vrot.slane %v409, 4
      %v412 = vshll.u32 %v272, 16
      %v414 = vrot.slane %v412, 5
      %v415 = vor.u32 %v411, %v414
      %v416 = vrot.slane %v415, 4
      %v418 = vshll.u32 %v273, 16
      %v420 = vrot.slane %v418, 5
      %v421 = vsel %vm335, %v416, %v420
      %v422 = vshrl.u32 %v273, 16
      %v424 = vrot.slane %v422, 4
      %v425 = vor.u32 %v424, %v420
      %v426 = vrot.slane %v425, 4
      %v428 = vshll.u32 %v274, 16
      %v430 = vrot.slane %v428, 5
      %v431 = vsel %vm335, %v426, %v430
      %v433 = vshrl.u32 %v275, 16
      %v435 = vrot.slane %v433, 4
      %v436 = vshll.u32 %v275, 16
      %v438 = vrot.slane %v436, 5
      %v439 = vor.u32 %v435, %v438
      %v440 = vrot.slane %v439, 4
      %v442 = vshll.u32 %v276, 16
      %v444 = vrot.slane %v442, 5
      %v445 = vsel %vm335, %v440, %v444
      %v446 = vshrl.u32 %v276, 16
      %v448 = vrot.slane %v446, 4
      %v449 = vor.u32 %v448, %v444
      %v450 = vrot.slane %v449, 4
      %v452 = vshll.u32 %v277, 16
      %v454 = vrot.slane %v452, 5
      %v455 = vsel %vm335, %v450, %v454
      %v457 = vshrl.u32 %v278, 16
      %v459 = vrot.slane %v457, 4
      %v460 = vshll.u32 %v278, 16
      %v462 = vrot.slane %v460, 5
      %v463 = vor.u32 %v459, %v462
      %v464 = vrot.slane %v463, 4
      %v466 = vshll.u32 %v279, 16
      %v468 = vrot.slane %v466, 5
      %v469 = vsel %vm335, %v464, %v468
      %v470 = vshrl.u32 %v279, 16
      %v472 = vrot.slane %v470, 4
      %v473 = vor.u32 %v472, %v468
      %v474 = vrot.slane %v473, 4
      %v476 = vshll.u32 %v280, 16
      %v478 = vrot.slane %v476, 5
      %v479 = vsel %vm335, %v474, %v478
      %v481 = vshrl.u32 %v281, 16
      %v483 = vrot.slane %v481, 4
      %v484 = vshll.u32 %v281, 16
      %v486 = vrot.slane %v484, 5
      %v487 = vor.u32 %v483, %v486
      %v488 = vrot.slane %v487, 4
      %v490 = vshll.u32 %v282, 16
      %v492 = vrot.slane %v490, 5
      %v493 = vsel %vm335, %v488, %v492
      %v494 = vshrl.u32 %v282, 16
      %v496 = vrot.slane %v494, 4
      %v497 = vor.u32 %v496, %v492
      %v498 = vrot.slane %v497, 4
      %v500 = vshll.u32 %v283, 16
      %v502 = vrot.slane %v500, 5
      %v503 = vsel %vm335, %v498, %v502
      %v505 = vshrl.u32 %v284, 16
      %v507 = vrot.slane %v505, 4
      %v508 = vshll.u32 %v284, 16
      %v510 = vrot.slane %v508, 5
      %v511 = vor.u32 %v507, %v510
      %v512 = vrot.slane %v511, 4
      %v514 = vshll.u32 %v285, 16
      %v516 = vrot.slane %v514, 5
      %v517 = vsel %vm335, %v512, %v516
      %v518 = vshrl.u32 %v285, 16
      %v520 = vrot.slane %v518, 4
      %v521 = vor.u32 %v520, %v516
      %v522 = vrot.slane %v521, 4
      %v524 = vshll.u32 %v286, 16
      %v526 = vrot.slane %v524, 5
      %v527 = vsel %vm335, %v522, %v526
      %v529 = vshrl.u32 %v287, 16
      %v531 = vrot.slane %v529, 4
      %v532 = vshll.u32 %v287, 16
      %v534 = vrot.slane %v532, 5
      %v535 = vor.u32 %v531, %v534
      %v536 = vrot.slane %v535, 4
      %v538 = vshll.u32 %v288, 16
      %v540 = vrot.slane %v538, 5
      %v541 = vsel %vm335, %v536, %v540
      %v542 = vshrl.u32 %v288, 16
      %v544 = vrot.slane %v542, 4
      %v545 = vor.u32 %v544, %v540
      %v546 = vrot.slane %v545, 4
      %v548 = vshll.u32 %v289, 16
      %v550 = vrot.slane %v548, 5
      %v551 = vsel %vm335, %v546, %v550
      %v553 = vshrl.u32 %v290, 16
      %v555 = vrot.slane %v553, 4
      %v556 = vshll.u32 %v290, 16
      %v558 = vrot.slane %v556, 5
      %v559 = vor.u32 %v555, %v558
      %v560 = vrot.slane %v559, 4
      %v562 = vshll.u32 %v291, 16
      %v564 = vrot.slane %v562, 5
      %v565 = vsel %vm335, %v560, %v564
      %v566 = vshrl.u32 %v291, 16
      %v568 = vrot.slane %v566, 4
      %v569 = vor.u32 %v568, %v564
      %v570 = vrot.slane %v569, 4
      %v572 = vshll.u32 %v292, 16
      %v574 = vrot.slane %v572, 5
      %v575 = vsel %vm335, %v570, %v574
      %v577 = vshrl.u32 %v293, 16
      %v579 = vrot.slane %v577, 4
      %v580 = vshll.u32 %v293, 16
      %v582 = vrot.slane %v580, 5
      %v583 = vor.u32 %v579, %v582
      %v584 = vrot.slane %v583, 4
      %v586 = vshll.u32 %v294, 16
      %v588 = vrot.slane %v586, 5
      %v589 = vsel %vm335, %v584, %v588
      %v590 = vshrl.u32 %v294, 16
      %v592 = vrot.slane %v590, 4
      %v593 = vor.u32 %v592, %v588
      %v594 = vrot.slane %v593, 4
      %v596 = vshll.u32 %v295, 16
      %v598 = vrot.slane %v596, 5
      %v599 = vsel %vm335, %v594, %v598
      %v601 = vshrl.u32 %v296, 16
      %v603 = vrot.slane %v601, 4
      %v604 = vshll.u32 %v296, 16
      %v606 = vrot.slane %v604, 5
      %v607 = vor.u32 %v603, %v606
      %v608 = vrot.slane %v607, 4
      %v610 = vshll.u32 %v297, 16
      %v612 = vrot.slane %v610, 5
      %v613 = vsel %vm335, %v608, %v612
      %v614 = vshrl.u32 %v297, 16
      %v616 = vrot.slane %v614, 4
      %v617 = vor.u32 %v616, %v612
      %v618 = vrot.slane %v617, 4
      %v620 = vshll.u32 %v298, 16
      %v622 = vrot.slane %v620, 5
      %v623 = vsel %vm335, %v618, %v622
      %v625 = vshrl.u32 %v299, 16
      %v627 = vrot.slane %v625, 4
      %v628 = vshll.u32 %v299, 16
      %v630 = vrot.slane %v628, 5
      %v631 = vor.u32 %v627, %v630
      %v632 = vrot.slane %v631, 4
      %v634 = vshll.u32 %v300, 16
      %v636 = vrot.slane %v634, 5
      %v637 = vsel %vm335, %v632, %v636
      %v638 = vshrl.u32 %v300, 16
      %v640 = vrot.slane %v638, 4
      %v641 = vor.u32 %v640, %v636
      %v642 = vrot.slane %v641, 4
      %v644 = vshll.u32 %v301, 16
      %v646 = vrot.slane %v644, 5
      %v647 = vsel %vm335, %v642, %v646
      %v649 = vshrl.u32 %v302, 16
      %v651 = vrot.slane %v649, 4
      %v652 = vshll.u32 %v302, 16
      %v654 = vrot.slane %v652, 5
      %v655 = vor.u32 %v651, %v654
      %v656 = vrot.slane %v655, 4
      %v658 = vshll.u32 %v303, 16
      %v660 = vrot.slane %v658, 5
      %v661 = vsel %vm335, %v656, %v660
      %v662 = vshrl.u32 %v303, 16
      %v664 = vrot.slane %v662, 4
      %v665 = vor.u32 %v664, %v660
      %v666 = vrot.slane %v665, 4
      %v668 = vshll.u32 %v304, 16
      %v670 = vrot.slane %v668, 5
      %v671 = vsel %vm335, %v666, %v670
      %v673 = vshrl.u32 %v305, 16
      %v675 = vrot.slane %v673, 4
      %v676 = vshll.u32 %v305, 16
      %v678 = vrot.slane %v676, 5
      %v679 = vor.u32 %v675, %v678
      %v680 = vrot.slane %v679, 4
      %v682 = vshll.u32 %v306, 16
      %v684 = vrot.slane %v682, 5
      %v685 = vsel %vm335, %v680, %v684
      %v686 = vshrl.u32 %v306, 16
      %v688 = vrot.slane %v686, 4
      %v689 = vor.u32 %v688, %v684
      %v690 = vrot.slane %v689, 4
      %v692 = vshll.u32 %v307, 16
      %v694 = vrot.slane %v692, 5
      %v695 = vsel %vm335, %v690, %v694
      %v697 = vshrl.u32 %v308, 16
      %v699 = vrot.slane %v697, 4
      %v700 = vshll.u32 %v308, 16
      %v702 = vrot.slane %v700, 5
      %v703 = vor.u32 %v699, %v702
      %v704 = vrot.slane %v703, 4
      %v706 = vshll.u32 %v309, 16
      %v708 = vrot.slane %v706, 5
      %v709 = vsel %vm335, %v704, %v708
      %v710 = vshrl.u32 %v309, 16
      %v712 = vrot.slane %v710, 4
      %v713 = vor.u32 %v712, %v708
      %v714 = vrot.slane %v713, 4
      %v716 = vshll.u32 %v310, 16
      %v718 = vrot.slane %v716, 5
      %v719 = vsel %vm335, %v714, %v718
      %s720 = scalar_lea.vmem %s1, 64
      %v721 = vld [vmem:[%s720] sm:$0xf]
      %v722 = vld [vmem:[%s720 + $0x4] sm:$0xf]
      %v723 = vld [vmem:[%s720 + $0x8] sm:$0xf]
      %v724 = vld [vmem:[%s720 + $0xc] sm:$0xf]
      %v725 = vld [vmem:[%s720 + $0x10] sm:$0xf]
      %v726 = vld [vmem:[%s720 + $0x14] sm:$0xf]
      %v727 = vld [vmem:[%s720 + $0x18] sm:$0xf]
      %v728 = vld [vmem:[%s720 + $0x1c] sm:$0xf]
      %v729 = vld [vmem:[%s720 + $0x20] sm:$0xf]
      %v730 = vld [vmem:[%s720 + $0x24] sm:$0xf]
      %v731 = vld [vmem:[%s720 + $0x28] sm:$0xf]
      %v732 = vld [vmem:[%s720 + $0x2c] sm:$0xf]
      %v733 = vld [vmem:[%s720 + $0x30] sm:$0xf]
      %v734 = vld [vmem:[%s720 + $0x34] sm:$0xf]
      %v735 = vld [vmem:[%s720 + $0x38] sm:$0xf]
      %v736 = vld [vmem:[%s720 + $0x3c] sm:$0xf]
      %v737 = vunpack.c.l.b16 %v349
      %v738 = vunpack.c.l.b16 %v359
      %v739 = vunpack.c.l.b16 %v373
      %v740 = vunpack.c.l.b16 %v383
      %v741 = vunpack.c.l.b16 %v397
      %v742 = vunpack.c.l.b16 %v407
      %v743 = vunpack.c.l.b16 %v421
      %v744 = vunpack.c.l.b16 %v431
      %v745 = vunpack.c.l.b16 %v445
      %v746 = vunpack.c.l.b16 %v455
      %v747 = vunpack.c.l.b16 %v469
      %v748 = vunpack.c.l.b16 %v479
      %v749 = vunpack.c.l.b16 %v493
      %v750 = vunpack.c.l.b16 %v503
      %v751 = vunpack.c.l.b16 %v517
      %v752 = vunpack.c.l.b16 %v527
      %v753 = vunpack.c.l.b16 %v541
      %v754 = vunpack.c.l.b16 %v551
      %v755 = vunpack.c.l.b16 %v565
      %v756 = vunpack.c.l.b16 %v575
      %v757 = vunpack.c.l.b16 %v589
      %v758 = vunpack.c.l.b16 %v599
      %v759 = vunpack.c.l.b16 %v613
      %v760 = vunpack.c.l.b16 %v623
      %v761 = vunpack.c.l.b16 %v637
      %v762 = vunpack.c.l.b16 %v647
      %v763 = vunpack.c.l.b16 %v661
      %v764 = vunpack.c.l.b16 %v671
      %v765 = vunpack.c.l.b16 %v685
      %v766 = vunpack.c.l.b16 %v695
      %v767 = vunpack.c.l.b16 %v709
      %v768 = vunpack.c.l.b16 %v719
      %v769 = vpack.c.b16 %v738, %v737
      %v770 = vpack.c.b16 %v740, %v739
      %v771 = vpack.c.b16 %v742, %v741
      %v772 = vpack.c.b16 %v744, %v743
      %v773 = vpack.c.b16 %v746, %v745
      %v774 = vpack.c.b16 %v748, %v747
      %v775 = vpack.c.b16 %v750, %v749
      %v776 = vpack.c.b16 %v752, %v751
      %v777 = vpack.c.b16 %v754, %v753
      %v778 = vpack.c.b16 %v756, %v755
      %v779 = vpack.c.b16 %v758, %v757
      %v780 = vpack.c.b16 %v760, %v759
      %v781 = vpack.c.b16 %v762, %v761
      %v782 = vpack.c.b16 %v764, %v763
      %v783 = vpack.c.b16 %v766, %v765
      %v784 = vpack.c.b16 %v768, %v767
      %v817 = vunpack.c.l.b16 %v721
      %v818 = vunpack.c.l.b16 %v722
      %v819 = vunpack.c.l.b16 %v723
      %v820 = vunpack.c.l.b16 %v724
      %v821 = vunpack.c.l.b16 %v725
      %v822 = vunpack.c.l.b16 %v726
      %v823 = vunpack.c.l.b16 %v727
      %v824 = vunpack.c.l.b16 %v728
      %v825 = vunpack.c.l.b16 %v729
      %v826 = vunpack.c.l.b16 %v730
      %v827 = vunpack.c.l.b16 %v731
      %v828 = vunpack.c.l.b16 %v732
      %v829 = vunpack.c.l.b16 %v733
      %v830 = vunpack.c.l.b16 %v734
      %v831 = vunpack.c.l.b16 %v735
      %v832 = vunpack.c.l.b16 %v736
      %v833 = vpack.c.b16 %v818, %v817
      %v834 = vpack.c.b16 %v820, %v819
      %v835 = vpack.c.b16 %v822, %v821
      %v836 = vpack.c.b16 %v824, %v823
      %v837 = vpack.c.b16 %v826, %v825
      %v838 = vpack.c.b16 %v828, %v827
      %v839 = vpack.c.b16 %v830, %v829
      %v840 = vpack.c.b16 %v832, %v831
      %849 = vmatprep.subr.bf16.mxu0 0
      %850 = vmatpush1.bf16.msra.mxu0 %v833
      %851 = vmatprep.subr.bf16.mxu0 0
      %852 = vmatpush1.bf16.msra.mxu0 %v834
      %853 = vmatprep.subr.bf16.mxu0 0
      %854 = vmatpush1.bf16.msra.mxu0 %v835
      %855 = vmatprep.subr.bf16.mxu0 0
      %856 = vmatpush1.bf16.msra.mxu0 %v836
      %857 = vmatprep.subr.bf16.mxu0 0
      %858 = vmatpush1.bf16.msra.mxu0 %v837
      %859 = vmatprep.subr.bf16.mxu0 0
      %860 = vmatpush1.bf16.msra.mxu0 %v838
      %861 = vmatprep.subr.bf16.mxu0 0
      %862 = vmatpush1.bf16.msra.mxu0 %v839
      %863 = vmatprep.subr.bf16.mxu0 0
      %864 = vmatpush1.bf16.msra.mxu0 %v840
      %865 = vmatprep.subr.bf16.mxu0 0
      %866 = vmatpush1.bf16.msra.mxu0 0
      %867 = vmatprep.subr.bf16.mxu0 0
      %868 = vmatpush1.bf16.msra.mxu0 0
      %869 = vmatprep.subr.bf16.mxu0 0
      %870 = vmatpush1.bf16.msra.mxu0 0
      %871 = vmatprep.subr.bf16.mxu0 0
      %872 = vmatpush1.bf16.msra.mxu0 0
      %873 = vmatprep.subr.bf16.mxu0 0
      %874 = vmatpush1.bf16.msra.mxu0 0
      %875 = vmatprep.subr.bf16.mxu0 0
      %876 = vmatpush1.bf16.msra.mxu0 0
      %877 = vmatprep.subr.bf16.mxu0 0
      %878 = vmatpush1.bf16.msra.mxu0 0
      %879 = vmatprep.subr.bf16.mxu0 0
      %880 = vmatpush1.bf16.msra.mxu0 0
      %881 = vmatprep.mubr.bf16.mxu0 0
      %882 = vmatmul.mubr.bf16.gmra.mrb[0].mxu0 %v769
      %v883 = vpop.f32.mrb[0].mxu0
      %v884 = vadd.f32 0.0, %v883
      %v885 = vpop.f32.mrb[0].mxu0
      %v886 = vpop.f32.mrb[0].mxu0
      %v887 = vadd.f32 0.0, %v886
      %v888 = vpop.f32.mrb[0].mxu0
      %889 = vmatprep.mubr.bf16.mxu0 0
      %890 = vmatmul.mubr.bf16.gmra.mrb[0].mxu0 %v770
      %v891 = vpop.f32.mrb[0].mxu0
      %v892 = vadd.f32 0.0, %v891
      %v893 = vpop.f32.mrb[0].mxu0
      %v894 = vpop.f32.mrb[0].mxu0
      %v895 = vadd.f32 0.0, %v894
      %v896 = vpop.f32.mrb[0].mxu0
      %897 = vmatprep.mubr.bf16.mxu0 0
      %898 = vmatmul.mubr.bf16.gmra.mrb[0].mxu0 %v771
      %v899 = vpop.f32.mrb[0].mxu0
      %v900 = vadd.f32 0.0, %v899
      %v901 = vpop.f32.mrb[0].mxu0
      %v902 = vpop.f32.mrb[0].mxu0
      %v903 = vadd.f32 0.0, %v902
      %v904 = vpop.f32.mrb[0].mxu0
      %905 = vmatprep.mubr.bf16.mxu0 0
      %906 = vmatmul.mubr.bf16.gmra.mrb[0].mxu0 %v772
      %v907 = vpop.f32.mrb[0].mxu0
      %v908 = vadd.f32 0.0, %v907
      %v909 = vpop.f32.mrb[0].mxu0
      %v910 = vpop.f32.mrb[0].mxu0
      %v911 = vadd.f32 0.0, %v910
      %v912 = vpop.f32.mrb[0].mxu0
      %913 = vmatprep.mubr.bf16.mxu0 0
      %914 = vmatmul.mubr.bf16.gmra.mrb[0].mxu0 %v773
      %v915 = vpop.f32.mrb[0].mxu0
      %v916 = vadd.f32 0.0, %v915
      %v917 = vpop.f32.mrb[0].mxu0
      %v918 = vpop.f32.mrb[0].mxu0
      %v919 = vadd.f32 0.0, %v918
      %v920 = vpop.f32.mrb[0].mxu0
      %921 = vmatprep.mubr.bf16.mxu0 0
      %922 = vmatmul.mubr.bf16.gmra.mrb[0].mxu0 %v774
      %v923 = vpop.f32.mrb[0].mxu0
      %v924 = vadd.f32 0.0, %v923
      %v925 = vpop.f32.mrb[0].mxu0
      %v926 = vpop.f32.mrb[0].mxu0
      %v927 = vadd.f32 0.0, %v926
      %v928 = vpop.f32.mrb[0].mxu0
      %929 = vmatprep.mubr.bf16.mxu0 0
      %930 = vmatmul.mubr.bf16.gmra.mrb[0].mxu0 %v775
      %v931 = vpop.f32.mrb[0].mxu0
      %v932 = vadd.f32 0.0, %v931
      %v933 = vpop.f32.mrb[0].mxu0
      %v934 = vpop.f32.mrb[0].mxu0
      %v935 = vadd.f32 0.0, %v934
      %v936 = vpop.f32.mrb[0].mxu0
      %937 = vmatprep.mubr.bf16.mxu0 0
      %938 = vmatmul.mubr.bf16.gmra.mrb[0].mxu0 %v776
      %v939 = vpop.f32.mrb[0].mxu0
      %v940 = vadd.f32 0.0, %v939
      %v941 = vpop.f32.mrb[0].mxu0
      %v942 = vpop.f32.mrb[0].mxu0
      %v943 = vadd.f32 0.0, %v942
      %v944 = vpop.f32.mrb[0].mxu0
      %945 = vmatprep.mubr.bf16.mxu0 0
      %946 = vmatmul.mubr.bf16.gmra.mrb[0].mxu0 %v777
      %v947 = vpop.f32.mrb[0].mxu0
      %v948 = vadd.f32 0.0, %v947
      %v949 = vpop.f32.mrb[0].mxu0
      %v950 = vpop.f32.mrb[0].mxu0
      %v951 = vadd.f32 0.0, %v950
      %v952 = vpop.f32.mrb[0].mxu0
      %953 = vmatprep.mubr.bf16.mxu0 0
      %954 = vmatmul.mubr.bf16.gmra.mrb[0].mxu0 %v778
      %v955 = vpop.f32.mrb[0].mxu0
      %v956 = vadd.f32 0.0, %v955
      %v957 = vpop.f32.mrb[0].mxu0
      %v958 = vpop.f32.mrb[0].mxu0
      %v959 = vadd.f32 0.0, %v958
      %v960 = vpop.f32.mrb[0].mxu0
      %961 = vmatprep.mubr.bf16.mxu0 0
      %962 = vmatmul.mubr.bf16.gmra.mrb[0].mxu0 %v779
      %v963 = vpop.f32.mrb[0].mxu0
      %v964 = vadd.f32 0.0, %v963
      %v965 = vpop.f32.mrb[0].mxu0
      %v966 = vpop.f32.mrb[0].mxu0
      %v967 = vadd.f32 0.0, %v966
      %v968 = vpop.f32.mrb[0].mxu0
      %969 = vmatprep.mubr.bf16.mxu0 0
      %970 = vmatmul.mubr.bf16.gmra.mrb[0].mxu0 %v780
      %v971 = vpop.f32.mrb[0].mxu0
      %v972 = vadd.f32 0.0, %v971
      %v973 = vpop.f32.mrb[0].mxu0
      %v974 = vpop.f32.mrb[0].mxu0
      %v975 = vadd.f32 0.0, %v974
      %v976 = vpop.f32.mrb[0].mxu0
      %977 = vmatprep.mubr.bf16.mxu0 0
      %978 = vmatmul.mubr.bf16.gmra.mrb[0].mxu0 %v781
      %v979 = vpop.f32.mrb[0].mxu0
      %v980 = vadd.f32 0.0, %v979
      %v981 = vpop.f32.mrb[0].mxu0
      %v982 = vpop.f32.mrb[0].mxu0
      %v983 = vadd.f32 0.0, %v982
      %v984 = vpop.f32.mrb[0].mxu0
      %985 = vmatprep.mubr.bf16.mxu0 0
      %986 = vmatmul.mubr.bf16.gmra.mrb[0].mxu0 %v782
      %v987 = vpop.f32.mrb[0].mxu0
      %v988 = vadd.f32 0.0, %v987
      %v989 = vpop.f32.mrb[0].mxu0
      %v990 = vpop.f32.mrb[0].mxu0
      %v991 = vadd.f32 0.0, %v990
      %v992 = vpop.f32.mrb[0].mxu0
      %993 = vmatprep.mubr.bf16.mxu0 0
      %994 = vmatmul.mubr.bf16.gmra.mrb[0].mxu0 %v783
      %v995 = vpop.f32.mrb[0].mxu0
      %v996 = vadd.f32 0.0, %v995
      %v997 = vpop.f32.mrb[0].mxu0
      %v998 = vpop.f32.mrb[0].mxu0
      %v999 = vadd.f32 0.0, %v998
      %v1000 = vpop.f32.mrb[0].mxu0
      %1001 = vmatprep.mubr.bf16.mxu0 0
      %1002 = vmatmul.mubr.bf16.gmra.mrb[0].mxu0 %v784
      %v1003 = vpop.f32.mrb[0].mxu0
      %v1004 = vadd.f32 0.0, %v1003
      %v1005 = vpop.f32.mrb[0].mxu0
      %v1006 = vpop.f32.mrb[0].mxu0
      %v1007 = vadd.f32 0.0, %v1006
      %v1008 = vpop.f32.mrb[0].mxu0
      %1009 = vdwg.mxu0
      %v1042 = vunpack.c.l.b16 %v263
      %v1043 = vunpack.c.l.b16 %v264
      %v1044 = vunpack.c.l.b16 %v266
      %v1045 = vunpack.c.l.b16 %v267
      %v1046 = vunpack.c.l.b16 %v269
      %v1047 = vunpack.c.l.b16 %v270
      %v1048 = vunpack.c.l.b16 %v272
      %v1049 = vunpack.c.l.b16 %v273
      %v1050 = vunpack.c.l.b16 %v275
      %v1051 = vunpack.c.l.b16 %v276
      %v1052 = vunpack.c.l.b16 %v278
      %v1053 = vunpack.c.l.b16 %v279
      %v1054 = vunpack.c.l.b16 %v281
      %v1055 = vunpack.c.l.b16 %v282
      %v1056 = vunpack.c.l.b16 %v284
      %v1057 = vunpack.c.l.b16 %v285
      %v1058 = vunpack.c.l.b16 %v287
      %v1059 = vunpack.c.l.b16 %v288
      %v1060 = vunpack.c.l.b16 %v290
      %v1061 = vunpack.c.l.b16 %v291
      %v1062 = vunpack.c.l.b16 %v293
      %v1063 = vunpack.c.l.b16 %v294
      %v1064 = vunpack.c.l.b16 %v296
      %v1065 = vunpack.c.l.b16 %v297
      %v1066 = vunpack.c.l.b16 %v299
      %v1067 = vunpack.c.l.b16 %v300
      %v1068 = vunpack.c.l.b16 %v302
      %v1069 = vunpack.c.l.b16 %v303
      %v1070 = vunpack.c.l.b16 %v305
      %v1071 = vunpack.c.l.b16 %v306
      %v1072 = vunpack.c.l.b16 %v308
      %v1073 = vunpack.c.l.b16 %v309
      %v1074 = vpack.c.b16 %v1043, %v1042
      %v1075 = vpack.c.b16 %v1045, %v1044
      %v1076 = vpack.c.b16 %v1047, %v1046
      %v1077 = vpack.c.b16 %v1049, %v1048
      %v1078 = vpack.c.b16 %v1051, %v1050
      %v1079 = vpack.c.b16 %v1053, %v1052
      %v1080 = vpack.c.b16 %v1055, %v1054
      %v1081 = vpack.c.b16 %v1057, %v1056
      %v1082 = vpack.c.b16 %v1059, %v1058
      %v1083 = vpack.c.b16 %v1061, %v1060
      %v1084 = vpack.c.b16 %v1063, %v1062
      %v1085 = vpack.c.b16 %v1065, %v1064
      %v1086 = vpack.c.b16 %v1067, %v1066
      %v1087 = vpack.c.b16 %v1069, %v1068
      %v1088 = vpack.c.b16 %v1071, %v1070
      %v1089 = vpack.c.b16 %v1073, %v1072
      %v1122 = vunpack.c.l.b16 %v317
      %v1123 = vunpack.c.l.b16 %v318
      %v1124 = vunpack.c.l.b16 %v319
      %v1125 = vunpack.c.l.b16 %v320
      %v1126 = vunpack.c.l.b16 %v321
      %v1127 = vunpack.c.l.b16 %v322
      %v1128 = vunpack.c.l.b16 %v323
      %v1129 = vunpack.c.l.b16 %v324
      %v1130 = vunpack.c.l.b16 %v325
      %v1131 = vunpack.c.l.b16 %v326
      %v1132 = vunpack.c.l.b16 %v327
      %v1133 = vunpack.c.l.b16 %v328
      %v1134 = vunpack.c.l.b16 %v329
      %v1135 = vunpack.c.l.b16 %v330
      %v1136 = vunpack.c.l.b16 %v331
      %v1137 = vunpack.c.l.b16 %v332
      %v1138 = vpack.c.b16 %v1123, %v1122
      %v1139 = vpack.c.b16 %v1125, %v1124
      %v1140 = vpack.c.b16 %v1127, %v1126
      %v1141 = vpack.c.b16 %v1129, %v1128
      %v1142 = vpack.c.b16 %v1131, %v1130
      %v1143 = vpack.c.b16 %v1133, %v1132
      %v1144 = vpack.c.b16 %v1135, %v1134
      %v1145 = vpack.c.b16 %v1137, %v1136
      %1154 = vmatprep.subr.bf16.mxu0 0
      %1155 = vmatpush1.bf16.msra.mxu0 %v1138
      %1156 = vmatprep.subr.bf16.mxu0 0
      %1157 = vmatpush1.bf16.msra.mxu0 %v1139
      %1158 = vmatprep.subr.bf16.mxu0 0
      %1159 = vmatpush1.bf16.msra.mxu0 %v1140
      %1160 = vmatprep.subr.bf16.mxu0 0
      %1161 = vmatpush1.bf16.msra.mxu0 %v1141
      %1162 = vmatprep.subr.bf16.mxu0 0
      %1163 = vmatpush1.bf16.msra.mxu0 %v1142
      %1164 = vmatprep.subr.bf16.mxu0 0
      %1165 = vmatpush1.bf16.msra.mxu0 %v1143
      %1166 = vmatprep.subr.bf16.mxu0 0
      %1167 = vmatpush1.bf16.msra.mxu0 %v1144
      %1168 = vmatprep.subr.bf16.mxu0 0
      %1169 = vmatpush1.bf16.msra.mxu0 %v1145
      %1170 = vmatprep.subr.bf16.mxu0 0
      %1171 = vmatpush1.bf16.msra.mxu0 0
      %1172 = vmatprep.subr.bf16.mxu0 0
      %1173 = vmatpush1.bf16.msra.mxu0 0
      %1174 = vmatprep.subr.bf16.mxu0 0
      %1175 = vmatpush1.bf16.msra.mxu0 0
      %1176 = vmatprep.subr.bf16.mxu0 0
      %1177 = vmatpush1.bf16.msra.mxu0 0
      %1178 = vmatprep.subr.bf16.mxu0 0
      %1179 = vmatpush1.bf16.msra.mxu0 0
      %1180 = vmatprep.subr.bf16.mxu0 0
      %1181 = vmatpush1.bf16.msra.mxu0 0
      %1182 = vmatprep.subr.bf16.mxu0 0
      %1183 = vmatpush1.bf16.msra.mxu0 0
      %1184 = vmatprep.subr.bf16.mxu0 0
      %1185 = vmatpush1.bf16.msra.mxu0 0
      %1186 = vmatprep.mubr.bf16.mxu0 0
      %1187 = vmatmul.mubr.bf16.gmra.mrb[0].mxu0 %v1074
      %v1188 = vpop.f32.mrb[0].mxu0
      %v1189 = vadd.f32 %v884, %v1188
      %v1190 = vpop.f32.mrb[0].mxu0
      %v1191 = vpop.f32.mrb[0].mxu0
      %v1192 = vadd.f32 %v887, %v1191
      %v1193 = vpop.f32.mrb[0].mxu0
      %1194 = vmatprep.mubr.bf16.mxu0 0
      %1195 = vmatmul.mubr.bf16.gmra.mrb[0].mxu0 %v1075
      %v1196 = vpop.f32.mrb[0].mxu0
      %v1197 = vadd.f32 %v892, %v1196
      %v1198 = vpop.f32.mrb[0].mxu0
      %v1199 = vpop.f32.mrb[0].mxu0
      %v1200 = vadd.f32 %v895, %v1199
      %v1201 = vpop.f32.mrb[0].mxu0
      %1202 = vmatprep.mubr.bf16.mxu0 0
      %1203 = vmatmul.mubr.bf16.gmra.mrb[0].mxu0 %v1076
      %v1204 = vpop.f32.mrb[0].mxu0
      %v1205 = vadd.f32 %v900, %v1204
      %v1206 = vpop.f32.mrb[0].mxu0
      %v1207 = vpop.f32.mrb[0].mxu0
      %v1208 = vadd.f32 %v903, %v1207
      %v1209 = vpop.f32.mrb[0].mxu0
      %1210 = vmatprep.mubr.bf16.mxu0 0
      %1211 = vmatmul.mubr.bf16.gmra.mrb[0].mxu0 %v1077
      %v1212 = vpop.f32.mrb[0].mxu0
      %v1213 = vadd.f32 %v908, %v1212
      %v1214 = vpop.f32.mrb[0].mxu0
      %v1215 = vpop.f32.mrb[0].mxu0
      %v1216 = vadd.f32 %v911, %v1215
      %v1217 = vpop.f32.mrb[0].mxu0
      %1218 = vmatprep.mubr.bf16.mxu0 0
      %1219 = vmatmul.mubr.bf16.gmra.mrb[0].mxu0 %v1078
      %v1220 = vpop.f32.mrb[0].mxu0
      %v1221 = vadd.f32 %v916, %v1220
      %v1222 = vpop.f32.mrb[0].mxu0
      %v1223 = vpop.f32.mrb[0].mxu0
      %v1224 = vadd.f32 %v919, %v1223
      %v1225 = vpop.f32.mrb[0].mxu0
      %1226 = vmatprep.mubr.bf16.mxu0 0
      %1227 = vmatmul.mubr.bf16.gmra.mrb[0].mxu0 %v1079
      %v1228 = vpop.f32.mrb[0].mxu0
      %v1229 = vadd.f32 %v924, %v1228
      %v1230 = vpop.f32.mrb[0].mxu0
      %v1231 = vpop.f32.mrb[0].mxu0
      %v1232 = vadd.f32 %v927, %v1231
      %v1233 = vpop.f32.mrb[0].mxu0
      %1234 = vmatprep.mubr.bf16.mxu0 0
      %1235 = vmatmul.mubr.bf16.gmra.mrb[0].mxu0 %v1080
      %v1236 = vpop.f32.mrb[0].mxu0
      %v1237 = vadd.f32 %v932, %v1236
      %v1238 = vpop.f32.mrb[0].mxu0
      %v1239 = vpop.f32.mrb[0].mxu0
      %v1240 = vadd.f32 %v935, %v1239
      %v1241 = vpop.f32.mrb[0].mxu0
      %1242 = vmatprep.mubr.bf16.mxu0 0
      %1243 = vmatmul.mubr.bf16.gmra.mrb[0].mxu0 %v1081
      %v1244 = vpop.f32.mrb[0].mxu0
      %v1245 = vadd.f32 %v940, %v1244
      %v1246 = vpop.f32.mrb[0].mxu0
      %v1247 = vpop.f32.mrb[0].mxu0
      %v1248 = vadd.f32 %v943, %v1247
      %v1249 = vpop.f32.mrb[0].mxu0
      %1250 = vmatprep.mubr.bf16.mxu0 0
      %1251 = vmatmul.mubr.bf16.gmra.mrb[0].mxu0 %v1082
      %v1252 = vpop.f32.mrb[0].mxu0
      %v1253 = vadd.f32 %v948, %v1252
      %v1254 = vpop.f32.mrb[0].mxu0
      %v1255 = vpop.f32.mrb[0].mxu0
      %v1256 = vadd.f32 %v951, %v1255
      %v1257 = vpop.f32.mrb[0].mxu0
      %1258 = vmatprep.mubr.bf16.mxu0 0
      %1259 = vmatmul.mubr.bf16.gmra.mrb[0].mxu0 %v1083
      %v1260 = vpop.f32.mrb[0].mxu0
      %v1261 = vadd.f32 %v956, %v1260
      %v1262 = vpop.f32.mrb[0].mxu0
      %v1263 = vpop.f32.mrb[0].mxu0
      %v1264 = vadd.f32 %v959, %v1263
      %v1265 = vpop.f32.mrb[0].mxu0
      %1266 = vmatprep.mubr.bf16.mxu0 0
      %1267 = vmatmul.mubr.bf16.gmra.mrb[0].mxu0 %v1084
      %v1268 = vpop.f32.mrb[0].mxu0
      %v1269 = vadd.f32 %v964, %v1268
      %v1270 = vpop.f32.mrb[0].mxu0
      %v1271 = vpop.f32.mrb[0].mxu0
      %v1272 = vadd.f32 %v967, %v1271
      %v1273 = vpop.f32.mrb[0].mxu0
      %1274 = vmatprep.mubr.bf16.mxu0 0
      %1275 = vmatmul.mubr.bf16.gmra.mrb[0].mxu0 %v1085
      %v1276 = vpop.f32.mrb[0].mxu0
      %v1277 = vadd.f32 %v972, %v1276
      %v1278 = vpop.f32.mrb[0].mxu0
      %v1279 = vpop.f32.mrb[0].mxu0
      %v1280 = vadd.f32 %v975, %v1279
      %v1281 = vpop.f32.mrb[0].mxu0
      %1282 = vmatprep.mubr.bf16.mxu0 0
      %1283 = vmatmul.mubr.bf16.gmra.mrb[0].mxu0 %v1086
      %v1284 = vpop.f32.mrb[0].mxu0
      %v1285 = vadd.f32 %v980, %v1284
      %v1286 = vpop.f32.mrb[0].mxu0
      %v1287 = vpop.f32.mrb[0].mxu0
      %v1288 = vadd.f32 %v983, %v1287
      %v1289 = vpop.f32.mrb[0].mxu0
      %1290 = vmatprep.mubr.bf16.mxu0 0
      %1291 = vmatmul.mubr.bf16.gmra.mrb[0].mxu0 %v1087
      %v1292 = vpop.f32.mrb[0].mxu0
      %v1293 = vadd.f32 %v988, %v1292
      %v1294 = vpop.f32.mrb[0].mxu0
      %v1295 = vpop.f32.mrb[0].mxu0
      %v1296 = vadd.f32 %v991, %v1295
      %v1297 = vpop.f32.mrb[0].mxu0
      %1298 = vmatprep.mubr.bf16.mxu0 0
      %1299 = vmatmul.mubr.bf16.gmra.mrb[0].mxu0 %v1088
      %v1300 = vpop.f32.mrb[0].mxu0
      %v1301 = vadd.f32 %v996, %v1300
      %v1302 = vpop.f32.mrb[0].mxu0
      %v1303 = vpop.f32.mrb[0].mxu0
      %v1304 = vadd.f32 %v999, %v1303
      %v1305 = vpop.f32.mrb[0].mxu0
      %1306 = vmatprep.mubr.bf16.mxu0 0
      %1307 = vmatmul.mubr.bf16.gmra.mrb[0].mxu0 %v1089
      %v1308 = vpop.f32.mrb[0].mxu0
      %v1309 = vadd.f32 %v1004, %v1308
      %v1310 = vpop.f32.mrb[0].mxu0
      %v1311 = vpop.f32.mrb[0].mxu0
      %v1312 = vadd.f32 %v1007, %v1311
      %v1313 = vpop.f32.mrb[0].mxu0
      %1314 = vdwg.mxu0
      %vm1331 = vcmask 1042432
      %vm1332 = vcmask 1046532
      %vm1333 = vmor %vm1331, %vm1332
      %v1334 = vrot.slane %v263, 5
      %v1335 = vrot.slane %v1334, 4
      %v1336 = vrot.slane %v264, 5
      %v1337 = vsel %vm1333, %v1335, %v1336
      %v1338 = vrot.slane %v1336, 4
      %v1339 = vrot.slane %v265, 5
      %v1340 = vsel %vm1333, %v1338, %v1339
      %v1341 = vrot.slane %v266, 5
      %v1342 = vrot.slane %v1341, 4
      %v1343 = vrot.slane %v267, 5
      %v1344 = vsel %vm1333, %v1342, %v1343
      %v1345 = vrot.slane %v1343, 4
      %v1346 = vrot.slane %v268, 5
      %v1347 = vsel %vm1333, %v1345, %v1346
      %v1348 = vrot.slane %v269, 5
      %v1349 = vrot.slane %v1348, 4
      %v1350 = vrot.slane %v270, 5
      %v1351 = vsel %vm1333, %v1349, %v1350
      %v1352 = vrot.slane %v1350, 4
      %v1353 = vrot.slane %v271, 5
      %v1354 = vsel %vm1333, %v1352, %v1353
      %v1355 = vrot.slane %v272, 5
      %v1356 = vrot.slane %v1355, 4
      %v1357 = vrot.slane %v273, 5
      %v1358 = vsel %vm1333, %v1356, %v1357
      %v1359 = vrot.slane %v1357, 4
      %v1360 = vrot.slane %v274, 5
      %v1361 = vsel %vm1333, %v1359, %v1360
      %v1362 = vrot.slane %v275, 5
      %v1363 = vrot.slane %v1362, 4
      %v1364 = vrot.slane %v276, 5
      %v1365 = vsel %vm1333, %v1363, %v1364
      %v1366 = vrot.slane %v1364, 4
      %v1367 = vrot.slane %v277, 5
      %v1368 = vsel %vm1333, %v1366, %v1367
      %v1369 = vrot.slane %v278, 5
      %v1370 = vrot.slane %v1369, 4
      %v1371 = vrot.slane %v279, 5
      %v1372 = vsel %vm1333, %v1370, %v1371
      %v1373 = vrot.slane %v1371, 4
      %v1374 = vrot.slane %v280, 5
      %v1375 = vsel %vm1333, %v1373, %v1374
      %v1376 = vrot.slane %v281, 5
      %v1377 = vrot.slane %v1376, 4
      %v1378 = vrot.slane %v282, 5
      %v1379 = vsel %vm1333, %v1377, %v1378
      %v1380 = vrot.slane %v1378, 4
      %v1381 = vrot.slane %v283, 5
      %v1382 = vsel %vm1333, %v1380, %v1381
      %v1383 = vrot.slane %v284, 5
      %v1384 = vrot.slane %v1383, 4
      %v1385 = vrot.slane %v285, 5
      %v1386 = vsel %vm1333, %v1384, %v1385
      %v1387 = vrot.slane %v1385, 4
      %v1388 = vrot.slane %v286, 5
      %v1389 = vsel %vm1333, %v1387, %v1388
      %v1390 = vrot.slane %v287, 5
      %v1391 = vrot.slane %v1390, 4
      %v1392 = vrot.slane %v288, 5
      %v1393 = vsel %vm1333, %v1391, %v1392
      %v1394 = vrot.slane %v1392, 4
      %v1395 = vrot.slane %v289, 5
      %v1396 = vsel %vm1333, %v1394, %v1395
      %v1397 = vrot.slane %v290, 5
      %v1398 = vrot.slane %v1397, 4
      %v1399 = vrot.slane %v291, 5
      %v1400 = vsel %vm1333, %v1398, %v1399
      %v1401 = vrot.slane %v1399, 4
      %v1402 = vrot.slane %v292, 5
      %v1403 = vsel %vm1333, %v1401, %v1402
      %v1404 = vrot.slane %v293, 5
      %v1405 = vrot.slane %v1404, 4
      %v1406 = vrot.slane %v294, 5
      %v1407 = vsel %vm1333, %v1405, %v1406
      %v1408 = vrot.slane %v1406, 4
      %v1409 = vrot.slane %v295, 5
      %v1410 = vsel %vm1333, %v1408, %v1409
      %v1411 = vrot.slane %v296, 5
      %v1412 = vrot.slane %v1411, 4
      %v1413 = vrot.slane %v297, 5
      %v1414 = vsel %vm1333, %v1412, %v1413
      %v1415 = vrot.slane %v1413, 4
      %v1416 = vrot.slane %v298, 5
      %v1417 = vsel %vm1333, %v1415, %v1416
      %v1418 = vrot.slane %v299, 5
      %v1419 = vrot.slane %v1418, 4
      %v1420 = vrot.slane %v300, 5
      %v1421 = vsel %vm1333, %v1419, %v1420
      %v1422 = vrot.slane %v1420, 4
      %v1423 = vrot.slane %v301, 5
      %v1424 = vsel %vm1333, %v1422, %v1423
      %v1425 = vrot.slane %v302, 5
      %v1426 = vrot.slane %v1425, 4
      %v1427 = vrot.slane %v303, 5
      %v1428 = vsel %vm1333, %v1426, %v1427
      %v1429 = vrot.slane %v1427, 4
      %v1430 = vrot.slane %v304, 5
      %v1431 = vsel %vm1333, %v1429, %v1430
      %v1432 = vrot.slane %v305, 5
      %v1433 = vrot.slane %v1432, 4
      %v1434 = vrot.slane %v306, 5
      %v1435 = vsel %vm1333, %v1433, %v1434
      %v1436 = vrot.slane %v1434, 4
      %v1437 = vrot.slane %v307, 5
      %v1438 = vsel %vm1333, %v1436, %v1437
      %v1439 = vrot.slane %v308, 5
      %v1440 = vrot.slane %v1439, 4
      %v1441 = vrot.slane %v309, 5
      %v1442 = vsel %vm1333, %v1440, %v1441
      %v1443 = vrot.slane %v1441, 4
      %v1444 = vrot.slane %v310, 5
      %v1445 = vsel %vm1333, %v1443, %v1444
      %s1446 = scalar_lea.vmem %s1, 128
      %v1447 = vld [vmem:[%s1446] sm:$0xf]
      %v1448 = vld [vmem:[%s1446 + $0x4] sm:$0xf]
      %v1449 = vld [vmem:[%s1446 + $0x8] sm:$0xf]
      %v1450 = vld [vmem:[%s1446 + $0xc] sm:$0xf]
      %v1451 = vld [vmem:[%s1446 + $0x10] sm:$0xf]
      %v1452 = vld [vmem:[%s1446 + $0x14] sm:$0xf]
      %v1453 = vld [vmem:[%s1446 + $0x18] sm:$0xf]
      %v1454 = vld [vmem:[%s1446 + $0x1c] sm:$0xf]
      %v1455 = vld [vmem:[%s1446 + $0x20] sm:$0xf]
      %v1456 = vld [vmem:[%s1446 + $0x24] sm:$0xf]
      %v1457 = vld [vmem:[%s1446 + $0x28] sm:$0xf]
      %v1458 = vld [vmem:[%s1446 + $0x2c] sm:$0xf]
      %v1459 = vld [vmem:[%s1446 + $0x30] sm:$0xf]
      %v1460 = vld [vmem:[%s1446 + $0x34] sm:$0xf]
      %v1461 = vld [vmem:[%s1446 + $0x38] sm:$0xf]
      %v1462 = vld [vmem:[%s1446 + $0x3c] sm:$0xf]
      %v1463 = vunpack.c.l.b16 %v1337
      %v1464 = vunpack.c.l.b16 %v1340
      %v1465 = vunpack.c.l.b16 %v1344
      %v1466 = vunpack.c.l.b16 %v1347
      %v1467 = vunpack.c.l.b16 %v1351
      %v1468 = vunpack.c.l.b16 %v1354
      %v1469 = vunpack.c.l.b16 %v1358
      %v1470 = vunpack.c.l.b16 %v1361
      %v1471 = vunpack.c.l.b16 %v1365
      %v1472 = vunpack.c.l.b16 %v1368
      %v1473 = vunpack.c.l.b16 %v1372
      %v1474 = vunpack.c.l.b16 %v1375
      %v1475 = vunpack.c.l.b16 %v1379
      %v1476 = vunpack.c.l.b16 %v1382
      %v1477 = vunpack.c.l.b16 %v1386
      %v1478 = vunpack.c.l.b16 %v1389
      %v1479 = vunpack.c.l.b16 %v1393
      %v1480 = vunpack.c.l.b16 %v1396
      %v1481 = vunpack.c.l.b16 %v1400
      %v1482 = vunpack.c.l.b16 %v1403
      %v1483 = vunpack.c.l.b16 %v1407
      %v1484 = vunpack.c.l.b16 %v1410
      %v1485 = vunpack.c.l.b16 %v1414
      %v1486 = vunpack.c.l.b16 %v1417
      %v1487 = vunpack.c.l.b16 %v1421
      %v1488 = vunpack.c.l.b16 %v1424
      %v1489 = vunpack.c.l.b16 %v1428
      %v1490 = vunpack.c.l.b16 %v1431
      %v1491 = vunpack.c.l.b16 %v1435
      %v1492 = vunpack.c.l.b16 %v1438
      %v1493 = vunpack.c.l.b16 %v1442
      %v1494 = vunpack.c.l.b16 %v1445
      %v1495 = vpack.c.b16 %v1464, %v1463
      %v1496 = vpack.c.b16 %v1466, %v1465
      %v1497 = vpack.c.b16 %v1468, %v1467
      %v1498 = vpack.c.b16 %v1470, %v1469
      %v1499 = vpack.c.b16 %v1472, %v1471
      %v1500 = vpack.c.b16 %v1474, %v1473
      %v1501 = vpack.c.b16 %v1476, %v1475
      %v1502 = vpack.c.b16 %v1478, %v1477
      %v1503 = vpack.c.b16 %v1480, %v1479
      %v1504 = vpack.c.b16 %v1482, %v1481
      %v1505 = vpack.c.b16 %v1484, %v1483
      %v1506 = vpack.c.b16 %v1486, %v1485
      %v1507 = vpack.c.b16 %v1488, %v1487
      %v1508 = vpack.c.b16 %v1490, %v1489
      %v1509 = vpack.c.b16 %v1492, %v1491
      %v1510 = vpack.c.b16 %v1494, %v1493
      %v1543 = vunpack.c.l.b16 %v1447
      %v1544 = vunpack.c.l.b16 %v1448
      %v1545 = vunpack.c.l.b16 %v1449
      %v1546 = vunpack.c.l.b16 %v1450
      %v1547 = vunpack.c.l.b16 %v1451
      %v1548 = vunpack.c.l.b16 %v1452
      %v1549 = vunpack.c.l.b16 %v1453
      %v1550 = vunpack.c.l.b16 %v1454
      %v1551 = vunpack.c.l.b16 %v1455
      %v1552 = vunpack.c.l.b16 %v1456
      %v1553 = vunpack.c.l.b16 %v1457
      %v1554 = vunpack.c.l.b16 %v1458
      %v1555 = vunpack.c.l.b16 %v1459
      %v1556 = vunpack.c.l.b16 %v1460
      %v1557 = vunpack.c.l.b16 %v1461
      %v1558 = vunpack.c.l.b16 %v1462
      %v1559 = vpack.c.b16 %v1544, %v1543
      %v1560 = vpack.c.b16 %v1546, %v1545
      %v1561 = vpack.c.b16 %v1548, %v1547
      %v1562 = vpack.c.b16 %v1550, %v1549
      %v1563 = vpack.c.b16 %v1552, %v1551
      %v1564 = vpack.c.b16 %v1554, %v1553
      %v1565 = vpack.c.b16 %v1556, %v1555
      %v1566 = vpack.c.b16 %v1558, %v1557
      %1575 = vmatprep.subr.bf16.mxu0 0
      %1576 = vmatpush1.bf16.msra.mxu0 %v1559
      %1577 = vmatprep.subr.bf16.mxu0 0
      %1578 = vmatpush1.bf16.msra.mxu0 %v1560
      %1579 = vmatprep.subr.bf16.mxu0 0
      %1580 = vmatpush1.bf16.msra.mxu0 %v1561
      %1581 = vmatprep.subr.bf16.mxu0 0
      %1582 = vmatpush1.bf16.msra.mxu0 %v1562
      %1583 = vmatprep.subr.bf16.mxu0 0
      %1584 = vmatpush1.bf16.msra.mxu0 %v1563
      %1585 = vmatprep.subr.bf16.mxu0 0
      %1586 = vmatpush1.bf16.msra.mxu0 %v1564
      %1587 = vmatprep.subr.bf16.mxu0 0
      %1588 = vmatpush1.bf16.msra.mxu0 %v1565
      %1589 = vmatprep.subr.bf16.mxu0 0
      %1590 = vmatpush1.bf16.msra.mxu0 %v1566
      %1591 = vmatprep.subr.bf16.mxu0 0
      %1592 = vmatpush1.bf16.msra.mxu0 0
      %1593 = vmatprep.subr.bf16.mxu0 0
      %1594 = vmatpush1.bf16.msra.mxu0 0
      %1595 = vmatprep.subr.bf16.mxu0 0
      %1596 = vmatpush1.bf16.msra.mxu0 0
      %1597 = vmatprep.subr.bf16.mxu0 0
      %1598 = vmatpush1.bf16.msra.mxu0 0
      %1599 = vmatprep.subr.bf16.mxu0 0
      %1600 = vmatpush1.bf16.msra.mxu0 0
      %1601 = vmatprep.subr.bf16.mxu0 0
      %1602 = vmatpush1.bf16.msra.mxu0 0
      %1603 = vmatprep.subr.bf16.mxu0 0
      %1604 = vmatpush1.bf16.msra.mxu0 0
      %1605 = vmatprep.subr.bf16.mxu0 0
      %1606 = vmatpush1.bf16.msra.mxu0 0
      %1607 = vmatprep.mubr.bf16.mxu0 0
      %1608 = vmatmul.mubr.bf16.gmra.mrb[0].mxu0 %v1495
      %v1609 = vpop.f32.mrb[0].mxu0
      %v1610 = vadd.f32 0.0, %v1609
      %v1611 = vpop.f32.mrb[0].mxu0
      %v1612 = vpop.f32.mrb[0].mxu0
      %v1613 = vadd.f32 0.0, %v1612
      %v1614 = vpop.f32.mrb[0].mxu0
      %1615 = vmatprep.mubr.bf16.mxu0 0
      %1616 = vmatmul.mubr.bf16.gmra.mrb[0].mxu0 %v1496
      %v1617 = vpop.f32.mrb[0].mxu0
      %v1618 = vadd.f32 0.0, %v1617
      %v1619 = vpop.f32.mrb[0].mxu0
      %v1620 = vpop.f32.mrb[0].mxu0
      %v1621 = vadd.f32 0.0, %v1620
      %v1622 = vpop.f32.mrb[0].mxu0
      %1623 = vmatprep.mubr.bf16.mxu0 0
      %1624 = vmatmul.mubr.bf16.gmra.mrb[0].mxu0 %v1497
      %v1625 = vpop.f32.mrb[0].mxu0
      %v1626 = vadd.f32 0.0, %v1625
      %v1627 = vpop.f32.mrb[0].mxu0
      %v1628 = vpop.f32.mrb[0].mxu0
      %v1629 = vadd.f32 0.0, %v1628
      %v1630 = vpop.f32.mrb[0].mxu0
      %1631 = vmatprep.mubr.bf16.mxu0 0
      %1632 = vmatmul.mubr.bf16.gmra.mrb[0].mxu0 %v1498
      %v1633 = vpop.f32.mrb[0].mxu0
      %v1634 = vadd.f32 0.0, %v1633
      %v1635 = vpop.f32.mrb[0].mxu0
      %v1636 = vpop.f32.mrb[0].mxu0
      %v1637 = vadd.f32 0.0, %v1636
      %v1638 = vpop.f32.mrb[0].mxu0
      %1639 = vmatprep.mubr.bf16.mxu0 0
      %1640 = vmatmul.mubr.bf16.gmra.mrb[0].mxu0 %v1499
      %v1641 = vpop.f32.mrb[0].mxu0
      %v1642 = vadd.f32 0.0, %v1641
      %v1643 = vpop.f32.mrb[0].mxu0
      %v1644 = vpop.f32.mrb[0].mxu0
      %v1645 = vadd.f32 0.0, %v1644
      %v1646 = vpop.f32.mrb[0].mxu0
      %1647 = vmatprep.mubr.bf16.mxu0 0
      %1648 = vmatmul.mubr.bf16.gmra.mrb[0].mxu0 %v1500
      %v1649 = vpop.f32.mrb[0].mxu0
      %v1650 = vadd.f32 0.0, %v1649
      %v1651 = vpop.f32.mrb[0].mxu0
      %v1652 = vpop.f32.mrb[0].mxu0
      %v1653 = vadd.f32 0.0, %v1652
      %v1654 = vpop.f32.mrb[0].mxu0
      %1655 = vmatprep.mubr.bf16.mxu0 0
      %1656 = vmatmul.mubr.bf16.gmra.mrb[0].mxu0 %v1501
      %v1657 = vpop.f32.mrb[0].mxu0
      %v1658 = vadd.f32 0.0, %v1657
      %v1659 = vpop.f32.mrb[0].mxu0
      %v1660 = vpop.f32.mrb[0].mxu0
      %v1661 = vadd.f32 0.0, %v1660
      %v1662 = vpop.f32.mrb[0].mxu0
      %1663 = vmatprep.mubr.bf16.mxu0 0
      %1664 = vmatmul.mubr.bf16.gmra.mrb[0].mxu0 %v1502
      %v1665 = vpop.f32.mrb[0].mxu0
      %v1666 = vadd.f32 0.0, %v1665
      %v1667 = vpop.f32.mrb[0].mxu0
      %v1668 = vpop.f32.mrb[0].mxu0
      %v1669 = vadd.f32 0.0, %v1668
      %v1670 = vpop.f32.mrb[0].mxu0
      %1671 = vmatprep.mubr.bf16.mxu0 0
      %1672 = vmatmul.mubr.bf16.gmra.mrb[0].mxu0 %v1503
      %v1673 = vpop.f32.mrb[0].mxu0
      %v1674 = vadd.f32 0.0, %v1673
      %v1675 = vpop.f32.mrb[0].mxu0
      %v1676 = vpop.f32.mrb[0].mxu0
      %v1677 = vadd.f32 0.0, %v1676
      %v1678 = vpop.f32.mrb[0].mxu0
      %1679 = vmatprep.mubr.bf16.mxu0 0
      %1680 = vmatmul.mubr.bf16.gmra.mrb[0].mxu0 %v1504
      %v1681 = vpop.f32.mrb[0].mxu0
      %v1682 = vadd.f32 0.0, %v1681
      %v1683 = vpop.f32.mrb[0].mxu0
      %v1684 = vpop.f32.mrb[0].mxu0
      %v1685 = vadd.f32 0.0, %v1684
      %v1686 = vpop.f32.mrb[0].mxu0
      %1687 = vmatprep.mubr.bf16.mxu0 0
      %1688 = vmatmul.mubr.bf16.gmra.mrb[0].mxu0 %v1505
      %v1689 = vpop.f32.mrb[0].mxu0
      %v1690 = vadd.f32 0.0, %v1689
      %v1691 = vpop.f32.mrb[0].mxu0
      %v1692 = vpop.f32.mrb[0].mxu0
      %v1693 = vadd.f32 0.0, %v1692
      %v1694 = vpop.f32.mrb[0].mxu0
      %1695 = vmatprep.mubr.bf16.mxu0 0
      %1696 = vmatmul.mubr.bf16.gmra.mrb[0].mxu0 %v1506
      %v1697 = vpop.f32.mrb[0].mxu0
      %v1698 = vadd.f32 0.0, %v1697
      %v1699 = vpop.f32.mrb[0].mxu0
      %v1700 = vpop.f32.mrb[0].mxu0
      %v1701 = vadd.f32 0.0, %v1700
      %v1702 = vpop.f32.mrb[0].mxu0
      %1703 = vmatprep.mubr.bf16.mxu0 0
      %1704 = vmatmul.mubr.bf16.gmra.mrb[0].mxu0 %v1507
      %v1705 = vpop.f32.mrb[0].mxu0
      %v1706 = vadd.f32 0.0, %v1705
      %v1707 = vpop.f32.mrb[0].mxu0
      %v1708 = vpop.f32.mrb[0].mxu0
      %v1709 = vadd.f32 0.0, %v1708
      %v1710 = vpop.f32.mrb[0].mxu0
      %1711 = vmatprep.mubr.bf16.mxu0 0
      %1712 = vmatmul.mubr.bf16.gmra.mrb[0].mxu0 %v1508
      %v1713 = vpop.f32.mrb[0].mxu0
      %v1714 = vadd.f32 0.0, %v1713
      %v1715 = vpop.f32.mrb[0].mxu0
      %v1716 = vpop.f32.mrb[0].mxu0
      %v1717 = vadd.f32 0.0, %v1716
      %v1718 = vpop.f32.mrb[0].mxu0
      %1719 = vmatprep.mubr.bf16.mxu0 0
      %1720 = vmatmul.mubr.bf16.gmra.mrb[0].mxu0 %v1509
      %v1721 = vpop.f32.mrb[0].mxu0
      %v1722 = vadd.f32 0.0, %v1721
      %v1723 = vpop.f32.mrb[0].mxu0
      %v1724 = vpop.f32.mrb[0].mxu0
      %v1725 = vadd.f32 0.0, %v1724
      %v1726 = vpop.f32.mrb[0].mxu0
      %1727 = vmatprep.mubr.bf16.mxu0 0
      %1728 = vmatmul.mubr.bf16.gmra.mrb[0].mxu0 %v1510
      %v1729 = vpop.f32.mrb[0].mxu0
      %v1730 = vadd.f32 0.0, %v1729
      %v1731 = vpop.f32.mrb[0].mxu0
      %v1732 = vpop.f32.mrb[0].mxu0
      %v1733 = vadd.f32 0.0, %v1732
      %v1734 = vpop.f32.mrb[0].mxu0
      %1735 = vdwg.mxu0
      %v1736 = vadd.f32 %v1189, %v1610
      %v1737 = vadd.f32 %v1192, %v1613
      %v1738 = vadd.f32 %v1197, %v1618
      %v1739 = vadd.f32 %v1200, %v1621
      %v1740 = vadd.f32 %v1205, %v1626
      %v1741 = vadd.f32 %v1208, %v1629
      %v1742 = vadd.f32 %v1213, %v1634
      %v1743 = vadd.f32 %v1216, %v1637
      %v1744 = vadd.f32 %v1221, %v1642
      %v1745 = vadd.f32 %v1224, %v1645
      %v1746 = vadd.f32 %v1229, %v1650
      %v1747 = vadd.f32 %v1232, %v1653
      %v1748 = vadd.f32 %v1237, %v1658
      %v1749 = vadd.f32 %v1240, %v1661
      %v1750 = vadd.f32 %v1245, %v1666
      %v1751 = vadd.f32 %v1248, %v1669
      %v1752 = vadd.f32 %v1253, %v1674
      %v1753 = vadd.f32 %v1256, %v1677
      %v1754 = vadd.f32 %v1261, %v1682
      %v1755 = vadd.f32 %v1264, %v1685
      %v1756 = vadd.f32 %v1269, %v1690
      %v1757 = vadd.f32 %v1272, %v1693
      %v1758 = vadd.f32 %v1277, %v1698
      %v1759 = vadd.f32 %v1280, %v1701
      %v1760 = vadd.f32 %v1285, %v1706
      %v1761 = vadd.f32 %v1288, %v1709
      %v1762 = vadd.f32 %v1293, %v1714
      %v1763 = vadd.f32 %v1296, %v1717
      %v1764 = vadd.f32 %v1301, %v1722
      %v1765 = vadd.f32 %v1304, %v1725
      %v1766 = vadd.f32 %v1309, %v1730
      %v1767 = vadd.f32 %v1312, %v1733
      %s1768 = scalar_lea.vmem %s1, 192
      %v1769 = vld [vmem:[%s1768] sm:$0xf]
      %v1770 = vld [vmem:[%s1768 + $0x4] sm:$0xf]
      %v1771 = vld [vmem:[%s1768 + $0x8] sm:$0xf]
      %v1772 = vld [vmem:[%s1768 + $0xc] sm:$0xf]
      %v1773 = vld [vmem:[%s1768 + $0x10] sm:$0xf]
      %v1774 = vld [vmem:[%s1768 + $0x14] sm:$0xf]
      %v1775 = vld [vmem:[%s1768 + $0x18] sm:$0xf]
      %v1776 = vld [vmem:[%s1768 + $0x1c] sm:$0xf]
      %v1777 = vld [vmem:[%s1768 + $0x20] sm:$0xf]
      %v1778 = vld [vmem:[%s1768 + $0x24] sm:$0xf]
      %v1779 = vld [vmem:[%s1768 + $0x28] sm:$0xf]
      %v1780 = vld [vmem:[%s1768 + $0x2c] sm:$0xf]
      %v1781 = vld [vmem:[%s1768 + $0x30] sm:$0xf]
      %v1782 = vld [vmem:[%s1768 + $0x34] sm:$0xf]
      %v1783 = vld [vmem:[%s1768 + $0x38] sm:$0xf]
      %v1784 = vld [vmem:[%s1768 + $0x3c] sm:$0xf]
      %v1787 = vunpack.c.l.b16 %v311
      %v1788 = vunpack.c.l.b16 %v312
      %v1789 = vpack.c.b16 %v1788, %v1787
      %v1807 = vunpack.c.l.b16 %v1769
      %v1808 = vunpack.c.l.b16 %v1770
      %v1809 = vunpack.c.l.b16 %v1771
      %v1810 = vunpack.c.l.b16 %v1772
      %v1811 = vunpack.c.l.b16 %v1773
      %v1812 = vunpack.c.l.b16 %v1774
      %v1813 = vunpack.c.l.b16 %v1775
      %v1814 = vunpack.c.l.b16 %v1776
      %v1815 = vunpack.c.l.b16 %v1777
      %v1816 = vunpack.c.l.b16 %v1778
      %v1817 = vunpack.c.l.b16 %v1779
      %v1818 = vunpack.c.l.b16 %v1780
      %v1819 = vunpack.c.l.b16 %v1781
      %v1820 = vunpack.c.l.b16 %v1782
      %v1821 = vunpack.c.l.b16 %v1783
      %v1822 = vunpack.c.l.b16 %v1784
      %v1823 = vpack.c.b16 %v1808, %v1807
      %v1824 = vpack.c.b16 %v1810, %v1809
      %v1825 = vpack.c.b16 %v1812, %v1811
      %v1826 = vpack.c.b16 %v1814, %v1813
      %v1827 = vpack.c.b16 %v1816, %v1815
      %v1828 = vpack.c.b16 %v1818, %v1817
      %v1829 = vpack.c.b16 %v1820, %v1819
      %v1830 = vpack.c.b16 %v1822, %v1821
      %1839 = vmatprep.subr.bf16.mxu0 0
      %1840 = vmatpush1.bf16.msra.mxu0 %v1823
      %1841 = vmatprep.subr.bf16.mxu0 0
      %1842 = vmatpush1.bf16.msra.mxu0 %v1824
      %1843 = vmatprep.subr.bf16.mxu0 0
      %1844 = vmatpush1.bf16.msra.mxu0 %v1825
      %1845 = vmatprep.subr.bf16.mxu0 0
      %1846 = vmatpush1.bf16.msra.mxu0 %v1826
      %1847 = vmatprep.subr.bf16.mxu0 0
      %1848 = vmatpush1.bf16.msra.mxu0 %v1827
      %1849 = vmatprep.subr.bf16.mxu0 0
      %1850 = vmatpush1.bf16.msra.mxu0 %v1828
      %1851 = vmatprep.subr.bf16.mxu0 0
      %1852 = vmatpush1.bf16.msra.mxu0 %v1829
      %1853 = vmatprep.subr.bf16.mxu0 0
      %1854 = vmatpush1.bf16.msra.mxu0 %v1830
      %1855 = vmatprep.subr.bf16.mxu0 0
      %1856 = vmatpush1.bf16.msra.mxu0 0
      %1857 = vmatprep.subr.bf16.mxu0 0
      %1858 = vmatpush1.bf16.msra.mxu0 0
      %1859 = vmatprep.subr.bf16.mxu0 0
      %1860 = vmatpush1.bf16.msra.mxu0 0
      %1861 = vmatprep.subr.bf16.mxu0 0
      %1862 = vmatpush1.bf16.msra.mxu0 0
      %1863 = vmatprep.subr.bf16.mxu0 0
      %1864 = vmatpush1.bf16.msra.mxu0 0
      %1865 = vmatprep.subr.bf16.mxu0 0
      %1866 = vmatpush1.bf16.msra.mxu0 0
      %1867 = vmatprep.subr.bf16.mxu0 0
      %1868 = vmatpush1.bf16.msra.mxu0 0
      %1869 = vmatprep.subr.bf16.mxu0 0
      %1870 = vmatpush1.bf16.msra.mxu0 0
      %1871 = vmatprep.mubr.bf16.mxu0 0
      %1872 = vmatmul.mubr.bf16.gmra.mrb[0].mxu0 %v1075
      %v1873 = vpop.f32.mrb[0].mxu0
      %v1874 = vadd.f32 0.0, %v1873
      %v1875 = vpop.f32.mrb[0].mxu0
      %v1876 = vpop.f32.mrb[0].mxu0
      %v1877 = vadd.f32 0.0, %v1876
      %v1878 = vpop.f32.mrb[0].mxu0
      %1879 = vmatprep.mubr.bf16.mxu0 0
      %1880 = vmatmul.mubr.bf16.gmra.mrb[0].mxu0 %v1076
      %v1881 = vpop.f32.mrb[0].mxu0
      %v1882 = vadd.f32 0.0, %v1881
      %v1883 = vpop.f32.mrb[0].mxu0
      %v1884 = vpop.f32.mrb[0].mxu0
      %v1885 = vadd.f32 0.0, %v1884
      %v1886 = vpop.f32.mrb[0].mxu0
      %1887 = vmatprep.mubr.bf16.mxu0 0
      %1888 = vmatmul.mubr.bf16.gmra.mrb[0].mxu0 %v1077
      %v1889 = vpop.f32.mrb[0].mxu0
      %v1890 = vadd.f32 0.0, %v1889
      %v1891 = vpop.f32.mrb[0].mxu0
      %v1892 = vpop.f32.mrb[0].mxu0
      %v1893 = vadd.f32 0.0, %v1892
      %v1894 = vpop.f32.mrb[0].mxu0
      %1895 = vmatprep.mubr.bf16.mxu0 0
      %1896 = vmatmul.mubr.bf16.gmra.mrb[0].mxu0 %v1078
      %v1897 = vpop.f32.mrb[0].mxu0
      %v1898 = vadd.f32 0.0, %v1897
      %v1899 = vpop.f32.mrb[0].mxu0
      %v1900 = vpop.f32.mrb[0].mxu0
      %v1901 = vadd.f32 0.0, %v1900
      %v1902 = vpop.f32.mrb[0].mxu0
      %1903 = vmatprep.mubr.bf16.mxu0 0
      %1904 = vmatmul.mubr.bf16.gmra.mrb[0].mxu0 %v1079
      %v1905 = vpop.f32.mrb[0].mxu0
      %v1906 = vadd.f32 0.0, %v1905
      %v1907 = vpop.f32.mrb[0].mxu0
      %v1908 = vpop.f32.mrb[0].mxu0
      %v1909 = vadd.f32 0.0, %v1908
      %v1910 = vpop.f32.mrb[0].mxu0
      %1911 = vmatprep.mubr.bf16.mxu0 0
      %1912 = vmatmul.mubr.bf16.gmra.mrb[0].mxu0 %v1080
      %v1913 = vpop.f32.mrb[0].mxu0
      %v1914 = vadd.f32 0.0, %v1913
      %v1915 = vpop.f32.mrb[0].mxu0
      %v1916 = vpop.f32.mrb[0].mxu0
      %v1917 = vadd.f32 0.0, %v1916
      %v1918 = vpop.f32.mrb[0].mxu0
      %1919 = vmatprep.mubr.bf16.mxu0 0
      %1920 = vmatmul.mubr.bf16.gmra.mrb[0].mxu0 %v1081
      %v1921 = vpop.f32.mrb[0].mxu0
      %v1922 = vadd.f32 0.0, %v1921
      %v1923 = vpop.f32.mrb[0].mxu0
      %v1924 = vpop.f32.mrb[0].mxu0
      %v1925 = vadd.f32 0.0, %v1924
      %v1926 = vpop.f32.mrb[0].mxu0
      %1927 = vmatprep.mubr.bf16.mxu0 0
      %1928 = vmatmul.mubr.bf16.gmra.mrb[0].mxu0 %v1082
      %v1929 = vpop.f32.mrb[0].mxu0
      %v1930 = vadd.f32 0.0, %v1929
      %v1931 = vpop.f32.mrb[0].mxu0
      %v1932 = vpop.f32.mrb[0].mxu0
      %v1933 = vadd.f32 0.0, %v1932
      %v1934 = vpop.f32.mrb[0].mxu0
      %1935 = vmatprep.mubr.bf16.mxu0 0
      %1936 = vmatmul.mubr.bf16.gmra.mrb[0].mxu0 %v1083
      %v1937 = vpop.f32.mrb[0].mxu0
      %v1938 = vadd.f32 0.0, %v1937
      %v1939 = vpop.f32.mrb[0].mxu0
      %v1940 = vpop.f32.mrb[0].mxu0
      %v1941 = vadd.f32 0.0, %v1940
      %v1942 = vpop.f32.mrb[0].mxu0
      %1943 = vmatprep.mubr.bf16.mxu0 0
      %1944 = vmatmul.mubr.bf16.gmra.mrb[0].mxu0 %v1084
      %v1945 = vpop.f32.mrb[0].mxu0
      %v1946 = vadd.f32 0.0, %v1945
      %v1947 = vpop.f32.mrb[0].mxu0
      %v1948 = vpop.f32.mrb[0].mxu0
      %v1949 = vadd.f32 0.0, %v1948
      %v1950 = vpop.f32.mrb[0].mxu0
      %1951 = vmatprep.mubr.bf16.mxu0 0
      %1952 = vmatmul.mubr.bf16.gmra.mrb[0].mxu0 %v1085
      %v1953 = vpop.f32.mrb[0].mxu0
      %v1954 = vadd.f32 0.0, %v1953
      %v1955 = vpop.f32.mrb[0].mxu0
      %v1956 = vpop.f32.mrb[0].mxu0
      %v1957 = vadd.f32 0.0, %v1956
      %v1958 = vpop.f32.mrb[0].mxu0
      %1959 = vmatprep.mubr.bf16.mxu0 0
      %1960 = vmatmul.mubr.bf16.gmra.mrb[0].mxu0 %v1086
      %v1961 = vpop.f32.mrb[0].mxu0
      %v1962 = vadd.f32 0.0, %v1961
      %v1963 = vpop.f32.mrb[0].mxu0
      %v1964 = vpop.f32.mrb[0].mxu0
      %v1965 = vadd.f32 0.0, %v1964
      %v1966 = vpop.f32.mrb[0].mxu0
      %1967 = vmatprep.mubr.bf16.mxu0 0
      %1968 = vmatmul.mubr.bf16.gmra.mrb[0].mxu0 %v1087
      %v1969 = vpop.f32.mrb[0].mxu0
      %v1970 = vadd.f32 0.0, %v1969
      %v1971 = vpop.f32.mrb[0].mxu0
      %v1972 = vpop.f32.mrb[0].mxu0
      %v1973 = vadd.f32 0.0, %v1972
      %v1974 = vpop.f32.mrb[0].mxu0
      %1975 = vmatprep.mubr.bf16.mxu0 0
      %1976 = vmatmul.mubr.bf16.gmra.mrb[0].mxu0 %v1088
      %v1977 = vpop.f32.mrb[0].mxu0
      %v1978 = vadd.f32 0.0, %v1977
      %v1979 = vpop.f32.mrb[0].mxu0
      %v1980 = vpop.f32.mrb[0].mxu0
      %v1981 = vadd.f32 0.0, %v1980
      %v1982 = vpop.f32.mrb[0].mxu0
      %1983 = vmatprep.mubr.bf16.mxu0 0
      %1984 = vmatmul.mubr.bf16.gmra.mrb[0].mxu0 %v1089
      %v1985 = vpop.f32.mrb[0].mxu0
      %v1986 = vadd.f32 0.0, %v1985
      %v1987 = vpop.f32.mrb[0].mxu0
      %v1988 = vpop.f32.mrb[0].mxu0
      %v1989 = vadd.f32 0.0, %v1988
      %v1990 = vpop.f32.mrb[0].mxu0
      %1991 = vmatprep.mubr.bf16.mxu0 0
      %1992 = vmatmul.mubr.bf16.gmra.mrb[0].mxu0 %v1789
      %v1993 = vpop.f32.mrb[0].mxu0
      %v1994 = vadd.f32 0.0, %v1993
      %v1995 = vpop.f32.mrb[0].mxu0
      %v1996 = vpop.f32.mrb[0].mxu0
      %v1997 = vadd.f32 0.0, %v1996
      %v1998 = vpop.f32.mrb[0].mxu0
      %1999 = vdwg.mxu0
      %v2000 = vadd.f32 %v1736, %v1874
      %v2001 = vadd.f32 %v1737, %v1877
      %v2002 = vadd.f32 %v1738, %v1882
      %v2003 = vadd.f32 %v1739, %v1885
      %v2004 = vadd.f32 %v1740, %v1890
      %v2005 = vadd.f32 %v1741, %v1893
      %v2006 = vadd.f32 %v1742, %v1898
      %v2007 = vadd.f32 %v1743, %v1901
      %v2008 = vadd.f32 %v1744, %v1906
      %v2009 = vadd.f32 %v1745, %v1909
      %v2010 = vadd.f32 %v1746, %v1914
      %v2011 = vadd.f32 %v1747, %v1917
      %v2012 = vadd.f32 %v1748, %v1922
      %v2013 = vadd.f32 %v1749, %v1925
      %v2014 = vadd.f32 %v1750, %v1930
      %v2015 = vadd.f32 %v1751, %v1933
      %v2016 = vadd.f32 %v1752, %v1938
      %v2017 = vadd.f32 %v1753, %v1941
      %v2018 = vadd.f32 %v1754, %v1946
      %v2019 = vadd.f32 %v1755, %v1949
      %v2020 = vadd.f32 %v1756, %v1954
      %v2021 = vadd.f32 %v1757, %v1957
      %v2022 = vadd.f32 %v1758, %v1962
      %v2023 = vadd.f32 %v1759, %v1965
      %v2024 = vadd.f32 %v1760, %v1970
      %v2025 = vadd.f32 %v1761, %v1973
      %v2026 = vadd.f32 %v1762, %v1978
      %v2027 = vadd.f32 %v1763, %v1981
      %v2028 = vadd.f32 %v1764, %v1986
      %v2029 = vadd.f32 %v1765, %v1989
      %v2030 = vadd.f32 %v1766, %v1994
      %v2031 = vadd.f32 %v1767, %v1997
      %v2033 = vshrl.u32 %v311, 16
      %v2035 = vrot.slane %v2033, 4
      %v2036 = vshll.u32 %v311, 16
      %v2038 = vrot.slane %v2036, 5
      %v2039 = vor.u32 %v2035, %v2038
      %v2040 = vrot.slane %v2039, 4
      %v2042 = vshll.u32 %v312, 16
      %v2044 = vrot.slane %v2042, 5
      %v2045 = vsel %vm335, %v2040, %v2044
      %v2046 = vshrl.u32 %v312, 16
      %v2048 = vrot.slane %v2046, 4
      %v2049 = vor.u32 %v2048, %v2044
      %v2050 = vrot.slane %v2049, 4
      %v2052 = vshll.u32 %v313, 16
      %v2054 = vrot.slane %v2052, 5
      %v2055 = vsel %vm335, %v2050, %v2054
      %s2056 = scalar_lea.vmem %s1, 256
      %v2057 = vld [vmem:[%s2056] sm:$0xf]
      %v2058 = vld [vmem:[%s2056 + $0x4] sm:$0xf]
      %v2059 = vld [vmem:[%s2056 + $0x8] sm:$0xf]
      %v2060 = vld [vmem:[%s2056 + $0xc] sm:$0xf]
      %v2061 = vld [vmem:[%s2056 + $0x10] sm:$0xf]
      %v2062 = vld [vmem:[%s2056 + $0x14] sm:$0xf]
      %v2063 = vld [vmem:[%s2056 + $0x18] sm:$0xf]
      %v2064 = vld [vmem:[%s2056 + $0x1c] sm:$0xf]
      %v2065 = vld [vmem:[%s2056 + $0x20] sm:$0xf]
      %v2066 = vld [vmem:[%s2056 + $0x24] sm:$0xf]
      %v2067 = vld [vmem:[%s2056 + $0x28] sm:$0xf]
      %v2068 = vld [vmem:[%s2056 + $0x2c] sm:$0xf]
      %v2069 = vld [vmem:[%s2056 + $0x30] sm:$0xf]
      %v2070 = vld [vmem:[%s2056 + $0x34] sm:$0xf]
      %v2071 = vld [vmem:[%s2056 + $0x38] sm:$0xf]
      %v2072 = vld [vmem:[%s2056 + $0x3c] sm:$0xf]
      %v2073 = vunpack.c.l.b16 %v2045
      %v2074 = vunpack.c.l.b16 %v2055
      %v2075 = vpack.c.b16 %v2074, %v2073
      %v2093 = vunpack.c.l.b16 %v2057
      %v2094 = vunpack.c.l.b16 %v2058
      %v2095 = vunpack.c.l.b16 %v2059
      %v2096 = vunpack.c.l.b16 %v2060
      %v2097 = vunpack.c.l.b16 %v2061
      %v2098 = vunpack.c.l.b16 %v2062
      %v2099 = vunpack.c.l.b16 %v2063
      %v2100 = vunpack.c.l.b16 %v2064
      %v2101 = vunpack.c.l.b16 %v2065
      %v2102 = vunpack.c.l.b16 %v2066
      %v2103 = vunpack.c.l.b16 %v2067
      %v2104 = vunpack.c.l.b16 %v2068
      %v2105 = vunpack.c.l.b16 %v2069
      %v2106 = vunpack.c.l.b16 %v2070
      %v2107 = vunpack.c.l.b16 %v2071
      %v2108 = vunpack.c.l.b16 %v2072
      %v2109 = vpack.c.b16 %v2094, %v2093
      %v2110 = vpack.c.b16 %v2096, %v2095
      %v2111 = vpack.c.b16 %v2098, %v2097
      %v2112 = vpack.c.b16 %v2100, %v2099
      %v2113 = vpack.c.b16 %v2102, %v2101
      %v2114 = vpack.c.b16 %v2104, %v2103
      %v2115 = vpack.c.b16 %v2106, %v2105
      %v2116 = vpack.c.b16 %v2108, %v2107
      %2125 = vmatprep.subr.bf16.mxu0 0
      %2126 = vmatpush1.bf16.msra.mxu0 %v2109
      %2127 = vmatprep.subr.bf16.mxu0 0
      %2128 = vmatpush1.bf16.msra.mxu0 %v2110
      %2129 = vmatprep.subr.bf16.mxu0 0
      %2130 = vmatpush1.bf16.msra.mxu0 %v2111
      %2131 = vmatprep.subr.bf16.mxu0 0
      %2132 = vmatpush1.bf16.msra.mxu0 %v2112
      %2133 = vmatprep.subr.bf16.mxu0 0
      %2134 = vmatpush1.bf16.msra.mxu0 %v2113
      %2135 = vmatprep.subr.bf16.mxu0 0
      %2136 = vmatpush1.bf16.msra.mxu0 %v2114
      %2137 = vmatprep.subr.bf16.mxu0 0
      %2138 = vmatpush1.bf16.msra.mxu0 %v2115
      %2139 = vmatprep.subr.bf16.mxu0 0
      %2140 = vmatpush1.bf16.msra.mxu0 %v2116
      %2141 = vmatprep.subr.bf16.mxu0 0
      %2142 = vmatpush1.bf16.msra.mxu0 0
      %2143 = vmatprep.subr.bf16.mxu0 0
      %2144 = vmatpush1.bf16.msra.mxu0 0
      %2145 = vmatprep.subr.bf16.mxu0 0
      %2146 = vmatpush1.bf16.msra.mxu0 0
      %2147 = vmatprep.subr.bf16.mxu0 0
      %2148 = vmatpush1.bf16.msra.mxu0 0
      %2149 = vmatprep.subr.bf16.mxu0 0
      %2150 = vmatpush1.bf16.msra.mxu0 0
      %2151 = vmatprep.subr.bf16.mxu0 0
      %2152 = vmatpush1.bf16.msra.mxu0 0
      %2153 = vmatprep.subr.bf16.mxu0 0
      %2154 = vmatpush1.bf16.msra.mxu0 0
      %2155 = vmatprep.subr.bf16.mxu0 0
      %2156 = vmatpush1.bf16.msra.mxu0 0
      %2157 = vmatprep.mubr.bf16.mxu0 0
      %2158 = vmatmul.mubr.bf16.gmra.mrb[0].mxu0 %v770
      %v2159 = vpop.f32.mrb[0].mxu0
      %v2160 = vadd.f32 0.0, %v2159
      %v2161 = vpop.f32.mrb[0].mxu0
      %v2162 = vpop.f32.mrb[0].mxu0
      %v2163 = vadd.f32 0.0, %v2162
      %v2164 = vpop.f32.mrb[0].mxu0
      %2165 = vmatprep.mubr.bf16.mxu0 0
      %2166 = vmatmul.mubr.bf16.gmra.mrb[0].mxu0 %v771
      %v2167 = vpop.f32.mrb[0].mxu0
      %v2168 = vadd.f32 0.0, %v2167
      %v2169 = vpop.f32.mrb[0].mxu0
      %v2170 = vpop.f32.mrb[0].mxu0
      %v2171 = vadd.f32 0.0, %v2170
      %v2172 = vpop.f32.mrb[0].mxu0
      %2173 = vmatprep.mubr.bf16.mxu0 0
      %2174 = vmatmul.mubr.bf16.gmra.mrb[0].mxu0 %v772
      %v2175 = vpop.f32.mrb[0].mxu0
      %v2176 = vadd.f32 0.0, %v2175
      %v2177 = vpop.f32.mrb[0].mxu0
      %v2178 = vpop.f32.mrb[0].mxu0
      %v2179 = vadd.f32 0.0, %v2178
      %v2180 = vpop.f32.mrb[0].mxu0
      %2181 = vmatprep.mubr.bf16.mxu0 0
      %2182 = vmatmul.mubr.bf16.gmra.mrb[0].mxu0 %v773
      %v2183 = vpop.f32.mrb[0].mxu0
      %v2184 = vadd.f32 0.0, %v2183
      %v2185 = vpop.f32.mrb[0].mxu0
      %v2186 = vpop.f32.mrb[0].mxu0
      %v2187 = vadd.f32 0.0, %v2186
      %v2188 = vpop.f32.mrb[0].mxu0
      %2189 = vmatprep.mubr.bf16.mxu0 0
      %2190 = vmatmul.mubr.bf16.gmra.mrb[0].mxu0 %v774
      %v2191 = vpop.f32.mrb[0].mxu0
      %v2192 = vadd.f32 0.0, %v2191
      %v2193 = vpop.f32.mrb[0].mxu0
      %v2194 = vpop.f32.mrb[0].mxu0
      %v2195 = vadd.f32 0.0, %v2194
      %v2196 = vpop.f32.mrb[0].mxu0
      %2197 = vmatprep.mubr.bf16.mxu0 0
      %2198 = vmatmul.mubr.bf16.gmra.mrb[0].mxu0 %v775
      %v2199 = vpop.f32.mrb[0].mxu0
      %v2200 = vadd.f32 0.0, %v2199
      %v2201 = vpop.f32.mrb[0].mxu0
      %v2202 = vpop.f32.mrb[0].mxu0
      %v2203 = vadd.f32 0.0, %v2202
      %v2204 = vpop.f32.mrb[0].mxu0
      %2205 = vmatprep.mubr.bf16.mxu0 0
      %2206 = vmatmul.mubr.bf16.gmra.mrb[0].mxu0 %v776
      %v2207 = vpop.f32.mrb[0].mxu0
      %v2208 = vadd.f32 0.0, %v2207
      %v2209 = vpop.f32.mrb[0].mxu0
      %v2210 = vpop.f32.mrb[0].mxu0
      %v2211 = vadd.f32 0.0, %v2210
      %v2212 = vpop.f32.mrb[0].mxu0
      %2213 = vmatprep.mubr.bf16.mxu0 0
      %2214 = vmatmul.mubr.bf16.gmra.mrb[0].mxu0 %v777
      %v2215 = vpop.f32.mrb[0].mxu0
      %v2216 = vadd.f32 0.0, %v2215
      %v2217 = vpop.f32.mrb[0].mxu0
      %v2218 = vpop.f32.mrb[0].mxu0
      %v2219 = vadd.f32 0.0, %v2218
      %v2220 = vpop.f32.mrb[0].mxu0
      %2221 = vmatprep.mubr.bf16.mxu0 0
      %2222 = vmatmul.mubr.bf16.gmra.mrb[0].mxu0 %v778
      %v2223 = vpop.f32.mrb[0].mxu0
      %v2224 = vadd.f32 0.0, %v2223
      %v2225 = vpop.f32.mrb[0].mxu0
      %v2226 = vpop.f32.mrb[0].mxu0
      %v2227 = vadd.f32 0.0, %v2226
      %v2228 = vpop.f32.mrb[0].mxu0
      %2229 = vmatprep.mubr.bf16.mxu0 0
      %2230 = vmatmul.mubr.bf16.gmra.mrb[0].mxu0 %v779
      %v2231 = vpop.f32.mrb[0].mxu0
      %v2232 = vadd.f32 0.0, %v2231
      %v2233 = vpop.f32.mrb[0].mxu0
      %v2234 = vpop.f32.mrb[0].mxu0
      %v2235 = vadd.f32 0.0, %v2234
      %v2236 = vpop.f32.mrb[0].mxu0
      %2237 = vmatprep.mubr.bf16.mxu0 0
      %2238 = vmatmul.mubr.bf16.gmra.mrb[0].mxu0 %v780
      %v2239 = vpop.f32.mrb[0].mxu0
      %v2240 = vadd.f32 0.0, %v2239
      %v2241 = vpop.f32.mrb[0].mxu0
      %v2242 = vpop.f32.mrb[0].mxu0
      %v2243 = vadd.f32 0.0, %v2242
      %v2244 = vpop.f32.mrb[0].mxu0
      %2245 = vmatprep.mubr.bf16.mxu0 0
      %2246 = vmatmul.mubr.bf16.gmra.mrb[0].mxu0 %v781
      %v2247 = vpop.f32.mrb[0].mxu0
      %v2248 = vadd.f32 0.0, %v2247
      %v2249 = vpop.f32.mrb[0].mxu0
      %v2250 = vpop.f32.mrb[0].mxu0
      %v2251 = vadd.f32 0.0, %v2250
      %v2252 = vpop.f32.mrb[0].mxu0
      %2253 = vmatprep.mubr.bf16.mxu0 0
      %2254 = vmatmul.mubr.bf16.gmra.mrb[0].mxu0 %v782
      %v2255 = vpop.f32.mrb[0].mxu0
      %v2256 = vadd.f32 0.0, %v2255
      %v2257 = vpop.f32.mrb[0].mxu0
      %v2258 = vpop.f32.mrb[0].mxu0
      %v2259 = vadd.f32 0.0, %v2258
      %v2260 = vpop.f32.mrb[0].mxu0
      %2261 = vmatprep.mubr.bf16.mxu0 0
      %2262 = vmatmul.mubr.bf16.gmra.mrb[0].mxu0 %v783
      %v2263 = vpop.f32.mrb[0].mxu0
      %v2264 = vadd.f32 0.0, %v2263
      %v2265 = vpop.f32.mrb[0].mxu0
      %v2266 = vpop.f32.mrb[0].mxu0
      %v2267 = vadd.f32 0.0, %v2266
      %v2268 = vpop.f32.mrb[0].mxu0
      %2269 = vmatprep.mubr.bf16.mxu0 0
      %2270 = vmatmul.mubr.bf16.gmra.mrb[0].mxu0 %v784
      %v2271 = vpop.f32.mrb[0].mxu0
      %v2272 = vadd.f32 0.0, %v2271
      %v2273 = vpop.f32.mrb[0].mxu0
      %v2274 = vpop.f32.mrb[0].mxu0
      %v2275 = vadd.f32 0.0, %v2274
      %v2276 = vpop.f32.mrb[0].mxu0
      %2277 = vmatprep.mubr.bf16.mxu0 0
      %2278 = vmatmul.mubr.bf16.gmra.mrb[0].mxu0 %v2075
      %v2279 = vpop.f32.mrb[0].mxu0
      %v2280 = vadd.f32 0.0, %v2279
      %v2281 = vpop.f32.mrb[0].mxu0
      %v2282 = vpop.f32.mrb[0].mxu0
      %v2283 = vadd.f32 0.0, %v2282
      %v2284 = vpop.f32.mrb[0].mxu0
      %2285 = vdwg.mxu0
      %v2286 = vadd.f32 %v2000, %v2160
      %v2287 = vadd.f32 %v2001, %v2163
      %v2288 = vadd.f32 %v2002, %v2168
      %v2289 = vadd.f32 %v2003, %v2171
      %v2290 = vadd.f32 %v2004, %v2176
      %v2291 = vadd.f32 %v2005, %v2179
      %v2292 = vadd.f32 %v2006, %v2184
      %v2293 = vadd.f32 %v2007, %v2187
      %v2294 = vadd.f32 %v2008, %v2192
      %v2295 = vadd.f32 %v2009, %v2195
      %v2296 = vadd.f32 %v2010, %v2200
      %v2297 = vadd.f32 %v2011, %v2203
      %v2298 = vadd.f32 %v2012, %v2208
      %v2299 = vadd.f32 %v2013, %v2211
      %v2300 = vadd.f32 %v2014, %v2216
      %v2301 = vadd.f32 %v2015, %v2219
      %v2302 = vadd.f32 %v2016, %v2224
      %v2303 = vadd.f32 %v2017, %v2227
      %v2304 = vadd.f32 %v2018, %v2232
      %v2305 = vadd.f32 %v2019, %v2235
      %v2306 = vadd.f32 %v2020, %v2240
      %v2307 = vadd.f32 %v2021, %v2243
      %v2308 = vadd.f32 %v2022, %v2248
      %v2309 = vadd.f32 %v2023, %v2251
      %v2310 = vadd.f32 %v2024, %v2256
      %v2311 = vadd.f32 %v2025, %v2259
      %v2312 = vadd.f32 %v2026, %v2264
      %v2313 = vadd.f32 %v2027, %v2267
      %v2314 = vadd.f32 %v2028, %v2272
      %v2315 = vadd.f32 %v2029, %v2275
      %v2316 = vadd.f32 %v2030, %v2280
      %v2317 = vadd.f32 %v2031, %v2283
      %v2319 = vrot.slane %v311, 5
      %v2320 = vrot.slane %v2319, 4
      %v2321 = vrot.slane %v312, 5
      %v2322 = vsel %vm1333, %v2320, %v2321
      %v2323 = vrot.slane %v2321, 4
      %v2324 = vrot.slane %v313, 5
      %v2325 = vsel %vm1333, %v2323, %v2324
      %s2326 = scalar_lea.vmem %s1, 320
      %v2327 = vld [vmem:[%s2326] sm:$0xf]
      %v2328 = vld [vmem:[%s2326 + $0x4] sm:$0xf]
      %v2329 = vld [vmem:[%s2326 + $0x8] sm:$0xf]
      %v2330 = vld [vmem:[%s2326 + $0xc] sm:$0xf]
      %v2331 = vld [vmem:[%s2326 + $0x10] sm:$0xf]
      %v2332 = vld [vmem:[%s2326 + $0x14] sm:$0xf]
      %v2333 = vld [vmem:[%s2326 + $0x18] sm:$0xf]
      %v2334 = vld [vmem:[%s2326 + $0x1c] sm:$0xf]
      %v2335 = vld [vmem:[%s2326 + $0x20] sm:$0xf]
      %v2336 = vld [vmem:[%s2326 + $0x24] sm:$0xf]
      %v2337 = vld [vmem:[%s2326 + $0x28] sm:$0xf]
      %v2338 = vld [vmem:[%s2326 + $0x2c] sm:$0xf]
      %v2339 = vld [vmem:[%s2326 + $0x30] sm:$0xf]
      %v2340 = vld [vmem:[%s2326 + $0x34] sm:$0xf]
      %v2341 = vld [vmem:[%s2326 + $0x38] sm:$0xf]
      %v2342 = vld [vmem:[%s2326 + $0x3c] sm:$0xf]
      %v2343 = vunpack.c.l.b16 %v2322
      %v2344 = vunpack.c.l.b16 %v2325
      %v2345 = vpack.c.b16 %v2344, %v2343
      %v2363 = vunpack.c.l.b16 %v2327
      %v2364 = vunpack.c.l.b16 %v2328
      %v2365 = vunpack.c.l.b16 %v2329
      %v2366 = vunpack.c.l.b16 %v2330
      %v2367 = vunpack.c.l.b16 %v2331
      %v2368 = vunpack.c.l.b16 %v2332
      %v2369 = vunpack.c.l.b16 %v2333
      %v2370 = vunpack.c.l.b16 %v2334
      %v2371 = vunpack.c.l.b16 %v2335
      %v2372 = vunpack.c.l.b16 %v2336
      %v2373 = vunpack.c.l.b16 %v2337
      %v2374 = vunpack.c.l.b16 %v2338
      %v2375 = vunpack.c.l.b16 %v2339
      %v2376 = vunpack.c.l.b16 %v2340
      %v2377 = vunpack.c.l.b16 %v2341
      %v2378 = vunpack.c.l.b16 %v2342
      %v2379 = vpack.c.b16 %v2364, %v2363
      %v2380 = vpack.c.b16 %v2366, %v2365
      %v2381 = vpack.c.b16 %v2368, %v2367
      %v2382 = vpack.c.b16 %v2370, %v2369
      %v2383 = vpack.c.b16 %v2372, %v2371
      %v2384 = vpack.c.b16 %v2374, %v2373
      %v2385 = vpack.c.b16 %v2376, %v2375
      %v2386 = vpack.c.b16 %v2378, %v2377
      %2395 = vmatprep.subr.bf16.mxu0 0
      %2396 = vmatpush1.bf16.msra.mxu0 %v2379
      %2397 = vmatprep.subr.bf16.mxu0 0
      %2398 = vmatpush1.bf16.msra.mxu0 %v2380
      %2399 = vmatprep.subr.bf16.mxu0 0
      %2400 = vmatpush1.bf16.msra.mxu0 %v2381
      %2401 = vmatprep.subr.bf16.mxu0 0
      %2402 = vmatpush1.bf16.msra.mxu0 %v2382
      %2403 = vmatprep.subr.bf16.mxu0 0
      %2404 = vmatpush1.bf16.msra.mxu0 %v2383
      %2405 = vmatprep.subr.bf16.mxu0 0
      %2406 = vmatpush1.bf16.msra.mxu0 %v2384
      %2407 = vmatprep.subr.bf16.mxu0 0
      %2408 = vmatpush1.bf16.msra.mxu0 %v2385
      %2409 = vmatprep.subr.bf16.mxu0 0
      %2410 = vmatpush1.bf16.msra.mxu0 %v2386
      %2411 = vmatprep.subr.bf16.mxu0 0
      %2412 = vmatpush1.bf16.msra.mxu0 0
      %2413 = vmatprep.subr.bf16.mxu0 0
      %2414 = vmatpush1.bf16.msra.mxu0 0
      %2415 = vmatprep.subr.bf16.mxu0 0
      %2416 = vmatpush1.bf16.msra.mxu0 0
      %2417 = vmatprep.subr.bf16.mxu0 0
      %2418 = vmatpush1.bf16.msra.mxu0 0
      %2419 = vmatprep.subr.bf16.mxu0 0
      %2420 = vmatpush1.bf16.msra.mxu0 0
      %2421 = vmatprep.subr.bf16.mxu0 0
      %2422 = vmatpush1.bf16.msra.mxu0 0
      %2423 = vmatprep.subr.bf16.mxu0 0
      %2424 = vmatpush1.bf16.msra.mxu0 0
      %2425 = vmatprep.subr.bf16.mxu0 0
      %2426 = vmatpush1.bf16.msra.mxu0 0
      %2427 = vmatprep.mubr.bf16.mxu0 0
      %2428 = vmatmul.mubr.bf16.gmra.mrb[0].mxu0 %v1496
      %v2429 = vpop.f32.mrb[0].mxu0
      %v2430 = vadd.f32 0.0, %v2429
      %v2431 = vpop.f32.mrb[0].mxu0
      %v2432 = vpop.f32.mrb[0].mxu0
      %v2433 = vadd.f32 0.0, %v2432
      %v2434 = vpop.f32.mrb[0].mxu0
      %2435 = vmatprep.mubr.bf16.mxu0 0
      %2436 = vmatmul.mubr.bf16.gmra.mrb[0].mxu0 %v1497
      %v2437 = vpop.f32.mrb[0].mxu0
      %v2438 = vadd.f32 0.0, %v2437
      %v2439 = vpop.f32.mrb[0].mxu0
      %v2440 = vpop.f32.mrb[0].mxu0
      %v2441 = vadd.f32 0.0, %v2440
      %v2442 = vpop.f32.mrb[0].mxu0
      %2443 = vmatprep.mubr.bf16.mxu0 0
      %2444 = vmatmul.mubr.bf16.gmra.mrb[0].mxu0 %v1498
      %v2445 = vpop.f32.mrb[0].mxu0
      %v2446 = vadd.f32 0.0, %v2445
      %v2447 = vpop.f32.mrb[0].mxu0
      %v2448 = vpop.f32.mrb[0].mxu0
      %v2449 = vadd.f32 0.0, %v2448
      %v2450 = vpop.f32.mrb[0].mxu0
      %2451 = vmatprep.mubr.bf16.mxu0 0
      %2452 = vmatmul.mubr.bf16.gmra.mrb[0].mxu0 %v1499
      %v2453 = vpop.f32.mrb[0].mxu0
      %v2454 = vadd.f32 0.0, %v2453
      %v2455 = vpop.f32.mrb[0].mxu0
      %v2456 = vpop.f32.mrb[0].mxu0
      %v2457 = vadd.f32 0.0, %v2456
      %v2458 = vpop.f32.mrb[0].mxu0
      %2459 = vmatprep.mubr.bf16.mxu0 0
      %2460 = vmatmul.mubr.bf16.gmra.mrb[0].mxu0 %v1500
      %v2461 = vpop.f32.mrb[0].mxu0
      %v2462 = vadd.f32 0.0, %v2461
      %v2463 = vpop.f32.mrb[0].mxu0
      %v2464 = vpop.f32.mrb[0].mxu0
      %v2465 = vadd.f32 0.0, %v2464
      %v2466 = vpop.f32.mrb[0].mxu0
      %2467 = vmatprep.mubr.bf16.mxu0 0
      %2468 = vmatmul.mubr.bf16.gmra.mrb[0].mxu0 %v1501
      %v2469 = vpop.f32.mrb[0].mxu0
      %v2470 = vadd.f32 0.0, %v2469
      %v2471 = vpop.f32.mrb[0].mxu0
      %v2472 = vpop.f32.mrb[0].mxu0
      %v2473 = vadd.f32 0.0, %v2472
      %v2474 = vpop.f32.mrb[0].mxu0
      %2475 = vmatprep.mubr.bf16.mxu0 0
      %2476 = vmatmul.mubr.bf16.gmra.mrb[0].mxu0 %v1502
      %v2477 = vpop.f32.mrb[0].mxu0
      %v2478 = vadd.f32 0.0, %v2477
      %v2479 = vpop.f32.mrb[0].mxu0
      %v2480 = vpop.f32.mrb[0].mxu0
      %v2481 = vadd.f32 0.0, %v2480
      %v2482 = vpop.f32.mrb[0].mxu0
      %2483 = vmatprep.mubr.bf16.mxu0 0
      %2484 = vmatmul.mubr.bf16.gmra.mrb[0].mxu0 %v1503
      %v2485 = vpop.f32.mrb[0].mxu0
      %v2486 = vadd.f32 0.0, %v2485
      %v2487 = vpop.f32.mrb[0].mxu0
      %v2488 = vpop.f32.mrb[0].mxu0
      %v2489 = vadd.f32 0.0, %v2488
      %v2490 = vpop.f32.mrb[0].mxu0
      %2491 = vmatprep.mubr.bf16.mxu0 0
      %2492 = vmatmul.mubr.bf16.gmra.mrb[0].mxu0 %v1504
      %v2493 = vpop.f32.mrb[0].mxu0
      %v2494 = vadd.f32 0.0, %v2493
      %v2495 = vpop.f32.mrb[0].mxu0
      %v2496 = vpop.f32.mrb[0].mxu0
      %v2497 = vadd.f32 0.0, %v2496
      %v2498 = vpop.f32.mrb[0].mxu0
      %2499 = vmatprep.mubr.bf16.mxu0 0
      %2500 = vmatmul.mubr.bf16.gmra.mrb[0].mxu0 %v1505
      %v2501 = vpop.f32.mrb[0].mxu0
      %v2502 = vadd.f32 0.0, %v2501
      %v2503 = vpop.f32.mrb[0].mxu0
      %v2504 = vpop.f32.mrb[0].mxu0
      %v2505 = vadd.f32 0.0, %v2504
      %v2506 = vpop.f32.mrb[0].mxu0
      %2507 = vmatprep.mubr.bf16.mxu0 0
      %2508 = vmatmul.mubr.bf16.gmra.mrb[0].mxu0 %v1506
      %v2509 = vpop.f32.mrb[0].mxu0
      %v2510 = vadd.f32 0.0, %v2509
      %v2511 = vpop.f32.mrb[0].mxu0
      %v2512 = vpop.f32.mrb[0].mxu0
      %v2513 = vadd.f32 0.0, %v2512
      %v2514 = vpop.f32.mrb[0].mxu0
      %2515 = vmatprep.mubr.bf16.mxu0 0
      %2516 = vmatmul.mubr.bf16.gmra.mrb[0].mxu0 %v1507
      %v2517 = vpop.f32.mrb[0].mxu0
      %v2518 = vadd.f32 0.0, %v2517
      %v2519 = vpop.f32.mrb[0].mxu0
      %v2520 = vpop.f32.mrb[0].mxu0
      %v2521 = vadd.f32 0.0, %v2520
      %v2522 = vpop.f32.mrb[0].mxu0
      %2523 = vmatprep.mubr.bf16.mxu0 0
      %2524 = vmatmul.mubr.bf16.gmra.mrb[0].mxu0 %v1508
      %v2525 = vpop.f32.mrb[0].mxu0
      %v2526 = vadd.f32 0.0, %v2525
      %v2527 = vpop.f32.mrb[0].mxu0
      %v2528 = vpop.f32.mrb[0].mxu0
      %v2529 = vadd.f32 0.0, %v2528
      %v2530 = vpop.f32.mrb[0].mxu0
      %2531 = vmatprep.mubr.bf16.mxu0 0
      %2532 = vmatmul.mubr.bf16.gmra.mrb[0].mxu0 %v1509
      %v2533 = vpop.f32.mrb[0].mxu0
      %v2534 = vadd.f32 0.0, %v2533
      %v2535 = vpop.f32.mrb[0].mxu0
      %v2536 = vpop.f32.mrb[0].mxu0
      %v2537 = vadd.f32 0.0, %v2536
      %v2538 = vpop.f32.mrb[0].mxu0
      %2539 = vmatprep.mubr.bf16.mxu0 0
      %2540 = vmatmul.mubr.bf16.gmra.mrb[0].mxu0 %v1510
      %v2541 = vpop.f32.mrb[0].mxu0
      %v2542 = vadd.f32 0.0, %v2541
      %v2543 = vpop.f32.mrb[0].mxu0
      %v2544 = vpop.f32.mrb[0].mxu0
      %v2545 = vadd.f32 0.0, %v2544
      %v2546 = vpop.f32.mrb[0].mxu0
      %2547 = vmatprep.mubr.bf16.mxu0 0
      %2548 = vmatmul.mubr.bf16.gmra.mrb[0].mxu0 %v2345
      %v2549 = vpop.f32.mrb[0].mxu0
      %v2550 = vadd.f32 0.0, %v2549
      %v2551 = vpop.f32.mrb[0].mxu0
      %v2552 = vpop.f32.mrb[0].mxu0
      %v2553 = vadd.f32 0.0, %v2552
      %v2554 = vpop.f32.mrb[0].mxu0
      %2555 = vdwg.mxu0
      %v2556 = vadd.f32 %v2286, %v2430
      %v2557 = vadd.f32 %v2287, %v2433
      %v2558 = vadd.f32 %v2288, %v2438
      %v2559 = vadd.f32 %v2289, %v2441
      %v2560 = vadd.f32 %v2290, %v2446
      %v2561 = vadd.f32 %v2291, %v2449
      %v2562 = vadd.f32 %v2292, %v2454
      %v2563 = vadd.f32 %v2293, %v2457
      %v2564 = vadd.f32 %v2294, %v2462
      %v2565 = vadd.f32 %v2295, %v2465
      %v2566 = vadd.f32 %v2296, %v2470
      %v2567 = vadd.f32 %v2297, %v2473
      %v2568 = vadd.f32 %v2298, %v2478
      %v2569 = vadd.f32 %v2299, %v2481
      %v2570 = vadd.f32 %v2300, %v2486
      %v2571 = vadd.f32 %v2301, %v2489
      %v2572 = vadd.f32 %v2302, %v2494
      %v2573 = vadd.f32 %v2303, %v2497
      %v2574 = vadd.f32 %v2304, %v2502
      %v2575 = vadd.f32 %v2305, %v2505
      %v2576 = vadd.f32 %v2306, %v2510
      %v2577 = vadd.f32 %v2307, %v2513
      %v2578 = vadd.f32 %v2308, %v2518
      %v2579 = vadd.f32 %v2309, %v2521
      %v2580 = vadd.f32 %v2310, %v2526
      %v2581 = vadd.f32 %v2311, %v2529
      %v2582 = vadd.f32 %v2312, %v2534
      %v2583 = vadd.f32 %v2313, %v2537
      %v2584 = vadd.f32 %v2314, %v2542
      %v2585 = vadd.f32 %v2315, %v2545
      %v2586 = vadd.f32 %v2316, %v2550
      %v2587 = vadd.f32 %v2317, %v2553
      %s2588 = scalar_lea.vmem %s1, 384
      %v2589 = vld [vmem:[%s2588] sm:$0xf]
      %v2590 = vld [vmem:[%s2588 + $0x4] sm:$0xf]
      %v2591 = vld [vmem:[%s2588 + $0x8] sm:$0xf]
      %v2592 = vld [vmem:[%s2588 + $0xc] sm:$0xf]
      %v2593 = vld [vmem:[%s2588 + $0x10] sm:$0xf]
      %v2594 = vld [vmem:[%s2588 + $0x14] sm:$0xf]
      %v2595 = vld [vmem:[%s2588 + $0x18] sm:$0xf]
      %v2596 = vld [vmem:[%s2588 + $0x1c] sm:$0xf]
      %v2597 = vld [vmem:[%s2588 + $0x20] sm:$0xf]
      %v2598 = vld [vmem:[%s2588 + $0x24] sm:$0xf]
      %v2599 = vld [vmem:[%s2588 + $0x28] sm:$0xf]
      %v2600 = vld [vmem:[%s2588 + $0x2c] sm:$0xf]
      %v2601 = vld [vmem:[%s2588 + $0x30] sm:$0xf]
      %v2602 = vld [vmem:[%s2588 + $0x34] sm:$0xf]
      %v2603 = vld [vmem:[%s2588 + $0x38] sm:$0xf]
      %v2604 = vld [vmem:[%s2588 + $0x3c] sm:$0xf]
      %v2607 = vunpack.c.l.b16 %v314
      %v2608 = vunpack.c.l.b16 %v315
      %v2609 = vpack.c.b16 %v2608, %v2607
      %v2627 = vunpack.c.l.b16 %v2589
      %v2628 = vunpack.c.l.b16 %v2590
      %v2629 = vunpack.c.l.b16 %v2591
      %v2630 = vunpack.c.l.b16 %v2592
      %v2631 = vunpack.c.l.b16 %v2593
      %v2632 = vunpack.c.l.b16 %v2594
      %v2633 = vunpack.c.l.b16 %v2595
      %v2634 = vunpack.c.l.b16 %v2596
      %v2635 = vunpack.c.l.b16 %v2597
      %v2636 = vunpack.c.l.b16 %v2598
      %v2637 = vunpack.c.l.b16 %v2599
      %v2638 = vunpack.c.l.b16 %v2600
      %v2639 = vunpack.c.l.b16 %v2601
      %v2640 = vunpack.c.l.b16 %v2602
      %v2641 = vunpack.c.l.b16 %v2603
      %v2642 = vunpack.c.l.b16 %v2604
      %v2643 = vpack.c.b16 %v2628, %v2627
      %v2644 = vpack.c.b16 %v2630, %v2629
      %v2645 = vpack.c.b16 %v2632, %v2631
      %v2646 = vpack.c.b16 %v2634, %v2633
      %v2647 = vpack.c.b16 %v2636, %v2635
      %v2648 = vpack.c.b16 %v2638, %v2637
      %v2649 = vpack.c.b16 %v2640, %v2639
      %v2650 = vpack.c.b16 %v2642, %v2641
      %2659 = vmatprep.subr.bf16.mxu0 0
      %2660 = vmatpush1.bf16.msra.mxu0 %v2643
      %2661 = vmatprep.subr.bf16.mxu0 0
      %2662 = vmatpush1.bf16.msra.mxu0 %v2644
      %2663 = vmatprep.subr.bf16.mxu0 0
      %2664 = vmatpush1.bf16.msra.mxu0 %v2645
      %2665 = vmatprep.subr.bf16.mxu0 0
      %2666 = vmatpush1.bf16.msra.mxu0 %v2646
      %2667 = vmatprep.subr.bf16.mxu0 0
      %2668 = vmatpush1.bf16.msra.mxu0 %v2647
      %2669 = vmatprep.subr.bf16.mxu0 0
      %2670 = vmatpush1.bf16.msra.mxu0 %v2648
      %2671 = vmatprep.subr.bf16.mxu0 0
      %2672 = vmatpush1.bf16.msra.mxu0 %v2649
      %2673 = vmatprep.subr.bf16.mxu0 0
      %2674 = vmatpush1.bf16.msra.mxu0 %v2650
      %2675 = vmatprep.subr.bf16.mxu0 0
      %2676 = vmatpush1.bf16.msra.mxu0 0
      %2677 = vmatprep.subr.bf16.mxu0 0
      %2678 = vmatpush1.bf16.msra.mxu0 0
      %2679 = vmatprep.subr.bf16.mxu0 0
      %2680 = vmatpush1.bf16.msra.mxu0 0
      %2681 = vmatprep.subr.bf16.mxu0 0
      %2682 = vmatpush1.bf16.msra.mxu0 0
      %2683 = vmatprep.subr.bf16.mxu0 0
      %2684 = vmatpush1.bf16.msra.mxu0 0
      %2685 = vmatprep.subr.bf16.mxu0 0
      %2686 = vmatpush1.bf16.msra.mxu0 0
      %2687 = vmatprep.subr.bf16.mxu0 0
      %2688 = vmatpush1.bf16.msra.mxu0 0
      %2689 = vmatprep.subr.bf16.mxu0 0
      %2690 = vmatpush1.bf16.msra.mxu0 0
      %2691 = vmatprep.mubr.bf16.mxu0 0
      %2692 = vmatmul.mubr.bf16.gmra.mrb[0].mxu0 %v1076
      %v2693 = vpop.f32.mrb[0].mxu0
      %v2694 = vadd.f32 0.0, %v2693
      %v2695 = vpop.f32.mrb[0].mxu0
      %v2696 = vpop.f32.mrb[0].mxu0
      %v2697 = vadd.f32 0.0, %v2696
      %v2698 = vpop.f32.mrb[0].mxu0
      %2699 = vmatprep.mubr.bf16.mxu0 0
      %2700 = vmatmul.mubr.bf16.gmra.mrb[0].mxu0 %v1077
      %v2701 = vpop.f32.mrb[0].mxu0
      %v2702 = vadd.f32 0.0, %v2701
      %v2703 = vpop.f32.mrb[0].mxu0
      %v2704 = vpop.f32.mrb[0].mxu0
      %v2705 = vadd.f32 0.0, %v2704
      %v2706 = vpop.f32.mrb[0].mxu0
      %2707 = vmatprep.mubr.bf16.mxu0 0
      %2708 = vmatmul.mubr.bf16.gmra.mrb[0].mxu0 %v1078
      %v2709 = vpop.f32.mrb[0].mxu0
      %v2710 = vadd.f32 0.0, %v2709
      %v2711 = vpop.f32.mrb[0].mxu0
      %v2712 = vpop.f32.mrb[0].mxu0
      %v2713 = vadd.f32 0.0, %v2712
      %v2714 = vpop.f32.mrb[0].mxu0
      %2715 = vmatprep.mubr.bf16.mxu0 0
      %2716 = vmatmul.mubr.bf16.gmra.mrb[0].mxu0 %v1079
      %v2717 = vpop.f32.mrb[0].mxu0
      %v2718 = vadd.f32 0.0, %v2717
      %v2719 = vpop.f32.mrb[0].mxu0
      %v2720 = vpop.f32.mrb[0].mxu0
      %v2721 = vadd.f32 0.0, %v2720
      %v2722 = vpop.f32.mrb[0].mxu0
      %2723 = vmatprep.mubr.bf16.mxu0 0
      %2724 = vmatmul.mubr.bf16.gmra.mrb[0].mxu0 %v1080
      %v2725 = vpop.f32.mrb[0].mxu0
      %v2726 = vadd.f32 0.0, %v2725
      %v2727 = vpop.f32.mrb[0].mxu0
      %v2728 = vpop.f32.mrb[0].mxu0
      %v2729 = vadd.f32 0.0, %v2728
      %v2730 = vpop.f32.mrb[0].mxu0
      %2731 = vmatprep.mubr.bf16.mxu0 0
      %2732 = vmatmul.mubr.bf16.gmra.mrb[0].mxu0 %v1081
      %v2733 = vpop.f32.mrb[0].mxu0
      %v2734 = vadd.f32 0.0, %v2733
      %v2735 = vpop.f32.mrb[0].mxu0
      %v2736 = vpop.f32.mrb[0].mxu0
      %v2737 = vadd.f32 0.0, %v2736
      %v2738 = vpop.f32.mrb[0].mxu0
      %2739 = vmatprep.mubr.bf16.mxu0 0
      %2740 = vmatmul.mubr.bf16.gmra.mrb[0].mxu0 %v1082
      %v2741 = vpop.f32.mrb[0].mxu0
      %v2742 = vadd.f32 0.0, %v2741
      %v2743 = vpop.f32.mrb[0].mxu0
      %v2744 = vpop.f32.mrb[0].mxu0
      %v2745 = vadd.f32 0.0, %v2744
      %v2746 = vpop.f32.mrb[0].mxu0
      %2747 = vmatprep.mubr.bf16.mxu0 0
      %2748 = vmatmul.mubr.bf16.gmra.mrb[0].mxu0 %v1083
      %v2749 = vpop.f32.mrb[0].mxu0
      %v2750 = vadd.f32 0.0, %v2749
      %v2751 = vpop.f32.mrb[0].mxu0
      %v2752 = vpop.f32.mrb[0].mxu0
      %v2753 = vadd.f32 0.0, %v2752
      %v2754 = vpop.f32.mrb[0].mxu0
      %2755 = vmatprep.mubr.bf16.mxu0 0
      %2756 = vmatmul.mubr.bf16.gmra.mrb[0].mxu0 %v1084
      %v2757 = vpop.f32.mrb[0].mxu0
      %v2758 = vadd.f32 0.0, %v2757
      %v2759 = vpop.f32.mrb[0].mxu0
      %v2760 = vpop.f32.mrb[0].mxu0
      %v2761 = vadd.f32 0.0, %v2760
      %v2762 = vpop.f32.mrb[0].mxu0
      %2763 = vmatprep.mubr.bf16.mxu0 0
      %2764 = vmatmul.mubr.bf16.gmra.mrb[0].mxu0 %v1085
      %v2765 = vpop.f32.mrb[0].mxu0
      %v2766 = vadd.f32 0.0, %v2765
      %v2767 = vpop.f32.mrb[0].mxu0
      %v2768 = vpop.f32.mrb[0].mxu0
      %v2769 = vadd.f32 0.0, %v2768
      %v2770 = vpop.f32.mrb[0].mxu0
      %2771 = vmatprep.mubr.bf16.mxu0 0
      %2772 = vmatmul.mubr.bf16.gmra.mrb[0].mxu0 %v1086
      %v2773 = vpop.f32.mrb[0].mxu0
      %v2774 = vadd.f32 0.0, %v2773
      %v2775 = vpop.f32.mrb[0].mxu0
      %v2776 = vpop.f32.mrb[0].mxu0
      %v2777 = vadd.f32 0.0, %v2776
      %v2778 = vpop.f32.mrb[0].mxu0
      %2779 = vmatprep.mubr.bf16.mxu0 0
      %2780 = vmatmul.mubr.bf16.gmra.mrb[0].mxu0 %v1087
      %v2781 = vpop.f32.mrb[0].mxu0
      %v2782 = vadd.f32 0.0, %v2781
      %v2783 = vpop.f32.mrb[0].mxu0
      %v2784 = vpop.f32.mrb[0].mxu0
      %v2785 = vadd.f32 0.0, %v2784
      %v2786 = vpop.f32.mrb[0].mxu0
      %2787 = vmatprep.mubr.bf16.mxu0 0
      %2788 = vmatmul.mubr.bf16.gmra.mrb[0].mxu0 %v1088
      %v2789 = vpop.f32.mrb[0].mxu0
      %v2790 = vadd.f32 0.0, %v2789
      %v2791 = vpop.f32.mrb[0].mxu0
      %v2792 = vpop.f32.mrb[0].mxu0
      %v2793 = vadd.f32 0.0, %v2792
      %v2794 = vpop.f32.mrb[0].mxu0
      %2795 = vmatprep.mubr.bf16.mxu0 0
      %2796 = vmatmul.mubr.bf16.gmra.mrb[0].mxu0 %v1089
      %v2797 = vpop.f32.mrb[0].mxu0
      %v2798 = vadd.f32 0.0, %v2797
      %v2799 = vpop.f32.mrb[0].mxu0
      %v2800 = vpop.f32.mrb[0].mxu0
      %v2801 = vadd.f32 0.0, %v2800
      %v2802 = vpop.f32.mrb[0].mxu0
      %2803 = vmatprep.mubr.bf16.mxu0 0
      %2804 = vmatmul.mubr.bf16.gmra.mrb[0].mxu0 %v1789
      %v2805 = vpop.f32.mrb[0].mxu0
      %v2806 = vadd.f32 0.0, %v2805
      %v2807 = vpop.f32.mrb[0].mxu0
      %v2808 = vpop.f32.mrb[0].mxu0
      %v2809 = vadd.f32 0.0, %v2808
      %v2810 = vpop.f32.mrb[0].mxu0
      %2811 = vmatprep.mubr.bf16.mxu0 0
      %2812 = vmatmul.mubr.bf16.gmra.mrb[0].mxu0 %v2609
      %v2813 = vpop.f32.mrb[0].mxu0
      %v2814 = vadd.f32 0.0, %v2813
      %v2815 = vpop.f32.mrb[0].mxu0
      %v2816 = vpop.f32.mrb[0].mxu0
      %v2817 = vadd.f32 0.0, %v2816
      %v2818 = vpop.f32.mrb[0].mxu0
      %2819 = vdwg.mxu0
      %v2820 = vadd.f32 %v2556, %v2694
      %v2821 = vadd.f32 %v2557, %v2697
      %v2822 = vadd.f32 %v2558, %v2702
      %v2823 = vadd.f32 %v2559, %v2705
      %v2824 = vadd.f32 %v2560, %v2710
      %v2825 = vadd.f32 %v2561, %v2713
      %v2826 = vadd.f32 %v2562, %v2718
      %v2827 = vadd.f32 %v2563, %v2721
      %v2828 = vadd.f32 %v2564, %v2726
      %v2829 = vadd.f32 %v2565, %v2729
      %v2830 = vadd.f32 %v2566, %v2734
      %v2831 = vadd.f32 %v2567, %v2737
      %v2832 = vadd.f32 %v2568, %v2742
      %v2833 = vadd.f32 %v2569, %v2745
      %v2834 = vadd.f32 %v2570, %v2750
      %v2835 = vadd.f32 %v2571, %v2753
      %v2836 = vadd.f32 %v2572, %v2758
      %v2837 = vadd.f32 %v2573, %v2761
      %v2838 = vadd.f32 %v2574, %v2766
      %v2839 = vadd.f32 %v2575, %v2769
      %v2840 = vadd.f32 %v2576, %v2774
      %v2841 = vadd.f32 %v2577, %v2777
      %v2842 = vadd.f32 %v2578, %v2782
      %v2843 = vadd.f32 %v2579, %v2785
      %v2844 = vadd.f32 %v2580, %v2790
      %v2845 = vadd.f32 %v2581, %v2793
      %v2846 = vadd.f32 %v2582, %v2798
      %v2847 = vadd.f32 %v2583, %v2801
      %v2848 = vadd.f32 %v2584, %v2806
      %v2849 = vadd.f32 %v2585, %v2809
      %v2850 = vadd.f32 %v2586, %v2814
      %v2851 = vadd.f32 %v2587, %v2817
      %v2853 = vshrl.u32 %v314, 16
      %v2855 = vrot.slane %v2853, 4
      %v2856 = vshll.u32 %v314, 16
      %v2858 = vrot.slane %v2856, 5
      %v2859 = vor.u32 %v2855, %v2858
      %v2860 = vrot.slane %v2859, 4
      %v2862 = vshll.u32 %v315, 16
      %v2864 = vrot.slane %v2862, 5
      %v2865 = vsel %vm335, %v2860, %v2864
      %v2866 = vshrl.u32 %v315, 16
      %v2868 = vrot.slane %v2866, 4
      %v2869 = vor.u32 %v2868, %v2864
      %v2870 = vrot.slane %v2869, 4
      %v2872 = vshll.u32 %v316, 16
      %v2874 = vrot.slane %v2872, 5
      %v2875 = vsel %vm335, %v2870, %v2874
      %s2876 = scalar_lea.vmem %s1, 448
      %v2877 = vld [vmem:[%s2876] sm:$0xf]
      %v2878 = vld [vmem:[%s2876 + $0x4] sm:$0xf]
      %v2879 = vld [vmem:[%s2876 + $0x8] sm:$0xf]
      %v2880 = vld [vmem:[%s2876 + $0xc] sm:$0xf]
      %v2881 = vld [vmem:[%s2876 + $0x10] sm:$0xf]
      %v2882 = vld [vmem:[%s2876 + $0x14] sm:$0xf]
      %v2883 = vld [vmem:[%s2876 + $0x18] sm:$0xf]
      %v2884 = vld [vmem:[%s2876 + $0x1c] sm:$0xf]
      %v2885 = vld [vmem:[%s2876 + $0x20] sm:$0xf]
      %v2886 = vld [vmem:[%s2876 + $0x24] sm:$0xf]
      %v2887 = vld [vmem:[%s2876 + $0x28] sm:$0xf]
      %v2888 = vld [vmem:[%s2876 + $0x2c] sm:$0xf]
      %v2889 = vld [vmem:[%s2876 + $0x30] sm:$0xf]
      %v2890 = vld [vmem:[%s2876 + $0x34] sm:$0xf]
      %v2891 = vld [vmem:[%s2876 + $0x38] sm:$0xf]
      %v2892 = vld [vmem:[%s2876 + $0x3c] sm:$0xf]
      %v2893 = vunpack.c.l.b16 %v2865
      %v2894 = vunpack.c.l.b16 %v2875
      %v2895 = vpack.c.b16 %v2894, %v2893
      %v2913 = vunpack.c.l.b16 %v2877
      %v2914 = vunpack.c.l.b16 %v2878
      %v2915 = vunpack.c.l.b16 %v2879
      %v2916 = vunpack.c.l.b16 %v2880
      %v2917 = vunpack.c.l.b16 %v2881
      %v2918 = vunpack.c.l.b16 %v2882
      %v2919 = vunpack.c.l.b16 %v2883
      %v2920 = vunpack.c.l.b16 %v2884
      %v2921 = vunpack.c.l.b16 %v2885
      %v2922 = vunpack.c.l.b16 %v2886
      %v2923 = vunpack.c.l.b16 %v2887
      %v2924 = vunpack.c.l.b16 %v2888
      %v2925 = vunpack.c.l.b16 %v2889
      %v2926 = vunpack.c.l.b16 %v2890
      %v2927 = vunpack.c.l.b16 %v2891
      %v2928 = vunpack.c.l.b16 %v2892
      %v2929 = vpack.c.b16 %v2914, %v2913
      %v2930 = vpack.c.b16 %v2916, %v2915
      %v2931 = vpack.c.b16 %v2918, %v2917
      %v2932 = vpack.c.b16 %v2920, %v2919
      %v2933 = vpack.c.b16 %v2922, %v2921
      %v2934 = vpack.c.b16 %v2924, %v2923
      %v2935 = vpack.c.b16 %v2926, %v2925
      %v2936 = vpack.c.b16 %v2928, %v2927
      %2945 = vmatprep.subr.bf16.mxu0 0
      %2946 = vmatpush1.bf16.msra.mxu0 %v2929
      %2947 = vmatprep.subr.bf16.mxu0 0
      %2948 = vmatpush1.bf16.msra.mxu0 %v2930
      %2949 = vmatprep.subr.bf16.mxu0 0
      %2950 = vmatpush1.bf16.msra.mxu0 %v2931
      %2951 = vmatprep.subr.bf16.mxu0 0
      %2952 = vmatpush1.bf16.msra.mxu0 %v2932
      %2953 = vmatprep.subr.bf16.mxu0 0
      %2954 = vmatpush1.bf16.msra.mxu0 %v2933
      %2955 = vmatprep.subr.bf16.mxu0 0
      %2956 = vmatpush1.bf16.msra.mxu0 %v2934
      %2957 = vmatprep.subr.bf16.mxu0 0
      %2958 = vmatpush1.bf16.msra.mxu0 %v2935
      %2959 = vmatprep.subr.bf16.mxu0 0
      %2960 = vmatpush1.bf16.msra.mxu0 %v2936
      %2961 = vmatprep.subr.bf16.mxu0 0
      %2962 = vmatpush1.bf16.msra.mxu0 0
      %2963 = vmatprep.subr.bf16.mxu0 0
      %2964 = vmatpush1.bf16.msra.mxu0 0
      %2965 = vmatprep.subr.bf16.mxu0 0
      %2966 = vmatpush1.bf16.msra.mxu0 0
      %2967 = vmatprep.subr.bf16.mxu0 0
      %2968 = vmatpush1.bf16.msra.mxu0 0
      %2969 = vmatprep.subr.bf16.mxu0 0
      %2970 = vmatpush1.bf16.msra.mxu0 0
      %2971 = vmatprep.subr.bf16.mxu0 0
      %2972 = vmatpush1.bf16.msra.mxu0 0
      %2973 = vmatprep.subr.bf16.mxu0 0
      %2974 = vmatpush1.bf16.msra.mxu0 0
      %2975 = vmatprep.subr.bf16.mxu0 0
      %2976 = vmatpush1.bf16.msra.mxu0 0
      %2977 = vmatprep.mubr.bf16.mxu0 0
      %2978 = vmatmul.mubr.bf16.gmra.mrb[0].mxu0 %v771
      %v2979 = vpop.f32.mrb[0].mxu0
      %v2980 = vadd.f32 0.0, %v2979
      %v2981 = vpop.f32.mrb[0].mxu0
      %v2982 = vpop.f32.mrb[0].mxu0
      %v2983 = vadd.f32 0.0, %v2982
      %v2984 = vpop.f32.mrb[0].mxu0
      %2985 = vmatprep.mubr.bf16.mxu0 0
      %2986 = vmatmul.mubr.bf16.gmra.mrb[0].mxu0 %v772
      %v2987 = vpop.f32.mrb[0].mxu0
      %v2988 = vadd.f32 0.0, %v2987
      %v2989 = vpop.f32.mrb[0].mxu0
      %v2990 = vpop.f32.mrb[0].mxu0
      %v2991 = vadd.f32 0.0, %v2990
      %v2992 = vpop.f32.mrb[0].mxu0
      %2993 = vmatprep.mubr.bf16.mxu0 0
      %2994 = vmatmul.mubr.bf16.gmra.mrb[0].mxu0 %v773
      %v2995 = vpop.f32.mrb[0].mxu0
      %v2996 = vadd.f32 0.0, %v2995
      %v2997 = vpop.f32.mrb[0].mxu0
      %v2998 = vpop.f32.mrb[0].mxu0
      %v2999 = vadd.f32 0.0, %v2998
      %v3000 = vpop.f32.mrb[0].mxu0
      %3001 = vmatprep.mubr.bf16.mxu0 0
      %3002 = vmatmul.mubr.bf16.gmra.mrb[0].mxu0 %v774
      %v3003 = vpop.f32.mrb[0].mxu0
      %v3004 = vadd.f32 0.0, %v3003
      %v3005 = vpop.f32.mrb[0].mxu0
      %v3006 = vpop.f32.mrb[0].mxu0
      %v3007 = vadd.f32 0.0, %v3006
      %v3008 = vpop.f32.mrb[0].mxu0
      %3009 = vmatprep.mubr.bf16.mxu0 0
      %3010 = vmatmul.mubr.bf16.gmra.mrb[0].mxu0 %v775
      %v3011 = vpop.f32.mrb[0].mxu0
      %v3012 = vadd.f32 0.0, %v3011
      %v3013 = vpop.f32.mrb[0].mxu0
      %v3014 = vpop.f32.mrb[0].mxu0
      %v3015 = vadd.f32 0.0, %v3014
      %v3016 = vpop.f32.mrb[0].mxu0
      %3017 = vmatprep.mubr.bf16.mxu0 0
      %3018 = vmatmul.mubr.bf16.gmra.mrb[0].mxu0 %v776
      %v3019 = vpop.f32.mrb[0].mxu0
      %v3020 = vadd.f32 0.0, %v3019
      %v3021 = vpop.f32.mrb[0].mxu0
      %v3022 = vpop.f32.mrb[0].mxu0
      %v3023 = vadd.f32 0.0, %v3022
      %v3024 = vpop.f32.mrb[0].mxu0
      %3025 = vmatprep.mubr.bf16.mxu0 0
      %3026 = vmatmul.mubr.bf16.gmra.mrb[0].mxu0 %v777
      %v3027 = vpop.f32.mrb[0].mxu0
      %v3028 = vadd.f32 0.0, %v3027
      %v3029 = vpop.f32.mrb[0].mxu0
      %v3030 = vpop.f32.mrb[0].mxu0
      %v3031 = vadd.f32 0.0, %v3030
      %v3032 = vpop.f32.mrb[0].mxu0
      %3033 = vmatprep.mubr.bf16.mxu0 0
      %3034 = vmatmul.mubr.bf16.gmra.mrb[0].mxu0 %v778
      %v3035 = vpop.f32.mrb[0].mxu0
      %v3036 = vadd.f32 0.0, %v3035
      %v3037 = vpop.f32.mrb[0].mxu0
      %v3038 = vpop.f32.mrb[0].mxu0
      %v3039 = vadd.f32 0.0, %v3038
      %v3040 = vpop.f32.mrb[0].mxu0
      %3041 = vmatprep.mubr.bf16.mxu0 0
      %3042 = vmatmul.mubr.bf16.gmra.mrb[0].mxu0 %v779
      %v3043 = vpop.f32.mrb[0].mxu0
      %v3044 = vadd.f32 0.0, %v3043
      %v3045 = vpop.f32.mrb[0].mxu0
      %v3046 = vpop.f32.mrb[0].mxu0
      %v3047 = vadd.f32 0.0, %v3046
      %v3048 = vpop.f32.mrb[0].mxu0
      %3049 = vmatprep.mubr.bf16.mxu0 0
      %3050 = vmatmul.mubr.bf16.gmra.mrb[0].mxu0 %v780
      %v3051 = vpop.f32.mrb[0].mxu0
      %v3052 = vadd.f32 0.0, %v3051
      %v3053 = vpop.f32.mrb[0].mxu0
      %v3054 = vpop.f32.mrb[0].mxu0
      %v3055 = vadd.f32 0.0, %v3054
      %v3056 = vpop.f32.mrb[0].mxu0
      %3057 = vmatprep.mubr.bf16.mxu0 0
      %3058 = vmatmul.mubr.bf16.gmra.mrb[0].mxu0 %v781
      %v3059 = vpop.f32.mrb[0].mxu0
      %v3060 = vadd.f32 0.0, %v3059
      %v3061 = vpop.f32.mrb[0].mxu0
      %v3062 = vpop.f32.mrb[0].mxu0
      %v3063 = vadd.f32 0.0, %v3062
      %v3064 = vpop.f32.mrb[0].mxu0
      %3065 = vmatprep.mubr.bf16.mxu0 0
      %3066 = vmatmul.mubr.bf16.gmra.mrb[0].mxu0 %v782
      %v3067 = vpop.f32.mrb[0].mxu0
      %v3068 = vadd.f32 0.0, %v3067
      %v3069 = vpop.f32.mrb[0].mxu0
      %v3070 = vpop.f32.mrb[0].mxu0
      %v3071 = vadd.f32 0.0, %v3070
      %v3072 = vpop.f32.mrb[0].mxu0
      %3073 = vmatprep.mubr.bf16.mxu0 0
      %3074 = vmatmul.mubr.bf16.gmra.mrb[0].mxu0 %v783
      %v3075 = vpop.f32.mrb[0].mxu0
      %v3076 = vadd.f32 0.0, %v3075
      %v3077 = vpop.f32.mrb[0].mxu0
      %v3078 = vpop.f32.mrb[0].mxu0
      %v3079 = vadd.f32 0.0, %v3078
      %v3080 = vpop.f32.mrb[0].mxu0
      %3081 = vmatprep.mubr.bf16.mxu0 0
      %3082 = vmatmul.mubr.bf16.gmra.mrb[0].mxu0 %v784
      %v3083 = vpop.f32.mrb[0].mxu0
      %v3084 = vadd.f32 0.0, %v3083
      %v3085 = vpop.f32.mrb[0].mxu0
      %v3086 = vpop.f32.mrb[0].mxu0
      %v3087 = vadd.f32 0.0, %v3086
      %v3088 = vpop.f32.mrb[0].mxu0
      %3089 = vmatprep.mubr.bf16.mxu0 0
      %3090 = vmatmul.mubr.bf16.gmra.mrb[0].mxu0 %v2075
      %v3091 = vpop.f32.mrb[0].mxu0
      %v3092 = vadd.f32 0.0, %v3091
      %v3093 = vpop.f32.mrb[0].mxu0
      %v3094 = vpop.f32.mrb[0].mxu0
      %v3095 = vadd.f32 0.0, %v3094
      %v3096 = vpop.f32.mrb[0].mxu0
      %3097 = vmatprep.mubr.bf16.mxu0 0
      %3098 = vmatmul.mubr.bf16.gmra.mrb[0].mxu0 %v2895
      %v3099 = vpop.f32.mrb[0].mxu0
      %v3100 = vadd.f32 0.0, %v3099
      %v3101 = vpop.f32.mrb[0].mxu0
      %v3102 = vpop.f32.mrb[0].mxu0
      %v3103 = vadd.f32 0.0, %v3102
      %v3104 = vpop.f32.mrb[0].mxu0
      %3105 = vdwg.mxu0
      %v3106 = vadd.f32 %v2820, %v2980
      %v3107 = vadd.f32 %v2821, %v2983
      %v3108 = vadd.f32 %v2822, %v2988
      %v3109 = vadd.f32 %v2823, %v2991
      %v3110 = vadd.f32 %v2824, %v2996
      %v3111 = vadd.f32 %v2825, %v2999
      %v3112 = vadd.f32 %v2826, %v3004
      %v3113 = vadd.f32 %v2827, %v3007
      %v3114 = vadd.f32 %v2828, %v3012
      %v3115 = vadd.f32 %v2829, %v3015
      %v3116 = vadd.f32 %v2830, %v3020
      %v3117 = vadd.f32 %v2831, %v3023
      %v3118 = vadd.f32 %v2832, %v3028
      %v3119 = vadd.f32 %v2833, %v3031
      %v3120 = vadd.f32 %v2834, %v3036
      %v3121 = vadd.f32 %v2835, %v3039
      %v3122 = vadd.f32 %v2836, %v3044
      %v3123 = vadd.f32 %v2837, %v3047
      %v3124 = vadd.f32 %v2838, %v3052
      %v3125 = vadd.f32 %v2839, %v3055
      %v3126 = vadd.f32 %v2840, %v3060
      %v3127 = vadd.f32 %v2841, %v3063
      %v3128 = vadd.f32 %v2842, %v3068
      %v3129 = vadd.f32 %v2843, %v3071
      %v3130 = vadd.f32 %v2844, %v3076
      %v3131 = vadd.f32 %v2845, %v3079
      %v3132 = vadd.f32 %v2846, %v3084
      %v3133 = vadd.f32 %v2847, %v3087
      %v3134 = vadd.f32 %v2848, %v3092
      %v3135 = vadd.f32 %v2849, %v3095
      %v3136 = vadd.f32 %v2850, %v3100
      %v3137 = vadd.f32 %v2851, %v3103
      %v3139 = vrot.slane %v314, 5
      %v3140 = vrot.slane %v3139, 4
      %v3141 = vrot.slane %v315, 5
      %v3142 = vsel %vm1333, %v3140, %v3141
      %v3143 = vrot.slane %v3141, 4
      %v3144 = vrot.slane %v316, 5
      %v3145 = vsel %vm1333, %v3143, %v3144
      %s3146 = scalar_lea.vmem %s1, 512
      %v3147 = vld [vmem:[%s3146] sm:$0xf]
      %v3148 = vld [vmem:[%s3146 + $0x4] sm:$0xf]
      %v3149 = vld [vmem:[%s3146 + $0x8] sm:$0xf]
      %v3150 = vld [vmem:[%s3146 + $0xc] sm:$0xf]
      %v3151 = vld [vmem:[%s3146 + $0x10] sm:$0xf]
      %v3152 = vld [vmem:[%s3146 + $0x14] sm:$0xf]
      %v3153 = vld [vmem:[%s3146 + $0x18] sm:$0xf]
      %v3154 = vld [vmem:[%s3146 + $0x1c] sm:$0xf]
      %v3155 = vld [vmem:[%s3146 + $0x20] sm:$0xf]
      %v3156 = vld [vmem:[%s3146 + $0x24] sm:$0xf]
      %v3157 = vld [vmem:[%s3146 + $0x28] sm:$0xf]
      %v3158 = vld [vmem:[%s3146 + $0x2c] sm:$0xf]
      %v3159 = vld [vmem:[%s3146 + $0x30] sm:$0xf]
      %v3160 = vld [vmem:[%s3146 + $0x34] sm:$0xf]
      %v3161 = vld [vmem:[%s3146 + $0x38] sm:$0xf]
      %v3162 = vld [vmem:[%s3146 + $0x3c] sm:$0xf]
      %v3163 = vunpack.c.l.b16 %v3142
      %v3164 = vunpack.c.l.b16 %v3145
      %v3165 = vpack.c.b16 %v3164, %v3163
      %v3183 = vunpack.c.l.b16 %v3147
      %v3184 = vunpack.c.l.b16 %v3148
      %v3185 = vunpack.c.l.b16 %v3149
      %v3186 = vunpack.c.l.b16 %v3150
      %v3187 = vunpack.c.l.b16 %v3151
      %v3188 = vunpack.c.l.b16 %v3152
      %v3189 = vunpack.c.l.b16 %v3153
      %v3190 = vunpack.c.l.b16 %v3154
      %v3191 = vunpack.c.l.b16 %v3155
      %v3192 = vunpack.c.l.b16 %v3156
      %v3193 = vunpack.c.l.b16 %v3157
      %v3194 = vunpack.c.l.b16 %v3158
      %v3195 = vunpack.c.l.b16 %v3159
      %v3196 = vunpack.c.l.b16 %v3160
      %v3197 = vunpack.c.l.b16 %v3161
      %v3198 = vunpack.c.l.b16 %v3162
      %v3199 = vpack.c.b16 %v3184, %v3183
      %v3200 = vpack.c.b16 %v3186, %v3185
      %v3201 = vpack.c.b16 %v3188, %v3187
      %v3202 = vpack.c.b16 %v3190, %v3189
      %v3203 = vpack.c.b16 %v3192, %v3191
      %v3204 = vpack.c.b16 %v3194, %v3193
      %v3205 = vpack.c.b16 %v3196, %v3195
      %v3206 = vpack.c.b16 %v3198, %v3197
      %3215 = vmatprep.subr.bf16.mxu0 0
      %3216 = vmatpush1.bf16.msra.mxu0 %v3199
      %3217 = vmatprep.subr.bf16.mxu0 0
      %3218 = vmatpush1.bf16.msra.mxu0 %v3200
      %3219 = vmatprep.subr.bf16.mxu0 0
      %3220 = vmatpush1.bf16.msra.mxu0 %v3201
      %3221 = vmatprep.subr.bf16.mxu0 0
      %3222 = vmatpush1.bf16.msra.mxu0 %v3202
      %3223 = vmatprep.subr.bf16.mxu0 0
      %3224 = vmatpush1.bf16.msra.mxu0 %v3203
      %3225 = vmatprep.subr.bf16.mxu0 0
      %3226 = vmatpush1.bf16.msra.mxu0 %v3204
      %3227 = vmatprep.subr.bf16.mxu0 0
      %3228 = vmatpush1.bf16.msra.mxu0 %v3205
      %3229 = vmatprep.subr.bf16.mxu0 0
      %3230 = vmatpush1.bf16.msra.mxu0 %v3206
      %3231 = vmatprep.subr.bf16.mxu0 0
      %3232 = vmatpush1.bf16.msra.mxu0 0
      %3233 = vmatprep.subr.bf16.mxu0 0
      %3234 = vmatpush1.bf16.msra.mxu0 0
      %3235 = vmatprep.subr.bf16.mxu0 0
      %3236 = vmatpush1.bf16.msra.mxu0 0
      %3237 = vmatprep.subr.bf16.mxu0 0
      %3238 = vmatpush1.bf16.msra.mxu0 0
      %3239 = vmatprep.subr.bf16.mxu0 0
      %3240 = vmatpush1.bf16.msra.mxu0 0
      %3241 = vmatprep.subr.bf16.mxu0 0
      %3242 = vmatpush1.bf16.msra.mxu0 0
      %3243 = vmatprep.subr.bf16.mxu0 0
      %3244 = vmatpush1.bf16.msra.mxu0 0
      %3245 = vmatprep.subr.bf16.mxu0 0
      %3246 = vmatpush1.bf16.msra.mxu0 0
      %3247 = vmatprep.mubr.bf16.mxu0 0
      %3248 = vmatmul.mubr.bf16.gmra.mrb[0].mxu0 %v1497
      %v3249 = vpop.f32.mrb[0].mxu0
      %v3250 = vadd.f32 0.0, %v3249
      %v3251 = vpop.f32.mrb[0].mxu0
      %v3252 = vpop.f32.mrb[0].mxu0
      %v3253 = vadd.f32 0.0, %v3252
      %v3254 = vpop.f32.mrb[0].mxu0
      %3255 = vmatprep.mubr.bf16.mxu0 0
      %3256 = vmatmul.mubr.bf16.gmra.mrb[0].mxu0 %v1498
      %v3257 = vpop.f32.mrb[0].mxu0
      %v3258 = vadd.f32 0.0, %v3257
      %v3259 = vpop.f32.mrb[0].mxu0
      %v3260 = vpop.f32.mrb[0].mxu0
      %v3261 = vadd.f32 0.0, %v3260
      %v3262 = vpop.f32.mrb[0].mxu0
      %3263 = vmatprep.mubr.bf16.mxu0 0
      %3264 = vmatmul.mubr.bf16.gmra.mrb[0].mxu0 %v1499
      %v3265 = vpop.f32.mrb[0].mxu0
      %v3266 = vadd.f32 0.0, %v3265
      %v3267 = vpop.f32.mrb[0].mxu0
      %v3268 = vpop.f32.mrb[0].mxu0
      %v3269 = vadd.f32 0.0, %v3268
      %v3270 = vpop.f32.mrb[0].mxu0
      %3271 = vmatprep.mubr.bf16.mxu0 0
      %3272 = vmatmul.mubr.bf16.gmra.mrb[0].mxu0 %v1500
      %v3273 = vpop.f32.mrb[0].mxu0
      %v3274 = vadd.f32 0.0, %v3273
      %v3275 = vpop.f32.mrb[0].mxu0
      %v3276 = vpop.f32.mrb[0].mxu0
      %v3277 = vadd.f32 0.0, %v3276
      %v3278 = vpop.f32.mrb[0].mxu0
      %3279 = vmatprep.mubr.bf16.mxu0 0
      %3280 = vmatmul.mubr.bf16.gmra.mrb[0].mxu0 %v1501
      %v3281 = vpop.f32.mrb[0].mxu0
      %v3282 = vadd.f32 0.0, %v3281
      %v3283 = vpop.f32.mrb[0].mxu0
      %v3284 = vpop.f32.mrb[0].mxu0
      %v3285 = vadd.f32 0.0, %v3284
      %v3286 = vpop.f32.mrb[0].mxu0
      %3287 = vmatprep.mubr.bf16.mxu0 0
      %3288 = vmatmul.mubr.bf16.gmra.mrb[0].mxu0 %v1502
      %v3289 = vpop.f32.mrb[0].mxu0
      %v3290 = vadd.f32 0.0, %v3289
      %v3291 = vpop.f32.mrb[0].mxu0
      %v3292 = vpop.f32.mrb[0].mxu0
      %v3293 = vadd.f32 0.0, %v3292
      %v3294 = vpop.f32.mrb[0].mxu0
      %3295 = vmatprep.mubr.bf16.mxu0 0
      %3296 = vmatmul.mubr.bf16.gmra.mrb[0].mxu0 %v1503
      %v3297 = vpop.f32.mrb[0].mxu0
      %v3298 = vadd.f32 0.0, %v3297
      %v3299 = vpop.f32.mrb[0].mxu0
      %v3300 = vpop.f32.mrb[0].mxu0
      %v3301 = vadd.f32 0.0, %v3300
      %v3302 = vpop.f32.mrb[0].mxu0
      %3303 = vmatprep.mubr.bf16.mxu0 0
      %3304 = vmatmul.mubr.bf16.gmra.mrb[0].mxu0 %v1504
      %v3305 = vpop.f32.mrb[0].mxu0
      %v3306 = vadd.f32 0.0, %v3305
      %v3307 = vpop.f32.mrb[0].mxu0
      %v3308 = vpop.f32.mrb[0].mxu0
      %v3309 = vadd.f32 0.0, %v3308
      %v3310 = vpop.f32.mrb[0].mxu0
      %3311 = vmatprep.mubr.bf16.mxu0 0
      %3312 = vmatmul.mubr.bf16.gmra.mrb[0].mxu0 %v1505
      %v3313 = vpop.f32.mrb[0].mxu0
      %v3314 = vadd.f32 0.0, %v3313
      %v3315 = vpop.f32.mrb[0].mxu0
      %v3316 = vpop.f32.mrb[0].mxu0
      %v3317 = vadd.f32 0.0, %v3316
      %v3318 = vpop.f32.mrb[0].mxu0
      %3319 = vmatprep.mubr.bf16.mxu0 0
      %3320 = vmatmul.mubr.bf16.gmra.mrb[0].mxu0 %v1506
      %v3321 = vpop.f32.mrb[0].mxu0
      %v3322 = vadd.f32 0.0, %v3321
      %v3323 = vpop.f32.mrb[0].mxu0
      %v3324 = vpop.f32.mrb[0].mxu0
      %v3325 = vadd.f32 0.0, %v3324
      %v3326 = vpop.f32.mrb[0].mxu0
      %3327 = vmatprep.mubr.bf16.mxu0 0
      %3328 = vmatmul.mubr.bf16.gmra.mrb[0].mxu0 %v1507
      %v3329 = vpop.f32.mrb[0].mxu0
      %v3330 = vadd.f32 0.0, %v3329
      %v3331 = vpop.f32.mrb[0].mxu0
      %v3332 = vpop.f32.mrb[0].mxu0
      %v3333 = vadd.f32 0.0, %v3332
      %v3334 = vpop.f32.mrb[0].mxu0
      %3335 = vmatprep.mubr.bf16.mxu0 0
      %3336 = vmatmul.mubr.bf16.gmra.mrb[0].mxu0 %v1508
      %v3337 = vpop.f32.mrb[0].mxu0
      %v3338 = vadd.f32 0.0, %v3337
      %v3339 = vpop.f32.mrb[0].mxu0
      %v3340 = vpop.f32.mrb[0].mxu0
      %v3341 = vadd.f32 0.0, %v3340
      %v3342 = vpop.f32.mrb[0].mxu0
      %3343 = vmatprep.mubr.bf16.mxu0 0
      %3344 = vmatmul.mubr.bf16.gmra.mrb[0].mxu0 %v1509
      %v3345 = vpop.f32.mrb[0].mxu0
      %v3346 = vadd.f32 0.0, %v3345
      %v3347 = vpop.f32.mrb[0].mxu0
      %v3348 = vpop.f32.mrb[0].mxu0
      %v3349 = vadd.f32 0.0, %v3348
      %v3350 = vpop.f32.mrb[0].mxu0
      %3351 = vmatprep.mubr.bf16.mxu0 0
      %3352 = vmatmul.mubr.bf16.gmra.mrb[0].mxu0 %v1510
      %v3353 = vpop.f32.mrb[0].mxu0
      %v3354 = vadd.f32 0.0, %v3353
      %v3355 = vpop.f32.mrb[0].mxu0
      %v3356 = vpop.f32.mrb[0].mxu0
      %v3357 = vadd.f32 0.0, %v3356
      %v3358 = vpop.f32.mrb[0].mxu0
      %3359 = vmatprep.mubr.bf16.mxu0 0
      %3360 = vmatmul.mubr.bf16.gmra.mrb[0].mxu0 %v2345
      %v3361 = vpop.f32.mrb[0].mxu0
      %v3362 = vadd.f32 0.0, %v3361
      %v3363 = vpop.f32.mrb[0].mxu0
      %v3364 = vpop.f32.mrb[0].mxu0
      %v3365 = vadd.f32 0.0, %v3364
      %v3366 = vpop.f32.mrb[0].mxu0
      %3367 = vmatprep.mubr.bf16.mxu0 0
      %3368 = vmatmul.mubr.bf16.gmra.mrb[0].mxu0 %v3165
      %v3369 = vpop.f32.mrb[0].mxu0
      %v3370 = vadd.f32 0.0, %v3369
      %v3371 = vpop.f32.mrb[0].mxu0
      %v3372 = vpop.f32.mrb[0].mxu0
      %v3373 = vadd.f32 0.0, %v3372
      %v3374 = vpop.f32.mrb[0].mxu0
      %3375 = vdwg.mxu0
      %v3376 = vadd.f32 %v3106, %v3250
      %v3377 = vadd.f32 %v3107, %v3253
      %v3378 = vadd.f32 %v3108, %v3258
      %v3379 = vadd.f32 %v3109, %v3261
      %v3380 = vadd.f32 %v3110, %v3266
      %v3381 = vadd.f32 %v3111, %v3269
      %v3382 = vadd.f32 %v3112, %v3274
      %v3383 = vadd.f32 %v3113, %v3277
      %v3384 = vadd.f32 %v3114, %v3282
      %v3385 = vadd.f32 %v3115, %v3285
      %v3386 = vadd.f32 %v3116, %v3290
      %v3387 = vadd.f32 %v3117, %v3293
      %v3388 = vadd.f32 %v3118, %v3298
      %v3389 = vadd.f32 %v3119, %v3301
      %v3390 = vadd.f32 %v3120, %v3306
      %v3391 = vadd.f32 %v3121, %v3309
      %v3392 = vadd.f32 %v3122, %v3314
      %v3393 = vadd.f32 %v3123, %v3317
      %v3394 = vadd.f32 %v3124, %v3322
      %v3395 = vadd.f32 %v3125, %v3325
      %v3396 = vadd.f32 %v3126, %v3330
      %v3397 = vadd.f32 %v3127, %v3333
      %v3398 = vadd.f32 %v3128, %v3338
      %v3399 = vadd.f32 %v3129, %v3341
      %v3400 = vadd.f32 %v3130, %v3346
      %v3401 = vadd.f32 %v3131, %v3349
      %v3402 = vadd.f32 %v3132, %v3354
      %v3403 = vadd.f32 %v3133, %v3357
      %v3404 = vadd.f32 %v3134, %v3362
      %v3405 = vadd.f32 %v3135, %v3365
      %v3406 = vadd.f32 %v3136, %v3370
      %v3407 = vadd.f32 %v3137, %v3373
      %v3408 = vpack.c.bf16 %v3377, %v3376
      %v3409 = vpack.c.bf16 %v3379, %v3378
      %v3410 = vpack.c.bf16 %v3381, %v3380
      %v3411 = vpack.c.bf16 %v3383, %v3382
      %v3412 = vpack.c.bf16 %v3385, %v3384
      %v3413 = vpack.c.bf16 %v3387, %v3386
      %v3414 = vpack.c.bf16 %v3389, %v3388
      %v3415 = vpack.c.bf16 %v3391, %v3390
      %v3416 = vpack.c.bf16 %v3393, %v3392
      %v3417 = vpack.c.bf16 %v3395, %v3394
      %v3418 = vpack.c.bf16 %v3397, %v3396
      %v3419 = vpack.c.bf16 %v3399, %v3398
      %v3420 = vpack.c.bf16 %v3401, %v3400
      %v3421 = vpack.c.bf16 %v3403, %v3402
      %v3422 = vpack.c.bf16 %v3405, %v3404
      %v3423 = vpack.c.bf16 %v3407, %v3406
      %v3440 = vunpack.c.l.b16 %v3408
      %v3441 = vunpack.c.h.b16 %v3408
      %v3442 = vunpack.c.l.b16 %v3409
      %v3443 = vunpack.c.h.b16 %v3409
      %v3444 = vunpack.c.l.b16 %v3410
      %v3445 = vunpack.c.h.b16 %v3410
      %v3446 = vunpack.c.l.b16 %v3411
      %v3447 = vunpack.c.h.b16 %v3411
      %v3448 = vunpack.c.l.b16 %v3412
      %v3449 = vunpack.c.h.b16 %v3412
      %v3450 = vunpack.c.l.b16 %v3413
      %v3451 = vunpack.c.h.b16 %v3413
      %v3452 = vunpack.c.l.b16 %v3414
      %v3453 = vunpack.c.h.b16 %v3414
      %v3454 = vunpack.c.l.b16 %v3415
      %v3455 = vunpack.c.h.b16 %v3415
      %v3456 = vunpack.c.l.b16 %v3416
      %v3457 = vunpack.c.h.b16 %v3416
      %v3458 = vunpack.c.l.b16 %v3417
      %v3459 = vunpack.c.h.b16 %v3417
      %v3460 = vunpack.c.l.b16 %v3418
      %v3461 = vunpack.c.h.b16 %v3418
      %v3462 = vunpack.c.l.b16 %v3419
      %v3463 = vunpack.c.h.b16 %v3419
      %v3464 = vunpack.c.l.b16 %v3420
      %v3465 = vunpack.c.h.b16 %v3420
      %v3466 = vunpack.c.l.b16 %v3421
      %v3467 = vunpack.c.h.b16 %v3421
      %v3468 = vunpack.c.l.b16 %v3422
      %v3469 = vunpack.c.h.b16 %v3422
      %v3470 = vunpack.c.l.b16 %v3423
      %v3471 = vunpack.c.h.b16 %v3423
      %v3472 = vpack.c.b16 %v3440, %v3440
      %v3473 = vpack.c.b16 %v3441, %v3441
      %v3474 = vpack.c.b16 %v3442, %v3442
      %v3475 = vpack.c.b16 %v3443, %v3443
      %v3476 = vpack.c.b16 %v3444, %v3444
      %v3477 = vpack.c.b16 %v3445, %v3445
      %v3478 = vpack.c.b16 %v3446, %v3446
      %v3479 = vpack.c.b16 %v3447, %v3447
      %v3480 = vpack.c.b16 %v3448, %v3448
      %v3481 = vpack.c.b16 %v3449, %v3449
      %v3482 = vpack.c.b16 %v3450, %v3450
      %v3483 = vpack.c.b16 %v3451, %v3451
      %v3484 = vpack.c.b16 %v3452, %v3452
      %v3485 = vpack.c.b16 %v3453, %v3453
      %v3486 = vpack.c.b16 %v3454, %v3454
      %v3487 = vpack.c.b16 %v3455, %v3455
      %v3488 = vpack.c.b16 %v3456, %v3456
      %v3489 = vpack.c.b16 %v3457, %v3457
      %v3490 = vpack.c.b16 %v3458, %v3458
      %v3491 = vpack.c.b16 %v3459, %v3459
      %v3492 = vpack.c.b16 %v3460, %v3460
      %v3493 = vpack.c.b16 %v3461, %v3461
      %v3494 = vpack.c.b16 %v3462, %v3462
      %v3495 = vpack.c.b16 %v3463, %v3463
      %v3496 = vpack.c.b16 %v3464, %v3464
      %v3497 = vpack.c.b16 %v3465, %v3465
      %v3498 = vpack.c.b16 %v3466, %v3466
      %v3499 = vpack.c.b16 %v3467, %v3467
      %v3500 = vpack.c.b16 %v3468, %v3468
      %v3501 = vpack.c.b16 %v3469, %v3469
      %v3502 = vpack.c.b16 %v3470, %v3470
      %v3503 = vpack.c.b16 %v3471, %v3471
      %3536 = vst [vmem:[%s244] sm:$0xf] %v3472
      %3537 = vst [vmem:[%s244 + $0x4] sm:$0xf] %v3473
      %3538 = vst [vmem:[%s244 + $0x8] sm:$0xf] %v3474
      %3539 = vst [vmem:[%s244 + $0xc] sm:$0xf] %v3475
      %3540 = vst [vmem:[%s244 + $0x10] sm:$0xf] %v3476
      %3541 = vst [vmem:[%s244 + $0x14] sm:$0xf] %v3477
      %3542 = vst [vmem:[%s244 + $0x18] sm:$0xf] %v3478
      %3543 = vst [vmem:[%s244 + $0x1c] sm:$0xf] %v3479
      %3544 = vst [vmem:[%s244 + $0x20] sm:$0xf] %v3480
      %3545 = vst [vmem:[%s244 + $0x24] sm:$0xf] %v3481
      %3546 = vst [vmem:[%s244 + $0x28] sm:$0xf] %v3482
      %3547 = vst [vmem:[%s244 + $0x2c] sm:$0xf] %v3483
      %3548 = vst [vmem:[%s244 + $0x30] sm:$0xf] %v3484
      %3549 = vst [vmem:[%s244 + $0x34] sm:$0xf] %v3485
      %3550 = vst [vmem:[%s244 + $0x38] sm:$0xf] %v3486
      %3551 = vst [vmem:[%s244 + $0x3c] sm:$0xf] %v3487
      %3552 = vst [vmem:[%s244 + $0x40] sm:$0xf] %v3488
      %3553 = vst [vmem:[%s244 + $0x44] sm:$0xf] %v3489
      %3554 = vst [vmem:[%s244 + $0x48] sm:$0xf] %v3490
      %3555 = vst [vmem:[%s244 + $0x4c] sm:$0xf] %v3491
      %3556 = vst [vmem:[%s244 + $0x50] sm:$0xf] %v3492
      %3557 = vst [vmem:[%s244 + $0x54] sm:$0xf] %v3493
      %3558 = vst [vmem:[%s244 + $0x58] sm:$0xf] %v3494
      %3559 = vst [vmem:[%s244 + $0x5c] sm:$0xf] %v3495
      %3560 = vst [vmem:[%s244 + $0x60] sm:$0xf] %v3496
      %3561 = vst [vmem:[%s244 + $0x64] sm:$0xf] %v3497
      %3562 = vst [vmem:[%s244 + $0x68] sm:$0xf] %v3498
      %3563 = vst [vmem:[%s244 + $0x6c] sm:$0xf] %v3499
      %3564 = vst [vmem:[%s244 + $0x70] sm:$0xf] %v3500
      %3565 = vst [vmem:[%s244 + $0x74] sm:$0xf] %v3501
      %3566 = vst [vmem:[%s244 + $0x78] sm:$0xf] %v3502
      %3567 = vst [vmem:[%s244 + $0x7c] sm:$0xf] %v3503
      %v3568 = vld [vmem:[%s251] sm:$0x1]
      %v3569 = vadd.f32 %v3376, %v3377
      %v3570 = vadd.f32 %v3569, %v3378
      %v3571 = vadd.f32 %v3570, %v3379
      %v3572 = vadd.f32 %v3571, %v3380
      %v3573 = vadd.f32 %v3572, %v3381
      %v3574 = vadd.f32 %v3573, %v3382
      %v3575 = vadd.f32 %v3574, %v3383
      %v3576 = vadd.f32 %v3575, %v3384
      %v3577 = vadd.f32 %v3576, %v3385
      %v3578 = vadd.f32 %v3577, %v3386
      %v3579 = vadd.f32 %v3578, %v3387
      %v3580 = vadd.f32 %v3579, %v3388
      %v3581 = vadd.f32 %v3580, %v3389
      %v3582 = vadd.f32 %v3581, %v3390
      %v3583 = vadd.f32 %v3582, %v3391
      %v3584 = vadd.f32 %v3583, %v3392
      %v3585 = vadd.f32 %v3584, %v3393
      %v3586 = vadd.f32 %v3585, %v3394
      %v3587 = vadd.f32 %v3586, %v3395
      %v3588 = vadd.f32 %v3587, %v3396
      %v3589 = vadd.f32 %v3588, %v3397
      %v3590 = vadd.f32 %v3589, %v3398
      %v3591 = vadd.f32 %v3590, %v3399
      %v3592 = vadd.f32 %v3591, %v3400
      %v3593 = vadd.f32 %v3592, %v3401
      %v3594 = vadd.f32 %v3593, %v3402
      %v3595 = vadd.f32 %v3594, %v3403
      %v3596 = vadd.f32 %v3595, %v3404
      %v3597 = vadd.f32 %v3596, %v3405
      %v3598 = vadd.f32 %v3597, %v3406
      %v3599 = vadd.f32 %v3598, %v3407
      %v3600 = vrot.slane %v3599, 4
      %v3601 = vadd.f32 %v3599, %v3600
      %v3602 = vrot.slane %v3601, 2
      %v3603 = vadd.f32 %v3601, %v3602
      %v3604 = vrot.slane %v3603, 1
      %v3605 = vadd.f32 %v3603, %v3604
      %v3606 = vadd.f32 %v3568, %v3605
      %3607 = vst [vmem:[%s251] sm:$0x1] %v3606
      %v3608 = vld [vmem:[%s255] sm:$0x1]
      %v3609 = vmul.f32 %v3376, %v3376
      %v3610 = vmul.f32 %v3377, %v3377
      %v3611 = vmul.f32 %v3378, %v3378
      %v3612 = vmul.f32 %v3379, %v3379
      %v3613 = vmul.f32 %v3380, %v3380
      %v3614 = vmul.f32 %v3381, %v3381
      %v3615 = vmul.f32 %v3382, %v3382
      %v3616 = vmul.f32 %v3383, %v3383
      %v3617 = vmul.f32 %v3384, %v3384
      %v3618 = vmul.f32 %v3385, %v3385
      %v3619 = vmul.f32 %v3386, %v3386
      %v3620 = vmul.f32 %v3387, %v3387
      %v3621 = vmul.f32 %v3388, %v3388
      %v3622 = vmul.f32 %v3389, %v3389
      %v3623 = vmul.f32 %v3390, %v3390
      %v3624 = vmul.f32 %v3391, %v3391
      %v3625 = vmul.f32 %v3392, %v3392
      %v3626 = vmul.f32 %v3393, %v3393
      %v3627 = vmul.f32 %v3394, %v3394
      %v3628 = vmul.f32 %v3395, %v3395
      %v3629 = vmul.f32 %v3396, %v3396
      %v3630 = vmul.f32 %v3397, %v3397
      %v3631 = vmul.f32 %v3398, %v3398
      %v3632 = vmul.f32 %v3399, %v3399
      %v3633 = vmul.f32 %v3400, %v3400
      %v3634 = vmul.f32 %v3401, %v3401
      %v3635 = vmul.f32 %v3402, %v3402
      %v3636 = vmul.f32 %v3403, %v3403
      %v3637 = vmul.f32 %v3404, %v3404
      %v3638 = vmul.f32 %v3405, %v3405
      %v3639 = vmul.f32 %v3406, %v3406
      %v3640 = vmul.f32 %v3407, %v3407
      %v3641 = vadd.f32 %v3609, %v3610
      %v3642 = vadd.f32 %v3641, %v3611
      %v3643 = vadd.f32 %v3642, %v3612
      %v3644 = vadd.f32 %v3643, %v3613
      %v3645 = vadd.f32 %v3644, %v3614
      %v3646 = vadd.f32 %v3645, %v3615
      %v3647 = vadd.f32 %v3646, %v3616
      %v3648 = vadd.f32 %v3647, %v3617
      %v3649 = vadd.f32 %v3648, %v3618
      %v3650 = vadd.f32 %v3649, %v3619
      %v3651 = vadd.f32 %v3650, %v3620
      %v3652 = vadd.f32 %v3651, %v3621
      %v3653 = vadd.f32 %v3652, %v3622
      %v3654 = vadd.f32 %v3653, %v3623
      %v3655 = vadd.f32 %v3654, %v3624
      %v3656 = vadd.f32 %v3655, %v3625
      %v3657 = vadd.f32 %v3656, %v3626
      %v3658 = vadd.f32 %v3657, %v3627
      %v3659 = vadd.f32 %v3658, %v3628
      %v3660 = vadd.f32 %v3659, %v3629
      %v3661 = vadd.f32 %v3660, %v3630
      %v3662 = vadd.f32 %v3661, %v3631
      %v3663 = vadd.f32 %v3662, %v3632
      %v3664 = vadd.f32 %v3663, %v3633
      %v3665 = vadd.f32 %v3664, %v3634
      %v3666 = vadd.f32 %v3665, %v3635
      %v3667 = vadd.f32 %v3666, %v3636
      %v3668 = vadd.f32 %v3667, %v3637
      %v3669 = vadd.f32 %v3668, %v3638
      %v3670 = vadd.f32 %v3669, %v3639
      %v3671 = vadd.f32 %v3670, %v3640
      %v3672 = vrot.slane %v3671, 4
      %v3673 = vadd.f32 %v3671, %v3672
      %v3674 = vrot.slane %v3673, 2
      %v3675 = vadd.f32 %v3673, %v3674
      %v3676 = vrot.slane %v3675, 1
      %v3677 = vadd.f32 %v3675, %v3676
      %v3678 = vadd.f32 %v3608, %v3677
      %3679 = vst [vmem:[%s255] sm:$0x1] %v3678
      %s3680 = smul.u32 %s20, 2
      %s3681 = sadd.s32 %s3680, %s21
      %s3682 = smul.u32 32, %s3681
      %p3683 = scmp.lt.s32.totalorder %s3682, 127
      %s3684 = scalar_select %p3683, %s3682, 127
      %s3685 = smul.addr %s3684, 4
      %s3686 = scalar_lea.vmem %s2, %s3685
      %p3687 = scmp.lt.s32.totalorder %s20, 1
      %s3688 = scalar_select %p3687, %s20, 1
      %s3689 = smul.addr %s3688, 8
      %s3690 = scalar_lea.vmem %s3, %s3689
      %p3691 = scmp.lt.s32.totalorder %s20, 1
      %s3692 = scalar_select %p3691, %s20, 1
      %s3693 = smul.addr %s3692, 8
      %s3694 = scalar_lea.vmem %s4, %s3693
      // Predicated region
      $region33: #{layer_forward.2} parent=27 // pred_check
        %p3695 = pneg %p101
      $region34: #{layer_forward.2} parent=27 // pred_check_branch
        %3697 = sbr.rel (%p3695) target = $region36
      $region35: #{layer_forward.2} parent=27 // pred_region
        %s3698 = smul.u32 %s20, 2
        %s3699 = sadd.s32 %s3698, %s21
        %s3700 = smul.u32 32, %s3699
      $region36: #{layer_forward.2} parent=27 // pred_fallthru
        _
      // Predicated region
      $region37: #{layer_forward.2} parent=27 // pred_check
        %p3701 = pneg %p127
      $region38: #{layer_forward.2} parent=27 // pred_check_branch
        %3703 = sbr.rel (%p3701) target = $region40
      $region39: #{layer_forward.2} parent=27 // pred_region
        _
      $region40: #{layer_forward.2} parent=27 // pred_fallthru
        _
      // Predicated region
      $region41: #{layer_forward.2} parent=27 // pred_check
        %p3704 = pneg %p153
      $region42: #{layer_forward.2} parent=27 // pred_check_branch
        %3706 = sbr.rel (%p3704) target = $region44
      $region43: #{layer_forward.2} parent=27 // pred_region
        _
      $region44: #{layer_forward.2} parent=27 // pred_fallthru
        _
    $region28: #{layer_forward.2} parent=5 // pred_fallthru
      _
    %p3707 = scmp.le.s32.totalorder 2, %s11
    // Predicated region
    $region45: #{layer_forward.2} parent=5 // pred_check
      %p3708 = pneg %p3707
    $region46: #{layer_forward.2} parent=5 // pred_check_branch
      %3710 = sbr.rel (%p3708) target = $region48
    $region47: #{layer_forward.2} parent=5 // pred_region
      %s3711 = ssub.s32 %s11, 2
      // Predicated region
      $region49: #{layer_forward.2} parent=47 // pred_check
        %p3712 = pneg %p107
      $region50: #{layer_forward.2} parent=47 // pred_check_branch
        %3714 = sbr.rel (%p3712) target = $region52
      $region51: #{layer_forward.2} parent=47 // pred_region
        %s3715 = smul.u32 %s22, 2
        %s3716 = sadd.s32 %s3715, %s23
        %s3717 = smul.u32 32, %s3716
        %p3718 = scmp.lt.s32.totalorder %s3717, 127
        %s3719 = scalar_select %p3718, %s3717, 127
        %s3720 = smul.addr %s3719, 4
        %s3721 = scalar_lea.vmem %s2, %s3720
      $region52: #{layer_forward.2} parent=47 // pred_fallthru
        _
      // Predicated region
      $region53: #{layer_forward.2} parent=47 // pred_check
        %p3722 = pneg %p133
      $region54: #{layer_forward.2} parent=47 // pred_check_branch
        %3724 = sbr.rel (%p3722) target = $region56
      $region55: #{layer_forward.2} parent=47 // pred_region
        %p3725 = scmp.lt.s32.totalorder %s22, 1
        %s3726 = scalar_select %p3725, %s22, 1
        %s3727 = smul.addr %s3726, 8
        %s3728 = scalar_lea.vmem %s3, %s3727
      $region56: #{layer_forward.2} parent=47 // pred_fallthru
        _
      // Predicated region
      $region57: #{layer_forward.2} parent=47 // pred_check
        %p3729 = pneg %p159
      $region58: #{layer_forward.2} parent=47 // pred_check_branch
        %3731 = sbr.rel (%p3729) target = $region60
      $region59: #{layer_forward.2} parent=47 // pred_region
        %p3732 = scmp.lt.s32.totalorder %s22, 1
        %s3733 = scalar_select %p3732, %s22, 1
        %s3734 = smul.addr %s3733, 8
        %s3735 = scalar_lea.vmem %s4, %s3734
      $region60: #{layer_forward.2} parent=47 // pred_fallthru
        _
    $region48: #{layer_forward.2} parent=5 // pred_fallthru
      _
  $region6: #{layer_forward.2} parent=0 // loop_footer
    %s15 = sadd.s32 1, %s11
  $region7: #{layer_forward.2} parent=0 // loop_footer_branch
    %10 = sbr.rel target = $region3
  $region8: #{layer_forward.2} parent=0 // loop_exit
    _

</llo_original>
